<compile_context>
chip_gen: v7x
topology: tpu7x:2x2x1
jax: 0.10.0
libtpu: 0.0.40
codegen_flags: <defaults>
</compile_context>

<pallas_src>
import functools

import jax
import jax.numpy as jnp
from jax.experimental import pallas as pl
from jax.experimental.pallas import tpu as pltpu


_VMEM_LIMIT = 32 * 1024 * 1024   # fits v5e/v6e/v7x comfortably; do not raise past ~48MB on v7x
_USE_EXACT_GELU = False          # True -> erf (exact PyTorch parity), slower VPU polynomial


# ----------------------------------------------------------------------------
# Small helpers
# ----------------------------------------------------------------------------
def _gelu(x):
    if _USE_EXACT_GELU:
        return 0.5 * x * (1.0 + jax.lax.erf(x * 0.7071067811865475))
    # tanh approximation -> EUP transcendental slot (otherwise idle)
    c = 0.7978845608028654  # sqrt(2/pi)
    return 0.5 * x * (1.0 + jnp.tanh(c * (x + 0.044715 * x * x * x)))


def _round_up(x, m):
    return (x + m - 1) // m * m


def _choose_hw_tile(hw, max_tile=1024):
    """Largest multiple of 16 that divides hw (<= max_tile); fall back to padding."""
    if hw <= 16:
        return hw, hw
    best = 0
    t = 16
    cap = min(hw, max_tile)
    while t <= cap:
        if hw % t == 0:
            best = t
        t += 16
    if best:
        return best, hw
    tile = min(max_tile, _round_up(hw, 16))
    return tile, _round_up(hw, tile)


def _block_diag(mat, n):
    """Repeat `mat` n times on the diagonal: (..., r, c) -> (..., n*r, n*c)."""
    *lead, r, c = mat.shape
    eye = jnp.eye(n, dtype=mat.dtype)
    out = jnp.einsum('ij,...rc->...irjc', eye, mat)
    return out.reshape(*lead, n * r, n * c)


def _convt_weight_to_matmul(w):
    # torch ConvTranspose2d weight (Cin, Cout, 2, 2) -> (Cin, 4*Cout),
    # columns ordered (a, b, cout).
    cin, cout = w.shape[0], w.shape[1]
    return jnp.transpose(w, (0, 2, 3, 1)).reshape(cin, 4 * cout)


# ----------------------------------------------------------------------------
# Pallas kernels
# ----------------------------------------------------------------------------
def _fused_upscale_mask_kernel(x_ref, w1_ref, b1_ref, g4_ref, be4_ref,
                               w2bd_ref, b2_ref, hyp_ref, o_ref, *, c4, eps):
    """One (batch, HW-tile) block of:
        y1  = convT1(x)                     (columns ordered a1,b1,c4)
        y1n = GELU(LayerNorm2d(y1))         (LN per (a1,b1) chunk over c4)
        y2  = GELU(convT2(y1n))             (block-diag W2 -> cols a1,b1,a2,b2,c8)
        out = y2 @ blockdiag_16(hyper[b])   (cols a1,b1,a2,b2,t)
    All matmuls bf16 x bf16 -> f32 accumulation; intermediates never leave VMEM.
    """
    x = x_ref[0]                                                   # (tile, C) bf16
    y1 = jnp.dot(x, w1_ref[...], preferred_element_type=jnp.float32) + b1_ref[...]

    inv_c4 = 1.0 / c4
    chunks = []
    for j in range(4):                                             # static loop
        yj = y1[:, j * c4:(j + 1) * c4]
        mu = jnp.sum(yj, axis=-1, keepdims=True) * inv_c4
        msq = jnp.sum(yj * yj, axis=-1, keepdims=True) * inv_c4
        var = jnp.maximum(msq - mu * mu, 0.0)                      # one-pass variance
        chunks.append((yj - mu) * jax.lax.rsqrt(var + eps))
    y1n = jnp.concatenate(chunks, axis=-1)                         # (tile, 4*C4)
    y1n = _gelu(y1n * g4_ref[...] + be4_ref[...]).astype(jnp.bfloat16)

    y2 = jnp.dot(y1n, w2bd_ref[...], preferred_element_type=jnp.float32) + b2_ref[...]
    y2 = _gelu(y2).astype(jnp.bfloat16)                            # (tile, 16*C8)

    o_ref[0] = jnp.dot(y2, hyp_ref[0], preferred_element_type=jnp.float32)


def _hyper_kernel(tok_ref, w1_ref, b1_ref, w2_ref, b2_ref, w3_ref, b3_ref, o_ref):
    """All num_mask_tokens 3-layer MLPs in one invocation (static loop over T)."""
    T = tok_ref.shape[0]
    for t in range(T):
        x = tok_ref[t]                                             # (B, C) bf16
        h = jnp.dot(x, w1_ref[t], preferred_element_type=jnp.float32) + b1_ref[t]
        h = jnp.maximum(h, 0.0).astype(w2_ref.dtype)
        h = jnp.dot(h, w2_ref[t], preferred_element_type=jnp.float32) + b2_ref[t]
        h = jnp.maximum(h, 0.0).astype(w3_ref.dtype)
        o_ref[t] = jnp.dot(h, w3_ref[t], preferred_element_type=jnp.float32) + b3_ref[t]


def _iou_kernel(x_ref, w1_ref, b1_ref, w2_ref, b2_ref, w3_ref, b3_ref, o_ref):
    """3-layer IoU prediction head fused into one invocation."""
    x = x_ref[...]                                                 # (B, C) bf16
    h = jnp.dot(x, w1_ref[...], preferred_element_type=jnp.float32) + b1_ref[...]
    h = jnp.maximum(h, 0.0).astype(w2_ref.dtype)
    h = jnp.dot(h, w2_ref[...], preferred_element_type=jnp.float32) + b2_ref[...]
    h = jnp.maximum(h, 0.0).astype(w3_ref.dtype)
    o_ref[...] = jnp.dot(h, w3_ref[...], preferred_element_type=jnp.float32) + b3_ref[...]


# ----------------------------------------------------------------------------
# Pallas wrappers
# ----------------------------------------------------------------------------
def pallas_upscale_mask(src_seq_bf16, hyp_bd, params, max_tile=1024):
    """src_seq_bf16: (B, HW, C) bf16; hyp_bd: (B, 16*C8, 16*T) bf16.
    Returns masks_flat (B, HW, 16*T) f32, columns ordered (a1,b1,a2,b2,t)."""
    B, HW, C = src_seq_bf16.shape
    C4 = params["up1_bm"].shape[1] // 4
    C8_16 = hyp_bd.shape[-2]
    T16 = hyp_bd.shape[-1]

    tile, HWp = _choose_hw_tile(HW, max_tile)
    # keep >= 2 parallel grid steps so both v7x TensorCores are used
    if B * (HWp // tile) < 2 and tile % 32 == 0:
        tile //= 2

    x = src_seq_bf16
    if HWp != HW:
        x = jnp.pad(x, ((0, 0), (0, HWp - HW), (0, 0)))

    grid = (B, HWp // tile)
    kernel = functools.partial(_fused_upscale_mask_kernel, c4=C4, eps=1e-6)
    out = pl.pallas_call(
        kernel,
        out_shape=jax.ShapeDtypeStruct((B, HWp, T16), jnp.float32),
        grid=grid,
        in_specs=[
            pl.BlockSpec((1, tile, C), lambda b, i: (b, i, 0)),
            pl.BlockSpec((C, 4 * C4), lambda b, i: (0, 0)),
            pl.BlockSpec((1, 4 * C4), lambda b, i: (0, 0)),
            pl.BlockSpec((1, 4 * C4), lambda b, i: (0, 0)),
            pl.BlockSpec((1, 4 * C4), lambda b, i: (0, 0)),
            pl.BlockSpec((4 * C4, C8_16), lambda b, i: (0, 0)),
            pl.BlockSpec((1, C8_16), lambda b, i: (0, 0)),
            pl.BlockSpec((1, C8_16, T16), lambda b, i: (b, 0, 0)),
        ],
        out_specs=pl.BlockSpec((1, tile, T16), lambda b, i: (b, i, 0)),
        compiler_params=pltpu.CompilerParams(
            dimension_semantics=("parallel", "parallel"),
            vmem_limit_bytes=_VMEM_LIMIT),
        cost_estimate=pl.CostEstimate(
            flops=2 * B * HWp * (C * 4 * C4 + 4 * C4 * C8_16 + C8_16 * T16),
            transcendentals=B * HWp * (4 * C4 + C8_16 + 4),
            bytes_accessed=(2 * B * HWp * C
                            + 2 * (C * 4 * C4 + 4 * C4 * C8_16 + B * C8_16 * T16)
                            + 4 * B * HWp * T16)),
    )(x, params["up1_wm"], params["up1_bm"], params["up_ln_g4"],
      params["up_ln_b4"], params["up2_wbd"], params["up2_bm"], hyp_bd)
    return out[:, :HW] if HWp != HW else out


def pallas_hyper_mlps(tokens_tbc, params):
    """tokens_tbc: (T, B, C) bf16. Returns (T, B, C8) f32."""
    T, B, C = tokens_tbc.shape
    C8 = params["hyp_w3"].shape[-1]
    return pl.pallas_call(
        _hyper_kernel,
        out_shape=jax.ShapeDtypeStruct((T, B, C8), jnp.float32),
        grid=(1,),
        in_specs=[
            pl.BlockSpec((T, B, C), lambda i: (0, 0, 0)),
            pl.BlockSpec((T, C, C), lambda i: (0, 0, 0)),
            pl.BlockSpec((T, 1, C), lambda i: (0, 0, 0)),
            pl.BlockSpec((T, C, C), lambda i: (0, 0, 0)),
            pl.BlockSpec((T, 1, C), lambda i: (0, 0, 0)),
            pl.BlockSpec((T, C, C8), lambda i: (0, 0, 0)),
            pl.BlockSpec((T, 1, C8), lambda i: (0, 0, 0)),
        ],
        out_specs=pl.BlockSpec((T, B, C8), lambda i: (0, 0, 0)),
        compiler_params=pltpu.CompilerParams(
            dimension_semantics=("arbitrary",), vmem_limit_bytes=_VMEM_LIMIT),
        cost_estimate=pl.CostEstimate(
            flops=2 * T * B * C * (2 * C + C8),
            transcendentals=0,
            bytes_accessed=2 * T * (B * C + 2 * C * C + C * C8) + 4 * T * B * C8),
    )(tokens_tbc, params["hyp_w1"], params["hyp_b1"], params["hyp_w2"],
      params["hyp_b2"], params["hyp_w3"], params["hyp_b3"])


def pallas_iou_head(x_bf16, params):
    """x_bf16: (B, C) bf16. Returns (B, T) f32."""
    B, C = x_bf16.shape
    Hh = params["iou_w1"].shape[1]
    T = params["iou_w3"].shape[1]
    return pl.pallas_call(
        _iou_kernel,
        out_shape=jax.ShapeDtypeStruct((B, T), jnp.float32),
        grid=(1,),
        in_specs=[
            pl.BlockSpec((B, C), lambda i: (0, 0)),
            pl.BlockSpec((C, Hh), lambda i: (0, 0)),
            pl.BlockSpec((1, Hh), lambda i: (0, 0)),
            pl.BlockSpec((Hh, Hh), lambda i: (0, 0)),
            pl.BlockSpec((1, Hh), lambda i: (0, 0)),
            pl.BlockSpec((Hh, T), lambda i: (0, 0)),
            pl.BlockSpec((1, T), lambda i: (0, 0)),
        ],
        out_specs=pl.BlockSpec((B, T), lambda i: (0, 0)),
        compiler_params=pltpu.CompilerParams(
            dimension_semantics=("arbitrary",), vmem_limit_bytes=_VMEM_LIMIT),
        cost_estimate=pl.CostEstimate(
            flops=2 * B * (C * Hh + Hh * Hh + Hh * T),
            transcendentals=0,
            bytes_accessed=2 * (B * C + C * Hh + Hh * Hh + Hh * T) + 4 * B * T),
    )(x_bf16, params["iou_w1"], params["iou_b1"].reshape(1, Hh),
      params["iou_w2"], params["iou_b2"].reshape(1, Hh),
      params["iou_w3"], params["iou_b3"].reshape(1, T))


# ----------------------------------------------------------------------------
# Parameter prep (done once)
# ----------------------------------------------------------------------------
def prepare_params(p):
    q = dict(p)
    C4 = p["up1_w"].shape[1]
    C8 = p["up2_w"].shape[1]
    w1m = _convt_weight_to_matmul(p["up1_w"])                     # (C, 4*C4)
    w2m = _convt_weight_to_matmul(p["up2_w"])                     # (C4, 4*C8)
    q["up1_wm"] = w1m.astype(jnp.bfloat16)
    q["up1_bm"] = jnp.tile(p["up1_b"], 4).reshape(1, 4 * C4)
    q["up2_wbd"] = _block_diag(w2m, 4).astype(jnp.bfloat16)       # (4*C4, 16*C8)
    q["up2_bm"] = jnp.tile(p["up2_b"], 16).reshape(1, 16 * C8)
    q["up_ln_g4"] = jnp.tile(p["up_ln_g"], 4).reshape(1, 4 * C4)
    q["up_ln_b4"] = jnp.tile(p["up_ln_b"], 4).reshape(1, 4 * C4)
    for k in ("hyp_w1", "hyp_w2", "hyp_w3", "iou_w1", "iou_w2", "iou_w3"):
        q[k] = p[k].astype(jnp.bfloat16)
    return q


# ----------------------------------------------------------------------------
# Transformer stub
# ----------------------------------------------------------------------------
def transformer_stub(src_seq, pos_seq, tokens):
    # TODO(synk): the real TwoWayTransformer is an external module passed into
    # MaskDecoder; replaced by a deterministic, parameter-free token<->image
    # mixing so the decoder head can be exercised end-to-end.
    ctx = jnp.mean(src_seq + pos_seq, axis=1, keepdims=True)          # (B,1,C)
    hs = tokens + ctx                                                 # (B,N,C)
    src_out = src_seq + pos_seq + jnp.mean(tokens, axis=1, keepdims=True)
    return hs, src_out


# ----------------------------------------------------------------------------
# MaskDecoder forward
# ----------------------------------------------------------------------------
def predict_masks(params, image_embeddings, image_pe,
                  sparse_prompt_embeddings, dense_prompt_embeddings):
    """image_embeddings / image_pe: (1, C, H, W); sparse: (B, Ns, C);
    dense: (B, C, H, W)."""
    C = params["iou_token"].shape[1]
    T = params["mask_tokens"].shape[0]
    B = sparse_prompt_embeddings.shape[0]
    H, W = image_embeddings.shape[2], image_embeddings.shape[3]

    # tokens = cat([iou_token, mask_tokens]) expanded, cat sparse prompts
    output_tokens = jnp.concatenate([params["iou_token"], params["mask_tokens"]], axis=0)
    output_tokens = jnp.broadcast_to(output_tokens[None], (B, 1 + T, C))
    tokens = jnp.concatenate([output_tokens, sparse_prompt_embeddings], axis=1)

    # src = image_embeddings (broadcast over batch) + dense prompts; no jnp.repeat copy
    src = image_embeddings + dense_prompt_embeddings                  # (B, C, H, W)
    pos_src = jnp.broadcast_to(image_pe, (B, C, H, W))

    # sequence layout (B, HW, C), rows in (h, w) row-major order
    src_seq = jnp.transpose(src, (0, 2, 3, 1)).reshape(B, H * W, C)
    pos_seq = jnp.transpose(pos_src, (0, 2, 3, 1)).reshape(B, H * W, C)

    hs, src_seq = transformer_stub(src_seq, pos_seq, tokens)
    iou_token_out = hs[:, 0, :]                                       # (B, C)
    mask_tokens_out = hs[:, 1:1 + T, :]                               # (B, T, C)

    # ---- hypernetwork MLPs first (their result feeds the fused kernel) ------
    tokens_tbc = jnp.transpose(mask_tokens_out, (1, 0, 2)).astype(jnp.bfloat16)
    hyper_tb = pallas_hyper_mlps(tokens_tbc, params)                  # (T, B, C8)
    hyper_t = jnp.transpose(hyper_tb, (1, 2, 0))                      # (B, C8, T)
    hyp_bd = _block_diag(hyper_t.astype(jnp.bfloat16), 16)            # (B, 16*C8, 16*T)

    # ---- fused convT1 + LN + GELU + convT2 + GELU + mask contraction --------
    masks_flat = pallas_upscale_mask(src_seq.astype(jnp.bfloat16), hyp_bd, params)
    # columns ordered (a1, b1, a2, b2, t); pixel-shuffle only the small result
    m = masks_flat.reshape(B, H, W, 2, 2, 2, 2, T)
    m = jnp.transpose(m, (0, 7, 1, 3, 5, 2, 4, 6))                    # (B,T,H,a1,a2,W,b1,b2)
    masks = m.reshape(B, T, 4 * H, 4 * W)

    # ---- IoU prediction head (single fused pallas_call) ---------------------
    iou_pred = pallas_iou_head(iou_token_out.astype(jnp.bfloat16), params)
    return masks, iou_pred


@functools.partial(jax.jit, static_argnames=("multimask_output",))
def mask_decoder_forward(params, image_embeddings, image_pe,
                         sparse_prompt_embeddings, dense_prompt_embeddings,
                         multimask_output):
    masks, iou_pred = predict_masks(params, image_embeddings, image_pe,
                                    sparse_prompt_embeddings,
                                    dense_prompt_embeddings)
    if multimask_output:
        masks = masks[:, 1:, :, :]
        iou_pred = iou_pred[:, 1:]
    else:
        masks = masks[:, :1, :, :]
        iou_pred = iou_pred[:, :1]
    return masks, iou_pred


# ----------------------------------------------------------------------------
# Deterministic parameter init
# ----------------------------------------------------------------------------
def init_params(key, C, num_multimask_outputs=3, iou_head_hidden_dim=None):
    T = num_multimask_outputs + 1
    C4, C8 = C // 4, C // 8
    Hh = iou_head_hidden_dim if iou_head_hidden_dim is not None else C
    keys = iter(jax.random.split(key, 32))

    def w(shape, scale=0.02):
        return scale * jax.random.normal(next(keys), shape, jnp.float32)

    return {
        "iou_token": w((1, C)),
        "mask_tokens": w((T, C)),
        # output_upscaling
        "up1_w": w((C, C4, 2, 2)), "up1_b": w((C4,)),
        "up_ln_g": jnp.ones((C4,), jnp.float32),
        "up_ln_b": jnp.zeros((C4,), jnp.float32),
        "up2_w": w((C4, C8, 2, 2)), "up2_b": w((C8,)),
        # hypernetwork MLPs, stacked over tokens; Linear weights stored (in, out)
        "hyp_w1": w((T, C, C)), "hyp_b1": w((T, 1, C)),
        "hyp_w2": w((T, C, C)), "hyp_b2": w((T, 1, C)),
        "hyp_w3": w((T, C, C8)), "hyp_b3": w((T, 1, C8)),
        # iou prediction head
        "iou_w1": w((C, Hh)), "iou_b1": w((Hh,)),
        "iou_w2": w((Hh, Hh)), "iou_b2": w((Hh,)),
        "iou_w3": w((Hh, T)), "iou_b3": w((T,)),
    }


# ----------------------------------------------------------------------------
if __name__ == "__main__":
    B, C, H, W = 2, 32, 8, 8            # transformer_dim=32, 8x8 image embedding
    num_multimask_outputs = 3
    num_mask_tokens = num_multimask_outputs + 1
    Ns = 2                               # sparse prompt tokens per image

    key = jax.random.PRNGKey(0)
    kp, k1, k2, k3, k4 = jax.random.split(key, 5)
    params = prepare_params(
        init_params(kp, C, num_multimask_outputs, iou_head_hidden_dim=32))

    image_embeddings = jax.random.normal(k1, (1, C, H, W), jnp.float32)    # NCHW
    image_pe = jax.random.normal(k2, (1, C, H, W), jnp.float32)            # NCHW
    sparse_prompt_embeddings = jax.random.normal(k3, (B, Ns, C), jnp.float32)
    dense_prompt_embeddings = jax.random.normal(k4, (B, C, H, W), jnp.float32)

    masks, iou_pred = mask_decoder_forward(
        params, image_embeddings, image_pe,
        sparse_prompt_embeddings, dense_prompt_embeddings, multimask_output=True)

    jax.block_until_ready(masks)
    jax.block_until_ready(iou_pred)
    assert masks.shape == (B, num_multimask_outputs, 4 * H, 4 * W)
    assert iou_pred.shape == (B, num_multimask_outputs)
    assert bool(jnp.all(jnp.isfinite(masks)))
    assert bool(jnp.all(jnp.isfinite(iou_pred)))
    print("KERNEL_OK")
</pallas_src>

<mosaic_0001>
module attributes {stable_mosaic.version = 11 : i64} {
  func.func @_iou_kernel(%arg0: i32, %arg1: memref<2x32xbf16, #tpu.memory_space<vmem>>, %arg2: memref<32x32xbf16, #tpu.memory_space<vmem>>, %arg3: memref<1x32xf32, #tpu.memory_space<vmem>>, %arg4: memref<32x32xbf16, #tpu.memory_space<vmem>>, %arg5: memref<1x32xf32, #tpu.memory_space<vmem>>, %arg6: memref<32x4xbf16, #tpu.memory_space<vmem>>, %arg7: memref<1x4xf32, #tpu.memory_space<vmem>>, %arg8: memref<2x4xf32, #tpu.memory_space<vmem>>) attributes {dimension_semantics = [#tpu.dimension_semantics<arbitrary>], iteration_bounds = array<i64: 1>, scalar_prefetch = 0 : i64, scratch_operands = 0 : i64, tpu.core_type = #tpu.core_type<tc>, window_params = [{pipeline_mode = #tpu.pipeline_mode<synchronous>, transform_indices = @transform_0, window_bounds = array<i64: 2, 32>}, {pipeline_mode = #tpu.pipeline_mode<synchronous>, transform_indices = @transform_1, window_bounds = array<i64: 32, 32>}, {pipeline_mode = #tpu.pipeline_mode<synchronous>, transform_indices = @transform_2, window_bounds = array<i64: 1, 32>}, {pipeline_mode = #tpu.pipeline_mode<synchronous>, transform_indices = @transform_3, window_bounds = array<i64: 32, 32>}, {pipeline_mode = #tpu.pipeline_mode<synchronous>, transform_indices = @transform_4, window_bounds = array<i64: 1, 32>}, {pipeline_mode = #tpu.pipeline_mode<synchronous>, transform_indices = @transform_5, window_bounds = array<i64: 32, 4>}, {pipeline_mode = #tpu.pipeline_mode<synchronous>, transform_indices = @transform_6, window_bounds = array<i64: 1, 4>}, {pipeline_mode = #tpu.pipeline_mode<synchronous>, transform_indices = @transform_7, window_bounds = array<i64: 2, 4>}]} {
    %c0 = arith.constant 0 : index
    %c0_0 = arith.constant 0 : index
    %0 = vector.load %arg1[%c0, %c0_0] : memref<2x32xbf16, #tpu.memory_space<vmem>>, vector<2x32xbf16>
    %c0_1 = arith.constant 0 : index
    %c0_2 = arith.constant 0 : index
    %1 = vector.load %arg2[%c0_1, %c0_2] : memref<32x32xbf16, #tpu.memory_space<vmem>>, vector<32x32xbf16>
    %cst = arith.constant dense<0.000000e+00> : vector<2x32xf32>
    %2 = tpu.matmul %0, %1, %cst {dimension_numbers = #tpu.dot_dimension_numbers<[1], [0], [0], [1], [0, 0, 1, 1], [], []>} : vector<2x32xbf16>, vector<32x32xbf16>, vector<2x32xf32> -> vector<2x32xf32>
    %c0_3 = arith.constant 0 : index
    %c0_4 = arith.constant 0 : index
    %3 = vector.load %arg3[%c0_3, %c0_4] : memref<1x32xf32, #tpu.memory_space<vmem>>, vector<1x32xf32>
    %4 = vector.broadcast %3 : vector<1x32xf32> to vector<2x32xf32>
    %5 = arith.addf %2, %4 : vector<2x32xf32>
    %cst_5 = arith.constant 0.000000e+00 : f32
    %6 = vector.broadcast %cst_5 : f32 to vector<2x32xf32>
    %7 = arith.maximumf %5, %6 : vector<2x32xf32>
    %8 = arith.truncf %7 : vector<2x32xf32> to vector<2x32xbf16>
    %c0_6 = arith.constant 0 : index
    %c0_7 = arith.constant 0 : index
    %9 = vector.load %arg4[%c0_6, %c0_7] : memref<32x32xbf16, #tpu.memory_space<vmem>>, vector<32x32xbf16>
    %cst_8 = arith.constant dense<0.000000e+00> : vector<2x32xf32>
    %10 = tpu.matmul %8, %9, %cst_8 {dimension_numbers = #tpu.dot_dimension_numbers<[1], [0], [0], [1], [0, 0, 1, 1], [], []>} : vector<2x32xbf16>, vector<32x32xbf16>, vector<2x32xf32> -> vector<2x32xf32>
    %c0_9 = arith.constant 0 : index
    %c0_10 = arith.constant 0 : index
    %11 = vector.load %arg5[%c0_9, %c0_10] : memref<1x32xf32, #tpu.memory_space<vmem>>, vector<1x32xf32>
    %12 = vector.broadcast %11 : vector<1x32xf32> to vector<2x32xf32>
    %13 = arith.addf %10, %12 : vector<2x32xf32>
    %cst_11 = arith.constant 0.000000e+00 : f32
    %14 = vector.broadcast %cst_11 : f32 to vector<2x32xf32>
    %15 = arith.maximumf %13, %14 : vector<2x32xf32>
    %16 = arith.truncf %15 : vector<2x32xf32> to vector<2x32xbf16>
    %c0_12 = arith.constant 0 : index
    %c0_13 = arith.constant 0 : index
    %17 = vector.load %arg6[%c0_12, %c0_13] : memref<32x4xbf16, #tpu.memory_space<vmem>>, vector<32x4xbf16>
    %cst_14 = arith.constant dense<0.000000e+00> : vector<2x4xf32>
    %18 = tpu.matmul %16, %17, %cst_14 {dimension_numbers = #tpu.dot_dimension_numbers<[1], [0], [0], [1], [0, 0, 1, 1], [], []>} : vector<2x32xbf16>, vector<32x4xbf16>, vector<2x4xf32> -> vector<2x4xf32>
    %c0_15 = arith.constant 0 : index
    %c0_16 = arith.constant 0 : index
    %19 = vector.load %arg7[%c0_15, %c0_16] : memref<1x4xf32, #tpu.memory_space<vmem>>, vector<1x4xf32>
    %20 = vector.broadcast %19 : vector<1x4xf32> to vector<2x4xf32>
    %21 = arith.addf %18, %20 : vector<2x4xf32>
    %c0_17 = arith.constant 0 : index
    %c0_18 = arith.constant 0 : index
    %22 = vector.load %arg8[%c0_17, %c0_18] : memref<2x4xf32, #tpu.memory_space<vmem>>, vector<2x4xf32>
    tpu.vector_store %arg8[%c0_17, %c0_18], %21 {strides = array<i32>} : memref<2x4xf32, #tpu.memory_space<vmem>>, vector<2x4xf32>,
    return
  }
  func.func @transform_0(%arg0: i32) -> (i32, i32) {
    %c0_i32 = arith.constant 0 : i32
    %c0_i32_0 = arith.constant 0 : i32
    %c0_i32_1 = arith.constant 0 : i32
    return %c0_i32, %c0_i32_0 : i32, i32
  }
  func.func @transform_1(%arg0: i32) -> (i32, i32) {
    %c0_i32 = arith.constant 0 : i32
    %c0_i32_0 = arith.constant 0 : i32
    %c0_i32_1 = arith.constant 0 : i32
    return %c0_i32, %c0_i32_0 : i32, i32
  }
  func.func @transform_2(%arg0: i32) -> (i32, i32) {
    %c0_i32 = arith.constant 0 : i32
    %c0_i32_0 = arith.constant 0 : i32
    %c0_i32_1 = arith.constant 0 : i32
    return %c0_i32, %c0_i32_0 : i32, i32
  }
  func.func @transform_3(%arg0: i32) -> (i32, i32) {
    %c0_i32 = arith.constant 0 : i32
    %c0_i32_0 = arith.constant 0 : i32
    %c0_i32_1 = arith.constant 0 : i32
    return %c0_i32, %c0_i32_0 : i32, i32
  }
  func.func @transform_4(%arg0: i32) -> (i32, i32) {
    %c0_i32 = arith.constant 0 : i32
    %c0_i32_0 = arith.constant 0 : i32
    %c0_i32_1 = arith.constant 0 : i32
    return %c0_i32, %c0_i32_0 : i32, i32
  }
  func.func @transform_5(%arg0: i32) -> (i32, i32) {
    %c0_i32 = arith.constant 0 : i32
    %c0_i32_0 = arith.constant 0 : i32
    %c0_i32_1 = arith.constant 0 : i32
    return %c0_i32, %c0_i32_0 : i32, i32
  }
  func.func @transform_6(%arg0: i32) -> (i32, i32) {
    %c0_i32 = arith.constant 0 : i32
    %c0_i32_0 = arith.constant 0 : i32
    %c0_i32_1 = arith.constant 0 : i32
    return %c0_i32, %c0_i32_0 : i32, i32
  }
  func.func @transform_7(%arg0: i32) -> (i32, i32) {
    %c0_i32 = arith.constant 0 : i32
    %c0_i32_0 = arith.constant 0 : i32
    %c0_i32_1 = arith.constant 0 : i32
    return %c0_i32, %c0_i32_0 : i32, i32
  }
}

module attributes {stable_mosaic.version = 11 : i64} {
  func.func @_hyper_kernel(%arg0: i32, %arg1: memref<4x2x32xbf16, #tpu.memory_space<vmem>>, %arg2: memref<4x32x32xbf16, #tpu.memory_space<vmem>>, %arg3: memref<4x1x32xf32, #tpu.memory_space<vmem>>, %arg4: memref<4x32x32xbf16, #tpu.memory_space<vmem>>, %arg5: memref<4x1x32xf32, #tpu.memory_space<vmem>>, %arg6: memref<4x32x4xbf16, #tpu.memory_space<vmem>>, %arg7: memref<4x1x4xf32, #tpu.memory_space<vmem>>, %arg8: memref<4x2x4xf32, #tpu.memory_space<vmem>>) attributes {dimension_semantics = [#tpu.dimension_semantics<arbitrary>], iteration_bounds = array<i64: 1>, scalar_prefetch = 0 : i64, scratch_operands = 0 : i64, tpu.core_type = #tpu.core_type<tc>, window_params = [{pipeline_mode = #tpu.pipeline_mode<synchronous>, transform_indices = @transform_0, window_bounds = array<i64: 4, 2, 32>}, {pipeline_mode = #tpu.pipeline_mode<synchronous>, transform_indices = @transform_1, window_bounds = array<i64: 4, 32, 32>}, {pipeline_mode = #tpu.pipeline_mode<synchronous>, transform_indices = @transform_2, window_bounds = array<i64: 4, 1, 32>}, {pipeline_mode = #tpu.pipeline_mode<synchronous>, transform_indices = @transform_3, window_bounds = array<i64: 4, 32, 32>}, {pipeline_mode = #tpu.pipeline_mode<synchronous>, transform_indices = @transform_4, window_bounds = array<i64: 4, 1, 32>}, {pipeline_mode = #tpu.pipeline_mode<synchronous>, transform_indices = @transform_5, window_bounds = array<i64: 4, 32, 4>}, {pipeline_mode = #tpu.pipeline_mode<synchronous>, transform_indices = @transform_6, window_bounds = array<i64: 4, 1, 4>}, {pipeline_mode = #tpu.pipeline_mode<synchronous>, transform_indices = @transform_7, window_bounds = array<i64: 4, 2, 4>}]} {
    %c0 = arith.constant 0 : index
    %c0_0 = arith.constant 0 : index
    %c0_1 = arith.constant 0 : index
    %0 = vector.load %arg1[%c0, %c0_0, %c0_1] : memref<4x2x32xbf16, #tpu.memory_space<vmem>>, vector<1x2x32xbf16>
    %1 = vector.shape_cast %0 : vector<1x2x32xbf16> to vector<2x32xbf16>
    %c0_2 = arith.constant 0 : index
    %c0_3 = arith.constant 0 : index
    %c0_4 = arith.constant 0 : index
    %2 = vector.load %arg2[%c0_2, %c0_3, %c0_4] : memref<4x32x32xbf16, #tpu.memory_space<vmem>>, vector<1x32x32xbf16>
    %3 = vector.shape_cast %2 : vector<1x32x32xbf16> to vector<32x32xbf16>
    %cst = arith.constant dense<0.000000e+00> : vector<2x32xf32>
    %4 = tpu.matmul %1, %3, %cst {dimension_numbers = #tpu.dot_dimension_numbers<[1], [0], [0], [1], [0, 0, 1, 1], [], []>} : vector<2x32xbf16>, vector<32x32xbf16>, vector<2x32xf32> -> vector<2x32xf32>
    %c0_5 = arith.constant 0 : index
    %c0_6 = arith.constant 0 : index
    %c0_7 = arith.constant 0 : index
    %5 = vector.load %arg3[%c0_5, %c0_6, %c0_7] : memref<4x1x32xf32, #tpu.memory_space<vmem>>, vector<1x1x32xf32>
    %6 = vector.shape_cast %5 : vector<1x1x32xf32> to vector<1x32xf32>
    %7 = vector.broadcast %6 : vector<1x32xf32> to vector<2x32xf32>
    %8 = arith.addf %4, %7 : vector<2x32xf32>
    %cst_8 = arith.constant 0.000000e+00 : f32
    %9 = vector.broadcast %cst_8 : f32 to vector<2x32xf32>
    %10 = arith.maximumf %8, %9 : vector<2x32xf32>
    %11 = arith.truncf %10 : vector<2x32xf32> to vector<2x32xbf16>
    %c0_9 = arith.constant 0 : index
    %c0_10 = arith.constant 0 : index
    %c0_11 = arith.constant 0 : index
    %12 = vector.load %arg4[%c0_9, %c0_10, %c0_11] : memref<4x32x32xbf16, #tpu.memory_space<vmem>>, vector<1x32x32xbf16>
    %13 = vector.shape_cast %12 : vector<1x32x32xbf16> to vector<32x32xbf16>
    %cst_12 = arith.constant dense<0.000000e+00> : vector<2x32xf32>
    %14 = tpu.matmul %11, %13, %cst_12 {dimension_numbers = #tpu.dot_dimension_numbers<[1], [0], [0], [1], [0, 0, 1, 1], [], []>} : vector<2x32xbf16>, vector<32x32xbf16>, vector<2x32xf32> -> vector<2x32xf32>
    %c0_13 = arith.constant 0 : index
    %c0_14 = arith.constant 0 : index
    %c0_15 = arith.constant 0 : index
    %15 = vector.load %arg5[%c0_13, %c0_14, %c0_15] : memref<4x1x32xf32, #tpu.memory_space<vmem>>, vector<1x1x32xf32>
    %16 = vector.shape_cast %15 : vector<1x1x32xf32> to vector<1x32xf32>
    %17 = vector.broadcast %16 : vector<1x32xf32> to vector<2x32xf32>
    %18 = arith.addf %14, %17 : vector<2x32xf32>
    %cst_16 = arith.constant 0.000000e+00 : f32
    %19 = vector.broadcast %cst_16 : f32 to vector<2x32xf32>
    %20 = arith.maximumf %18, %19 : vector<2x32xf32>
    %21 = arith.truncf %20 : vector<2x32xf32> to vector<2x32xbf16>
    %c0_17 = arith.constant 0 : index
    %c0_18 = arith.constant 0 : index
    %c0_19 = arith.constant 0 : index
    %22 = vector.load %arg6[%c0_17, %c0_18, %c0_19] : memref<4x32x4xbf16, #tpu.memory_space<vmem>>, vector<1x32x4xbf16>
    %23 = vector.shape_cast %22 : vector<1x32x4xbf16> to vector<32x4xbf16>
    %cst_20 = arith.constant dense<0.000000e+00> : vector<2x4xf32>
    %24 = tpu.matmul %21, %23, %cst_20 {dimension_numbers = #tpu.dot_dimension_numbers<[1], [0], [0], [1], [0, 0, 1, 1], [], []>} : vector<2x32xbf16>, vector<32x4xbf16>, vector<2x4xf32> -> vector<2x4xf32>
    %c0_21 = arith.constant 0 : index
    %c0_22 = arith.constant 0 : index
    %c0_23 = arith.constant 0 : index
    %25 = vector.load %arg7[%c0_21, %c0_22, %c0_23] : memref<4x1x4xf32, #tpu.memory_space<vmem>>, vector<1x1x4xf32>
    %26 = vector.shape_cast %25 : vector<1x1x4xf32> to vector<1x4xf32>
    %27 = vector.broadcast %26 : vector<1x4xf32> to vector<2x4xf32>
    %28 = arith.addf %24, %27 : vector<2x4xf32>
    %c0_24 = arith.constant 0 : index
    %c0_25 = arith.constant 0 : index
    %c0_26 = arith.constant 0 : index
    %29 = vector.load %arg8[%c0_24, %c0_25, %c0_26] : memref<4x2x4xf32, #tpu.memory_space<vmem>>, vector<1x2x4xf32>
    %30 = vector.shape_cast %29 : vector<1x2x4xf32> to vector<2x4xf32>
    %31 = vector.shape_cast %28 : vector<2x4xf32> to vector<1x2x4xf32>
    tpu.vector_store %arg8[%c0_24, %c0_25, %c0_26], %31 {strides = array<i32>} : memref<4x2x4xf32, #tpu.memory_space<vmem>>, vector<1x2x4xf32>,
    %c1 = arith.constant 1 : index
    %c0_27 = arith.constant 0 : index
    %c0_28 = arith.constant 0 : index
    %32 = vector.load %arg1[%c1, %c0_27, %c0_28] : memref<4x2x32xbf16, #tpu.memory_space<vmem>>, vector<1x2x32xbf16>
    %33 = vector.shape_cast %32 : vector<1x2x32xbf16> to vector<2x32xbf16>
    %c1_29 = arith.constant 1 : index
    %c0_30 = arith.constant 0 : index
    %c0_31 = arith.constant 0 : index
    %34 = vector.load %arg2[%c1_29, %c0_30, %c0_31] : memref<4x32x32xbf16, #tpu.memory_space<vmem>>, vector<1x32x32xbf16>
    %35 = vector.shape_cast %34 : vector<1x32x32xbf16> to vector<32x32xbf16>
    %cst_32 = arith.constant dense<0.000000e+00> : vector<2x32xf32>
    %36 = tpu.matmul %33, %35, %cst_32 {dimension_numbers = #tpu.dot_dimension_numbers<[1], [0], [0], [1], [0, 0, 1, 1], [], []>} : vector<2x32xbf16>, vector<32x32xbf16>, vector<2x32xf32> -> vector<2x32xf32>
    %c1_33 = arith.constant 1 : index
    %c0_34 = arith.constant 0 : index
    %c0_35 = arith.constant 0 : index
    %37 = vector.load %arg3[%c1_33, %c0_34, %c0_35] : memref<4x1x32xf32, #tpu.memory_space<vmem>>, vector<1x1x32xf32>
    %38 = vector.shape_cast %37 : vector<1x1x32xf32> to vector<1x32xf32>
    %39 = vector.broadcast %38 : vector<1x32xf32> to vector<2x32xf32>
    %40 = arith.addf %36, %39 : vector<2x32xf32>
    %cst_36 = arith.constant 0.000000e+00 : f32
    %41 = vector.broadcast %cst_36 : f32 to vector<2x32xf32>
    %42 = arith.maximumf %40, %41 : vector<2x32xf32>
    %43 = arith.truncf %42 : vector<2x32xf32> to vector<2x32xbf16>
    %c1_37 = arith.constant 1 : index
    %c0_38 = arith.constant 0 : index
    %c0_39 = arith.constant 0 : index
    %44 = vector.load %arg4[%c1_37, %c0_38, %c0_39] : memref<4x32x32xbf16, #tpu.memory_space<vmem>>, vector<1x32x32xbf16>
    %45 = vector.shape_cast %44 : vector<1x32x32xbf16> to vector<32x32xbf16>
    %cst_40 = arith.constant dense<0.000000e+00> : vector<2x32xf32>
    %46 = tpu.matmul %43, %45, %cst_40 {dimension_numbers = #tpu.dot_dimension_numbers<[1], [0], [0], [1], [0, 0, 1, 1], [], []>} : vector<2x32xbf16>, vector<32x32xbf16>, vector<2x32xf32> -> vector<2x32xf32>
    %c1_41 = arith.constant 1 : index
    %c0_42 = arith.constant 0 : index
    %c0_43 = arith.constant 0 : index
    %47 = vector.load %arg5[%c1_41, %c0_42, %c0_43] : memref<4x1x32xf32, #tpu.memory_space<vmem>>, vector<1x1x32xf32>
    %48 = vector.shape_cast %47 : vector<1x1x32xf32> to vector<1x32xf32>
    %49 = vector.broadcast %48 : vector<1x32xf32> to vector<2x32xf32>
    %50 = arith.addf %46, %49 : vector<2x32xf32>
    %cst_44 = arith.constant 0.000000e+00 : f32
    %51 = vector.broadcast %cst_44 : f32 to vector<2x32xf32>
    %52 = arith.maximumf %50, %51 : vector<2x32xf32>
    %53 = arith.truncf %52 : vector<2x32xf32> to vector<2x32xbf16>
    %c1_45 = arith.constant 1 : index
    %c0_46 = arith.constant 0 : index
    %c0_47 = arith.constant 0 : index
    %54 = vector.load %arg6[%c1_45, %c0_46, %c0_47] : memref<4x32x4xbf16, #tpu.memory_space<vmem>>, vector<1x32x4xbf16>
    %55 = vector.shape_cast %54 : vector<1x32x4xbf16> to vector<32x4xbf16>
    %cst_48 = arith.constant dense<0.000000e+00> : vector<2x4xf32>
    %56 = tpu.matmul %53, %55, %cst_48 {dimension_numbers = #tpu.dot_dimension_numbers<[1], [0], [0], [1], [0, 0, 1, 1], [], []>} : vector<2x32xbf16>, vector<32x4xbf16>, vector<2x4xf32> -> vector<2x4xf32>
    %c1_49 = arith.constant 1 : index
    %c0_50 = arith.constant 0 : index
    %c0_51 = arith.constant 0 : index
    %57 = vector.load %arg7[%c1_49, %c0_50, %c0_51] : memref<4x1x4xf32, #tpu.memory_space<vmem>>, vector<1x1x4xf32>
    %58 = vector.shape_cast %57 : vector<1x1x4xf32> to vector<1x4xf32>
    %59 = vector.broadcast %58 : vector<1x4xf32> to vector<2x4xf32>
    %60 = arith.addf %56, %59 : vector<2x4xf32>
    %c1_52 = arith.constant 1 : index
    %c0_53 = arith.constant 0 : index
    %c0_54 = arith.constant 0 : index
    %61 = vector.load %arg8[%c1_52, %c0_53, %c0_54] : memref<4x2x4xf32, #tpu.memory_space<vmem>>, vector<1x2x4xf32>
    %62 = vector.shape_cast %61 : vector<1x2x4xf32> to vector<2x4xf32>
    %63 = vector.shape_cast %60 : vector<2x4xf32> to vector<1x2x4xf32>
    tpu.vector_store %arg8[%c1_52, %c0_53, %c0_54], %63 {strides = array<i32>} : memref<4x2x4xf32, #tpu.memory_space<vmem>>, vector<1x2x4xf32>,
    %c2 = arith.constant 2 : index
    %c0_55 = arith.constant 0 : index
    %c0_56 = arith.constant 0 : index
    %64 = vector.load %arg1[%c2, %c0_55, %c0_56] : memref<4x2x32xbf16, #tpu.memory_space<vmem>>, vector<1x2x32xbf16>
    %65 = vector.shape_cast %64 : vector<1x2x32xbf16> to vector<2x32xbf16>
    %c2_57 = arith.constant 2 : index
    %c0_58 = arith.constant 0 : index
    %c0_59 = arith.constant 0 : index
    %66 = vector.load %arg2[%c2_57, %c0_58, %c0_59] : memref<4x32x32xbf16, #tpu.memory_space<vmem>>, vector<1x32x32xbf16>
    %67 = vector.shape_cast %66 : vector<1x32x32xbf16> to vector<32x32xbf16>
    %cst_60 = arith.constant dense<0.000000e+00> : vector<2x32xf32>
    %68 = tpu.matmul %65, %67, %cst_60 {dimension_numbers = #tpu.dot_dimension_numbers<[1], [0], [0], [1], [0, 0, 1, 1], [], []>} : vector<2x32xbf16>, vector<32x32xbf16>, vector<2x32xf32> -> vector<2x32xf32>
    %c2_61 = arith.constant 2 : index
    %c0_62 = arith.constant 0 : index
    %c0_63 = arith.constant 0 : index
    %69 = vector.load %arg3[%c2_61, %c0_62, %c0_63] : memref<4x1x32xf32, #tpu.memory_space<vmem>>, vector<1x1x32xf32>
    %70 = vector.shape_cast %69 : vector<1x1x32xf32> to vector<1x32xf32>
    %71 = vector.broadcast %70 : vector<1x32xf32> to vector<2x32xf32>
    %72 = arith.addf %68, %71 : vector<2x32xf32>
    %cst_64 = arith.constant 0.000000e+00 : f32
    %73 = vector.broadcast %cst_64 : f32 to vector<2x32xf32>
    %74 = arith.maximumf %72, %73 : vector<2x32xf32>
    %75 = arith.truncf %74 : vector<2x32xf32> to vector<2x32xbf16>
    %c2_65 = arith.constant 2 : index
    %c0_66 = arith.constant 0 : index
    %c0_67 = arith.constant 0 : index
    %76 = vector.load %arg4[%c2_65, %c0_66, %c0_67] : memref<4x32x32xbf16, #tpu.memory_space<vmem>>, vector<1x32x32xbf16>
    %77 = vector.shape_cast %76 : vector<1x32x32xbf16> to vector<32x32xbf16>
    %cst_68 = arith.constant dense<0.000000e+00> : vector<2x32xf32>
    %78 = tpu.matmul %75, %77, %cst_68 {dimension_numbers = #tpu.dot_dimension_numbers<[1], [0], [0], [1], [0, 0, 1, 1], [], []>} : vector<2x32xbf16>, vector<32x32xbf16>, vector<2x32xf32> -> vector<2x32xf32>
    %c2_69 = arith.constant 2 : index
    %c0_70 = arith.constant 0 : index
    %c0_71 = arith.constant 0 : index
    %79 = vector.load %arg5[%c2_69, %c0_70, %c0_71] : memref<4x1x32xf32, #tpu.memory_space<vmem>>, vector<1x1x32xf32>
    %80 = vector.shape_cast %79 : vector<1x1x32xf32> to vector<1x32xf32>
    %81 = vector.broadcast %80 : vector<1x32xf32> to vector<2x32xf32>
    %82 = arith.addf %78, %81 : vector<2x32xf32>
    %cst_72 = arith.constant 0.000000e+00 : f32
    %83 = vector.broadcast %cst_72 : f32 to vector<2x32xf32>
    %84 = arith.maximumf %82, %83 : vector<2x32xf32>
    %85 = arith.truncf %84 : vector<2x32xf32> to vector<2x32xbf16>
    %c2_73 = arith.constant 2 : index
    %c0_74 = arith.constant 0 : index
    %c0_75 = arith.constant 0 : index
    %86 = vector.load %arg6[%c2_73, %c0_74, %c0_75] : memref<4x32x4xbf16, #tpu.memory_space<vmem>>, vector<1x32x4xbf16>
    %87 = vector.shape_cast %86 : vector<1x32x4xbf16> to vector<32x4xbf16>
    %cst_76 = arith.constant dense<0.000000e+00> : vector<2x4xf32>
    %88 = tpu.matmul %85, %87, %cst_76 {dimension_numbers = #tpu.dot_dimension_numbers<[1], [0], [0], [1], [0, 0, 1, 1], [], []>} : vector<2x32xbf16>, vector<32x4xbf16>, vector<2x4xf32> -> vector<2x4xf32>
    %c2_77 = arith.constant 2 : index
    %c0_78 = arith.constant 0 : index
    %c0_79 = arith.constant 0 : index
    %89 = vector.load %arg7[%c2_77, %c0_78, %c0_79] : memref<4x1x4xf32, #tpu.memory_space<vmem>>, vector<1x1x4xf32>
    %90 = vector.shape_cast %89 : vector<1x1x4xf32> to vector<1x4xf32>
    %91 = vector.broadcast %90 : vector<1x4xf32> to vector<2x4xf32>
    %92 = arith.addf %88, %91 : vector<2x4xf32>
    %c2_80 = arith.constant 2 : index
    %c0_81 = arith.constant 0 : index
    %c0_82 = arith.constant 0 : index
    %93 = vector.load %arg8[%c2_80, %c0_81, %c0_82] : memref<4x2x4xf32, #tpu.memory_space<vmem>>, vector<1x2x4xf32>
    %94 = vector.shape_cast %93 : vector<1x2x4xf32> to vector<2x4xf32>
    %95 = vector.shape_cast %92 : vector<2x4xf32> to vector<1x2x4xf32>
    tpu.vector_store %arg8[%c2_80, %c0_81, %c0_82], %95 {strides = array<i32>} : memref<4x2x4xf32, #tpu.memory_space<vmem>>, vector<1x2x4xf32>,
    %c3 = arith.constant 3 : index
    %c0_83 = arith.constant 0 : index
    %c0_84 = arith.constant 0 : index
    %96 = vector.load %arg1[%c3, %c0_83, %c0_84] : memref<4x2x32xbf16, #tpu.memory_space<vmem>>, vector<1x2x32xbf16>
    %97 = vector.shape_cast %96 : vector<1x2x32xbf16> to vector<2x32xbf16>
    %c3_85 = arith.constant 3 : index
    %c0_86 = arith.constant 0 : index
    %c0_87 = arith.constant 0 : index
    %98 = vector.load %arg2[%c3_85, %c0_86, %c0_87] : memref<4x32x32xbf16, #tpu.memory_space<vmem>>, vector<1x32x32xbf16>
    %99 = vector.shape_cast %98 : vector<1x32x32xbf16> to vector<32x32xbf16>
    %cst_88 = arith.constant dense<0.000000e+00> : vector<2x32xf32>
    %100 = tpu.matmul %97, %99, %cst_88 {dimension_numbers = #tpu.dot_dimension_numbers<[1], [0], [0], [1], [0, 0, 1, 1], [], []>} : vector<2x32xbf16>, vector<32x32xbf16>, vector<2x32xf32> -> vector<2x32xf32>
    %c3_89 = arith.constant 3 : index
    %c0_90 = arith.constant 0 : index
    %c0_91 = arith.constant 0 : index
    %101 = vector.load %arg3[%c3_89, %c0_90, %c0_91] : memref<4x1x32xf32, #tpu.memory_space<vmem>>, vector<1x1x32xf32>
    %102 = vector.shape_cast %101 : vector<1x1x32xf32> to vector<1x32xf32>
    %103 = vector.broadcast %102 : vector<1x32xf32> to vector<2x32xf32>
    %104 = arith.addf %100, %103 : vector<2x32xf32>
    %cst_92 = arith.constant 0.000000e+00 : f32
    %105 = vector.broadcast %cst_92 : f32 to vector<2x32xf32>
    %106 = arith.maximumf %104, %105 : vector<2x32xf32>
    %107 = arith.truncf %106 : vector<2x32xf32> to vector<2x32xbf16>
    %c3_93 = arith.constant 3 : index
    %c0_94 = arith.constant 0 : index
    %c0_95 = arith.constant 0 : index
    %108 = vector.load %arg4[%c3_93, %c0_94, %c0_95] : memref<4x32x32xbf16, #tpu.memory_space<vmem>>, vector<1x32x32xbf16>
    %109 = vector.shape_cast %108 : vector<1x32x32xbf16> to vector<32x32xbf16>
    %cst_96 = arith.constant dense<0.000000e+00> : vector<2x32xf32>
    %110 = tpu.matmul %107, %109, %cst_96 {dimension_numbers = #tpu.dot_dimension_numbers<[1], [0], [0], [1], [0, 0, 1, 1], [], []>} : vector<2x32xbf16>, vector<32x32xbf16>, vector<2x32xf32> -> vector<2x32xf32>
    %c3_97 = arith.constant 3 : index
    %c0_98 = arith.constant 0 : index
    %c0_99 = arith.constant 0 : index
    %111 = vector.load %arg5[%c3_97, %c0_98, %c0_99] : memref<4x1x32xf32, #tpu.memory_space<vmem>>, vector<1x1x32xf32>
    %112 = vector.shape_cast %111 : vector<1x1x32xf32> to vector<1x32xf32>
    %113 = vector.broadcast %112 : vector<1x32xf32> to vector<2x32xf32>
    %114 = arith.addf %110, %113 : vector<2x32xf32>
    %cst_100 = arith.constant 0.000000e+00 : f32
    %115 = vector.broadcast %cst_100 : f32 to vector<2x32xf32>
    %116 = arith.maximumf %114, %115 : vector<2x32xf32>
    %117 = arith.truncf %116 : vector<2x32xf32> to vector<2x32xbf16>
    %c3_101 = arith.constant 3 : index
    %c0_102 = arith.constant 0 : index
    %c0_103 = arith.constant 0 : index
    %118 = vector.load %arg6[%c3_101, %c0_102, %c0_103] : memref<4x32x4xbf16, #tpu.memory_space<vmem>>, vector<1x32x4xbf16>
    %119 = vector.shape_cast %118 : vector<1x32x4xbf16> to vector<32x4xbf16>
    %cst_104 = arith.constant dense<0.000000e+00> : vector<2x4xf32>
    %120 = tpu.matmul %117, %119, %cst_104 {dimension_numbers = #tpu.dot_dimension_numbers<[1], [0], [0], [1], [0, 0, 1, 1], [], []>} : vector<2x32xbf16>, vector<32x4xbf16>, vector<2x4xf32> -> vector<2x4xf32>
    %c3_105 = arith.constant 3 : index
    %c0_106 = arith.constant 0 : index
    %c0_107 = arith.constant 0 : index
    %121 = vector.load %arg7[%c3_105, %c0_106, %c0_107] : memref<4x1x4xf32, #tpu.memory_space<vmem>>, vector<1x1x4xf32>
    %122 = vector.shape_cast %121 : vector<1x1x4xf32> to vector<1x4xf32>
    %123 = vector.broadcast %122 : vector<1x4xf32> to vector<2x4xf32>
    %124 = arith.addf %120, %123 : vector<2x4xf32>
    %c3_108 = arith.constant 3 : index
    %c0_109 = arith.constant 0 : index
    %c0_110 = arith.constant 0 : index
    %125 = vector.load %arg8[%c3_108, %c0_109, %c0_110] : memref<4x2x4xf32, #tpu.memory_space<vmem>>, vector<1x2x4xf32>
    %126 = vector.shape_cast %125 : vector<1x2x4xf32> to vector<2x4xf32>
    %127 = vector.shape_cast %124 : vector<2x4xf32> to vector<1x2x4xf32>
    tpu.vector_store %arg8[%c3_108, %c0_109, %c0_110], %127 {strides = array<i32>} : memref<4x2x4xf32, #tpu.memory_space<vmem>>, vector<1x2x4xf32>,
    return
  }
  func.func @transform_0(%arg0: i32) -> (i32, i32, i32) {
    %c0_i32 = arith.constant 0 : i32
    %c0_i32_0 = arith.constant 0 : i32
    %c0_i32_1 = arith.constant 0 : i32
    %c0_i32_2 = arith.constant 0 : i32
    return %c0_i32, %c0_i32_0, %c0_i32_1 : i32, i32, i32
  }
  func.func @transform_1(%arg0: i32) -> (i32, i32, i32) {
    %c0_i32 = arith.constant 0 : i32
    %c0_i32_0 = arith.constant 0 : i32
    %c0_i32_1 = arith.constant 0 : i32
    %c0_i32_2 = arith.constant 0 : i32
    return %c0_i32, %c0_i32_0, %c0_i32_1 : i32, i32, i32
  }
  func.func @transform_2(%arg0: i32) -> (i32, i32, i32) {
    %c0_i32 = arith.constant 0 : i32
    %c0_i32_0 = arith.constant 0 : i32
    %c0_i32_1 = arith.constant 0 : i32
    %c0_i32_2 = arith.constant 0 : i32
    return %c0_i32, %c0_i32_0, %c0_i32_1 : i32, i32, i32
  }
  func.func @transform_3(%arg0: i32) -> (i32, i32, i32) {
    %c0_i32 = arith.constant 0 : i32
    %c0_i32_0 = arith.constant 0 : i32
    %c0_i32_1 = arith.constant 0 : i32
    %c0_i32_2 = arith.constant 0 : i32
    return %c0_i32, %c0_i32_0, %c0_i32_1 : i32, i32, i32
  }
  func.func @transform_4(%arg0: i32) -> (i32, i32, i32) {
    %c0_i32 = arith.constant 0 : i32
    %c0_i32_0 = arith.constant 0 : i32
    %c0_i32_1 = arith.constant 0 : i32
    %c0_i32_2 = arith.constant 0 : i32
    return %c0_i32, %c0_i32_0, %c0_i32_1 : i32, i32, i32
  }
  func.func @transform_5(%arg0: i32) -> (i32, i32, i32) {
    %c0_i32 = arith.constant 0 : i32
    %c0_i32_0 = arith.constant 0 : i32
    %c0_i32_1 = arith.constant 0 : i32
    %c0_i32_2 = arith.constant 0 : i32
    return %c0_i32, %c0_i32_0, %c0_i32_1 : i32, i32, i32
  }
  func.func @transform_6(%arg0: i32) -> (i32, i32, i32) {
    %c0_i32 = arith.constant 0 : i32
    %c0_i32_0 = arith.constant 0 : i32
    %c0_i32_1 = arith.constant 0 : i32
    %c0_i32_2 = arith.constant 0 : i32
    return %c0_i32, %c0_i32_0, %c0_i32_1 : i32, i32, i32
  }
  func.func @transform_7(%arg0: i32) -> (i32, i32, i32) {
    %c0_i32 = arith.constant 0 : i32
    %c0_i32_0 = arith.constant 0 : i32
    %c0_i32_1 = arith.constant 0 : i32
    %c0_i32_2 = arith.constant 0 : i32
    return %c0_i32, %c0_i32_0, %c0_i32_1 : i32, i32, i32
  }
}

module attributes {stable_mosaic.version = 11 : i64} {
  func.func @_fused_upscale_mask_kernel(%arg0: i32, %arg1: i32, %arg2: memref<1x64x32xbf16, #tpu.memory_space<vmem>>, %arg3: memref<32x32xbf16, #tpu.memory_space<vmem>>, %arg4: memref<1x32xf32, #tpu.memory_space<vmem>>, %arg5: memref<1x32xf32, #tpu.memory_space<vmem>>, %arg6: memref<1x32xf32, #tpu.memory_space<vmem>>, %arg7: memref<32x64xbf16, #tpu.memory_space<vmem>>, %arg8: memref<1x64xf32, #tpu.memory_space<vmem>>, %arg9: memref<1x64x64xbf16, #tpu.memory_space<vmem>>, %arg10: memref<1x64x64xf32, #tpu.memory_space<vmem>>) attributes {dimension_semantics = [#tpu.dimension_semantics<parallel>, #tpu.dimension_semantics<parallel>], iteration_bounds = array<i64: 2, 1>, scalar_prefetch = 0 : i64, scratch_operands = 0 : i64, tpu.core_type = #tpu.core_type<tc>, window_params = [{transform_indices = @transform_0, window_bounds = array<i64: 1, 64, 32>}, {pipeline_mode = #tpu.pipeline_mode<synchronous>, transform_indices = @transform_1, window_bounds = array<i64: 32, 32>}, {pipeline_mode = #tpu.pipeline_mode<synchronous>, transform_indices = @transform_2, window_bounds = array<i64: 1, 32>}, {pipeline_mode = #tpu.pipeline_mode<synchronous>, transform_indices = @transform_3, window_bounds = array<i64: 1, 32>}, {pipeline_mode = #tpu.pipeline_mode<synchronous>, transform_indices = @transform_4, window_bounds = array<i64: 1, 32>}, {pipeline_mode = #tpu.pipeline_mode<synchronous>, transform_indices = @transform_5, window_bounds = array<i64: 32, 64>}, {pipeline_mode = #tpu.pipeline_mode<synchronous>, transform_indices = @transform_6, window_bounds = array<i64: 1, 64>}, {transform_indices = @transform_7, window_bounds = array<i64: 1, 64, 64>}, {transform_indices = @transform_8, window_bounds = array<i64: 1, 64, 64>}]} {
    %c0 = arith.constant 0 : index
    %c0_0 = arith.constant 0 : index
    %c0_1 = arith.constant 0 : index
    %0 = vector.load %arg2[%c0, %c0_0, %c0_1] : memref<1x64x32xbf16, #tpu.memory_space<vmem>>, vector<1x64x32xbf16>
    %1 = vector.shape_cast %0 : vector<1x64x32xbf16> to vector<64x32xbf16>
    %c0_2 = arith.constant 0 : index
    %c0_3 = arith.constant 0 : index
    %2 = vector.load %arg3[%c0_2, %c0_3] : memref<32x32xbf16, #tpu.memory_space<vmem>>, vector<32x32xbf16>
    %cst = arith.constant dense<0.000000e+00> : vector<64x32xf32>
    %3 = tpu.matmul %1, %2, %cst {dimension_numbers = #tpu.dot_dimension_numbers<[1], [0], [0], [1], [0, 0, 1, 1], [], []>} : vector<64x32xbf16>, vector<32x32xbf16>, vector<64x32xf32> -> vector<64x32xf32>
    %c0_4 = arith.constant 0 : index
    %c0_5 = arith.constant 0 : index
    %4 = vector.load %arg4[%c0_4, %c0_5] : memref<1x32xf32, #tpu.memory_space<vmem>>, vector<1x32xf32>
    %5 = vector.broadcast %4 : vector<1x32xf32> to vector<64x32xf32>
    %6 = arith.addf %3, %5 : vector<64x32xf32>
    %7 = vector.extract_strided_slice %6 {offsets = [0, 0], sizes = [64, 8], strides = [1, 1]} : vector<64x32xf32> to vector<64x8xf32>
    %cst_6 = arith.constant dense<0.000000e+00> : vector<64xf32>
    %8 = vector.multi_reduction <add>, %7, %cst_6 [1] : vector<64x8xf32> to vector<64xf32>
    %9 = vector.shape_cast %8 : vector<64xf32> to vector<64x1xf32>
    %cst_7 = arith.constant 1.250000e-01 : f32
    %10 = vector.broadcast %cst_7 : f32 to vector<64x1xf32>
    %11 = arith.mulf %9, %10 : vector<64x1xf32>
    %12 = arith.mulf %7, %7 : vector<64x8xf32>
    %cst_8 = arith.constant dense<0.000000e+00> : vector<64xf32>
    %13 = vector.multi_reduction <add>, %12, %cst_8 [1] : vector<64x8xf32> to vector<64xf32>
    %14 = vector.shape_cast %13 : vector<64xf32> to vector<64x1xf32>
    %cst_9 = arith.constant 1.250000e-01 : f32
    %15 = vector.broadcast %cst_9 : f32 to vector<64x1xf32>
    %16 = arith.mulf %14, %15 : vector<64x1xf32>
    %17 = arith.mulf %11, %11 : vector<64x1xf32>
    %18 = arith.subf %16, %17 : vector<64x1xf32>
    %cst_10 = arith.constant 0.000000e+00 : f32
    %19 = vector.broadcast %cst_10 : f32 to vector<64x1xf32>
    %20 = arith.maximumf %18, %19 : vector<64x1xf32>
    %21 = vector.broadcast %11 : vector<64x1xf32> to vector<64x8xf32>
    %22 = arith.subf %7, %21 : vector<64x8xf32>
    %cst_11 = arith.constant 9.99999997E-7 : f32
    %23 = vector.broadcast %cst_11 : f32 to vector<64x1xf32>
    %24 = arith.addf %20, %23 : vector<64x1xf32>
    %25 = math.rsqrt %24 : vector<64x1xf32>
    %26 = vector.broadcast %25 : vector<64x1xf32> to vector<64x8xf32>
    %27 = arith.mulf %22, %26 : vector<64x8xf32>
    %28 = vector.extract_strided_slice %6 {offsets = [0, 8], sizes = [64, 8], strides = [1, 1]} : vector<64x32xf32> to vector<64x8xf32>
    %cst_12 = arith.constant dense<0.000000e+00> : vector<64xf32>
    %29 = vector.multi_reduction <add>, %28, %cst_12 [1] : vector<64x8xf32> to vector<64xf32>
    %30 = vector.shape_cast %29 : vector<64xf32> to vector<64x1xf32>
    %cst_13 = arith.constant 1.250000e-01 : f32
    %31 = vector.broadcast %cst_13 : f32 to vector<64x1xf32>
    %32 = arith.mulf %30, %31 : vector<64x1xf32>
    %33 = arith.mulf %28, %28 : vector<64x8xf32>
    %cst_14 = arith.constant dense<0.000000e+00> : vector<64xf32>
    %34 = vector.multi_reduction <add>, %33, %cst_14 [1] : vector<64x8xf32> to vector<64xf32>
    %35 = vector.shape_cast %34 : vector<64xf32> to vector<64x1xf32>
    %cst_15 = arith.constant 1.250000e-01 : f32
    %36 = vector.broadcast %cst_15 : f32 to vector<64x1xf32>
    %37 = arith.mulf %35, %36 : vector<64x1xf32>
    %38 = arith.mulf %32, %32 : vector<64x1xf32>
    %39 = arith.subf %37, %38 : vector<64x1xf32>
    %cst_16 = arith.constant 0.000000e+00 : f32
    %40 = vector.broadcast %cst_16 : f32 to vector<64x1xf32>
    %41 = arith.maximumf %39, %40 : vector<64x1xf32>
    %42 = vector.broadcast %32 : vector<64x1xf32> to vector<64x8xf32>
    %43 = arith.subf %28, %42 : vector<64x8xf32>
    %cst_17 = arith.constant 9.99999997E-7 : f32
    %44 = vector.broadcast %cst_17 : f32 to vector<64x1xf32>
    %45 = arith.addf %41, %44 : vector<64x1xf32>
    %46 = math.rsqrt %45 : vector<64x1xf32>
    %47 = vector.broadcast %46 : vector<64x1xf32> to vector<64x8xf32>
    %48 = arith.mulf %43, %47 : vector<64x8xf32>
    %49 = vector.extract_strided_slice %6 {offsets = [0, 16], sizes = [64, 8], strides = [1, 1]} : vector<64x32xf32> to vector<64x8xf32>
    %cst_18 = arith.constant dense<0.000000e+00> : vector<64xf32>
    %50 = vector.multi_reduction <add>, %49, %cst_18 [1] : vector<64x8xf32> to vector<64xf32>
    %51 = vector.shape_cast %50 : vector<64xf32> to vector<64x1xf32>
    %cst_19 = arith.constant 1.250000e-01 : f32
    %52 = vector.broadcast %cst_19 : f32 to vector<64x1xf32>
    %53 = arith.mulf %51, %52 : vector<64x1xf32>
    %54 = arith.mulf %49, %49 : vector<64x8xf32>
    %cst_20 = arith.constant dense<0.000000e+00> : vector<64xf32>
    %55 = vector.multi_reduction <add>, %54, %cst_20 [1] : vector<64x8xf32> to vector<64xf32>
    %56 = vector.shape_cast %55 : vector<64xf32> to vector<64x1xf32>
    %cst_21 = arith.constant 1.250000e-01 : f32
    %57 = vector.broadcast %cst_21 : f32 to vector<64x1xf32>
    %58 = arith.mulf %56, %57 : vector<64x1xf32>
    %59 = arith.mulf %53, %53 : vector<64x1xf32>
    %60 = arith.subf %58, %59 : vector<64x1xf32>
    %cst_22 = arith.constant 0.000000e+00 : f32
    %61 = vector.broadcast %cst_22 : f32 to vector<64x1xf32>
    %62 = arith.maximumf %60, %61 : vector<64x1xf32>
    %63 = vector.broadcast %53 : vector<64x1xf32> to vector<64x8xf32>
    %64 = arith.subf %49, %63 : vector<64x8xf32>
    %cst_23 = arith.constant 9.99999997E-7 : f32
    %65 = vector.broadcast %cst_23 : f32 to vector<64x1xf32>
    %66 = arith.addf %62, %65 : vector<64x1xf32>
    %67 = math.rsqrt %66 : vector<64x1xf32>
    %68 = vector.broadcast %67 : vector<64x1xf32> to vector<64x8xf32>
    %69 = arith.mulf %64, %68 : vector<64x8xf32>
    %70 = vector.extract_strided_slice %6 {offsets = [0, 24], sizes = [64, 8], strides = [1, 1]} : vector<64x32xf32> to vector<64x8xf32>
    %cst_24 = arith.constant dense<0.000000e+00> : vector<64xf32>
    %71 = vector.multi_reduction <add>, %70, %cst_24 [1] : vector<64x8xf32> to vector<64xf32>
    %72 = vector.shape_cast %71 : vector<64xf32> to vector<64x1xf32>
    %cst_25 = arith.constant 1.250000e-01 : f32
    %73 = vector.broadcast %cst_25 : f32 to vector<64x1xf32>
    %74 = arith.mulf %72, %73 : vector<64x1xf32>
    %75 = arith.mulf %70, %70 : vector<64x8xf32>
    %cst_26 = arith.constant dense<0.000000e+00> : vector<64xf32>
    %76 = vector.multi_reduction <add>, %75, %cst_26 [1] : vector<64x8xf32> to vector<64xf32>
    %77 = vector.shape_cast %76 : vector<64xf32> to vector<64x1xf32>
    %cst_27 = arith.constant 1.250000e-01 : f32
    %78 = vector.broadcast %cst_27 : f32 to vector<64x1xf32>
    %79 = arith.mulf %77, %78 : vector<64x1xf32>
    %80 = arith.mulf %74, %74 : vector<64x1xf32>
    %81 = arith.subf %79, %80 : vector<64x1xf32>
    %cst_28 = arith.constant 0.000000e+00 : f32
    %82 = vector.broadcast %cst_28 : f32 to vector<64x1xf32>
    %83 = arith.maximumf %81, %82 : vector<64x1xf32>
    %84 = vector.broadcast %74 : vector<64x1xf32> to vector<64x8xf32>
    %85 = arith.subf %70, %84 : vector<64x8xf32>
    %cst_29 = arith.constant 9.99999997E-7 : f32
    %86 = vector.broadcast %cst_29 : f32 to vector<64x1xf32>
    %87 = arith.addf %83, %86 : vector<64x1xf32>
    %88 = math.rsqrt %87 : vector<64x1xf32>
    %89 = vector.broadcast %88 : vector<64x1xf32> to vector<64x8xf32>
    %90 = arith.mulf %85, %89 : vector<64x8xf32>
    %91 = tpu.concatenate %27, %48, %69, %90 in 1 : vector<64x8xf32>, vector<64x8xf32>, vector<64x8xf32>, vector<64x8xf32> -> vector<64x32xf32>
    %c0_30 = arith.constant 0 : index
    %c0_31 = arith.constant 0 : index
    %92 = vector.load %arg5[%c0_30, %c0_31] : memref<1x32xf32, #tpu.memory_space<vmem>>, vector<1x32xf32>
    %93 = vector.broadcast %92 : vector<1x32xf32> to vector<64x32xf32>
    %94 = arith.mulf %91, %93 : vector<64x32xf32>
    %c0_32 = arith.constant 0 : index
    %c0_33 = arith.constant 0 : index
    %95 = vector.load %arg6[%c0_32, %c0_33] : memref<1x32xf32, #tpu.memory_space<vmem>>, vector<1x32xf32>
    %96 = vector.broadcast %95 : vector<1x32xf32> to vector<64x32xf32>
    %97 = arith.addf %94, %96 : vector<64x32xf32>
    %cst_34 = arith.constant 5.000000e-01 : f32
    %98 = vector.broadcast %cst_34 : f32 to vector<64x32xf32>
    %99 = arith.mulf %98, %97 : vector<64x32xf32>
    %cst_35 = arith.constant 4.471500e-02 : f32
    %100 = vector.broadcast %cst_35 : f32 to vector<64x32xf32>
    %101 = arith.mulf %100, %97 : vector<64x32xf32>
    %102 = arith.mulf %101, %97 : vector<64x32xf32>
    %103 = arith.mulf %102, %97 : vector<64x32xf32>
    %104 = arith.addf %97, %103 : vector<64x32xf32>
    %cst_36 = arith.constant 0.797884583 : f32
    %105 = vector.broadcast %cst_36 : f32 to vector<64x32xf32>
    %106 = arith.mulf %105, %104 : vector<64x32xf32>
    %107 = math.tanh %106 : vector<64x32xf32>
    %cst_37 = arith.constant 1.000000e+00 : f32
    %108 = vector.broadcast %cst_37 : f32 to vector<64x32xf32>
    %109 = arith.addf %108, %107 : vector<64x32xf32>
    %110 = arith.mulf %99, %109 : vector<64x32xf32>
    %111 = arith.truncf %110 : vector<64x32xf32> to vector<64x32xbf16>
    %c0_38 = arith.constant 0 : index
    %c0_39 = arith.constant 0 : index
    %112 = vector.load %arg7[%c0_38, %c0_39] : memref<32x64xbf16, #tpu.memory_space<vmem>>, vector<32x64xbf16>
    %cst_40 = arith.constant dense<0.000000e+00> : vector<64x64xf32>
    %113 = tpu.matmul %111, %112, %cst_40 {dimension_numbers = #tpu.dot_dimension_numbers<[1], [0], [0], [1], [0, 0, 1, 1], [], []>} : vector<64x32xbf16>, vector<32x64xbf16>, vector<64x64xf32> -> vector<64x64xf32>
    %c0_41 = arith.constant 0 : index
    %c0_42 = arith.constant 0 : index
    %114 = vector.load %arg8[%c0_41, %c0_42] : memref<1x64xf32, #tpu.memory_space<vmem>>, vector<1x64xf32>
    %115 = vector.broadcast %114 : vector<1x64xf32> to vector<64x64xf32>
    %116 = arith.addf %113, %115 : vector<64x64xf32>
    %cst_43 = arith.constant 5.000000e-01 : f32
    %117 = vector.broadcast %cst_43 : f32 to vector<64x64xf32>
    %118 = arith.mulf %117, %116 : vector<64x64xf32>
    %cst_44 = arith.constant 4.471500e-02 : f32
    %119 = vector.broadcast %cst_44 : f32 to vector<64x64xf32>
    %120 = arith.mulf %119, %116 : vector<64x64xf32>
    %121 = arith.mulf %120, %116 : vector<64x64xf32>
    %122 = arith.mulf %121, %116 : vector<64x64xf32>
    %123 = arith.addf %116, %122 : vector<64x64xf32>
    %cst_45 = arith.constant 0.797884583 : f32
    %124 = vector.broadcast %cst_45 : f32 to vector<64x64xf32>
    %125 = arith.mulf %124, %123 : vector<64x64xf32>
    %126 = math.tanh %125 : vector<64x64xf32>
    %cst_46 = arith.constant 1.000000e+00 : f32
    %127 = vector.broadcast %cst_46 : f32 to vector<64x64xf32>
    %128 = arith.addf %127, %126 : vector<64x64xf32>
    %129 = arith.mulf %118, %128 : vector<64x64xf32>
    %130 = arith.truncf %129 : vector<64x64xf32> to vector<64x64xbf16>
    %c0_47 = arith.constant 0 : index
    %c0_48 = arith.constant 0 : index
    %c0_49 = arith.constant 0 : index
    %131 = vector.load %arg9[%c0_47, %c0_48, %c0_49] : memref<1x64x64xbf16, #tpu.memory_space<vmem>>, vector<1x64x64xbf16>
    %132 = vector.shape_cast %131 : vector<1x64x64xbf16> to vector<64x64xbf16>
    %cst_50 = arith.constant dense<0.000000e+00> : vector<64x64xf32>
    %133 = tpu.matmul %130, %132, %cst_50 {dimension_numbers = #tpu.dot_dimension_numbers<[1], [0], [0], [1], [0, 0, 1, 1], [], []>} : vector<64x64xbf16>, vector<64x64xbf16>, vector<64x64xf32> -> vector<64x64xf32>
    %c0_51 = arith.constant 0 : index
    %c0_52 = arith.constant 0 : index
    %c0_53 = arith.constant 0 : index
    %134 = vector.load %arg10[%c0_51, %c0_52, %c0_53] : memref<1x64x64xf32, #tpu.memory_space<vmem>>, vector<1x64x64xf32>
    %135 = vector.shape_cast %134 : vector<1x64x64xf32> to vector<64x64xf32>
    %136 = vector.shape_cast %133 : vector<64x64xf32> to vector<1x64x64xf32>
    tpu.vector_store %arg10[%c0_51, %c0_52, %c0_53], %136 {strides = array<i32>} : memref<1x64x64xf32, #tpu.memory_space<vmem>>, vector<1x64x64xf32>,
    return
  }
  func.func @transform_0(%arg0: i32, %arg1: i32) -> (i32, i32, i32) {
    %c0_i32 = arith.constant 0 : i32
    %c0_i32_0 = arith.constant 0 : i32
    return %arg0, %arg1, %c0_i32 : i32, i32, i32
  }
  func.func @transform_1(%arg0: i32, %arg1: i32) -> (i32, i32) {
    %c0_i32 = arith.constant 0 : i32
    %c0_i32_0 = arith.constant 0 : i32
    %c0_i32_1 = arith.constant 0 : i32
    return %c0_i32, %c0_i32_0 : i32, i32
  }
  func.func @transform_2(%arg0: i32, %arg1: i32) -> (i32, i32) {
    %c0_i32 = arith.constant 0 : i32
    %c0_i32_0 = arith.constant 0 : i32
    %c0_i32_1 = arith.constant 0 : i32
    return %c0_i32, %c0_i32_0 : i32, i32
  }
  func.func @transform_3(%arg0: i32, %arg1: i32) -> (i32, i32) {
    %c0_i32 = arith.constant 0 : i32
    %c0_i32_0 = arith.constant 0 : i32
    %c0_i32_1 = arith.constant 0 : i32
    return %c0_i32, %c0_i32_0 : i32, i32
  }
  func.func @transform_4(%arg0: i32, %arg1: i32) -> (i32, i32) {
    %c0_i32 = arith.constant 0 : i32
    %c0_i32_0 = arith.constant 0 : i32
    %c0_i32_1 = arith.constant 0 : i32
    return %c0_i32, %c0_i32_0 : i32, i32
  }
  func.func @transform_5(%arg0: i32, %arg1: i32) -> (i32, i32) {
    %c0_i32 = arith.constant 0 : i32
    %c0_i32_0 = arith.constant 0 : i32
    %c0_i32_1 = arith.constant 0 : i32
    return %c0_i32, %c0_i32_0 : i32, i32
  }
  func.func @transform_6(%arg0: i32, %arg1: i32) -> (i32, i32) {
    %c0_i32 = arith.constant 0 : i32
    %c0_i32_0 = arith.constant 0 : i32
    %c0_i32_1 = arith.constant 0 : i32
    return %c0_i32, %c0_i32_0 : i32, i32
  }
  func.func @transform_7(%arg0: i32, %arg1: i32) -> (i32, i32, i32) {
    %c0_i32 = arith.constant 0 : i32
    %c0_i32_0 = arith.constant 0 : i32
    %c0_i32_1 = arith.constant 0 : i32
    return %arg0, %c0_i32, %c0_i32_0 : i32, i32, i32
  }
  func.func @transform_8(%arg0: i32, %arg1: i32) -> (i32, i32, i32) {
    %c0_i32 = arith.constant 0 : i32
    %c0_i32_0 = arith.constant 0 : i32
    return %arg0, %arg1, %c0_i32 : i32, i32, i32
  }
}

</mosaic_0001>

<llo_original>
// kernel: mask_decoder_forward.5
$region0: #{mask_decoder_forward.5}
  #allocation0 [shape = 'u32[]', space=smem, size = 0x4, offset = 0x4, fixed_abs, tag = 'smem constant byte address 0x4 - core index']
  #allocation1 [shape = 'u32[144,128]{1,0:T(1,128)}', space=vmem, size = 0x12000, scoped, tag = 'internal scratch']
  %s0 = inlined_call_operand.vmem [shape: bf16[2,32], index: 0, kind: input, shape index: {}]
  %s1 = inlined_call_operand.vmem [shape: bf16[32,32], index: 1, kind: input, shape index: {}]
  %s2 = inlined_call_operand.vmem [shape: f32[1,32], index: 2, kind: input, shape index: {}]
  %s3 = inlined_call_operand.vmem [shape: bf16[32,32], index: 3, kind: input, shape index: {}]
  %s4 = inlined_call_operand.vmem [shape: f32[1,32], index: 4, kind: input, shape index: {}]
  %s5 = inlined_call_operand.vmem [shape: bf16[32,4], index: 5, kind: input, shape index: {}]
  %s6 = inlined_call_operand.vmem [shape: f32[1,4], index: 6, kind: input, shape index: {}]
  %s7 = inlined_call_operand.vmem [shape: f32[2,4], index: 7, kind: output, shape index: {}]
  %s8 = sld [smem:[#allocation0]]
  $region38: #{mask_decoder_forward.5} parent=0
    _
  %s10 = ssub.s32 1, %s8
  %s11 = scalar_select 0, %s10, %s8
  // Predicated region
  $region2: #{mask_decoder_forward.5} parent=0 // pred_check
    _
  $region3: #{mask_decoder_forward.5} parent=0 // pred_check_branch
    %13 = sbr.rel (0) target = $region5
  $region4: #{mask_decoder_forward.5} parent=0 // pred_region
    _
  $region5: #{mask_decoder_forward.5} parent=0 // pred_fallthru
    _
  // Predicated region
  $region6: #{mask_decoder_forward.5} parent=0 // pred_check
    _
  $region7: #{mask_decoder_forward.5} parent=0 // pred_check_branch
    %15 = sbr.rel (0) target = $region9
  $region8: #{mask_decoder_forward.5} parent=0 // pred_region
    _
  $region9: #{mask_decoder_forward.5} parent=0 // pred_fallthru
    _
  // Predicated region
  $region10: #{mask_decoder_forward.5} parent=0 // pred_check
    _
  $region11: #{mask_decoder_forward.5} parent=0 // pred_check_branch
    %17 = sbr.rel (0) target = $region13
  $region12: #{mask_decoder_forward.5} parent=0 // pred_region
    _
  $region13: #{mask_decoder_forward.5} parent=0 // pred_fallthru
    _
  // Predicated region
  $region14: #{mask_decoder_forward.5} parent=0 // pred_check
    _
  $region15: #{mask_decoder_forward.5} parent=0 // pred_check_branch
    %19 = sbr.rel (0) target = $region17
  $region16: #{mask_decoder_forward.5} parent=0 // pred_region
    _
  $region17: #{mask_decoder_forward.5} parent=0 // pred_fallthru
    _
  // Predicated region
  $region18: #{mask_decoder_forward.5} parent=0 // pred_check
    _
  $region19: #{mask_decoder_forward.5} parent=0 // pred_check_branch
    %21 = sbr.rel (0) target = $region21
  $region20: #{mask_decoder_forward.5} parent=0 // pred_region
    _
  $region21: #{mask_decoder_forward.5} parent=0 // pred_fallthru
    _
  // Predicated region
  $region22: #{mask_decoder_forward.5} parent=0 // pred_check
    _
  $region23: #{mask_decoder_forward.5} parent=0 // pred_check_branch
    %23 = sbr.rel (0) target = $region25
  $region24: #{mask_decoder_forward.5} parent=0 // pred_region
    _
  $region25: #{mask_decoder_forward.5} parent=0 // pred_fallthru
    _
  // Predicated region
  $region26: #{mask_decoder_forward.5} parent=0 // pred_check
    _
  $region27: #{mask_decoder_forward.5} parent=0 // pred_check_branch
    %25 = sbr.rel (0) target = $region29
  $region28: #{mask_decoder_forward.5} parent=0 // pred_region
    _
  $region29: #{mask_decoder_forward.5} parent=0 // pred_fallthru
    _
  %v27 = vld [vmem:[%s0] sm:$0x1]
  %v28 = vld [vmem:[%s1] sm:$0xf]
  %v29 = vld [vmem:[%s1 + $0x4] sm:$0xf]
  %v30 = vld [vmem:[%s1 + $0x8] sm:$0xf]
  %v31 = vld [vmem:[%s1 + $0xc] sm:$0xf]
  %v32 = vld [vmem:[%s2] sm:$0x1]
  %v34 = vlaneseq
  %v35 = vshrl.u32 %v34, 7
  %v36 = vsub.s32 0, %v35
  %v37 = vrot.slane %v32, %v36
  %v43 = vunpack.c.l.b16 %v28
  %v44 = vunpack.c.l.b16 %v29
  %v45 = vunpack.c.l.b16 %v30
  %v46 = vunpack.c.l.b16 %v31
  %v47 = vpack.c.b16 %v44, %v43
  %v48 = vpack.c.b16 %v46, %v45
  %vm51 = vcmask 261120
  %v53 = vsel %vm51, %v27, 0
  %55 = vmatprep.subr.bf16.mxu0 0
  %56 = vmatpush1.bf16.msra.mxu0 %v47
  %57 = vmatprep.subr.bf16.mxu0 0
  %58 = vmatpush1.bf16.msra.mxu0 %v48
  %59 = vmatprep.subr.bf16.mxu0 0
  %60 = vmatpush1.bf16.msra.mxu0 0
  %61 = vmatprep.subr.bf16.mxu0 0
  %62 = vmatpush1.bf16.msra.mxu0 0
  %63 = vmatprep.subr.bf16.mxu0 0
  %64 = vmatpush1.bf16.msra.mxu0 0
  %65 = vmatprep.subr.bf16.mxu0 0
  %66 = vmatpush1.bf16.msra.mxu0 0
  %67 = vmatprep.subr.bf16.mxu0 0
  %68 = vmatpush1.bf16.msra.mxu0 0
  %69 = vmatprep.subr.bf16.mxu0 0
  %70 = vmatpush1.bf16.msra.mxu0 0
  %71 = vmatprep.subr.bf16.mxu0 0
  %72 = vmatpush1.bf16.msra.mxu0 0
  %73 = vmatprep.subr.bf16.mxu0 0
  %74 = vmatpush1.bf16.msra.mxu0 0
  %75 = vmatprep.subr.bf16.mxu0 0
  %76 = vmatpush1.bf16.msra.mxu0 0
  %77 = vmatprep.subr.bf16.mxu0 0
  %78 = vmatpush1.bf16.msra.mxu0 0
  %79 = vmatprep.subr.bf16.mxu0 0
  %80 = vmatpush1.bf16.msra.mxu0 0
  %81 = vmatprep.subr.bf16.mxu0 0
  %82 = vmatpush1.bf16.msra.mxu0 0
  %83 = vmatprep.subr.bf16.mxu0 0
  %84 = vmatpush1.bf16.msra.mxu0 0
  %85 = vmatprep.subr.bf16.mxu0 0
  %86 = vmatpush1.bf16.msra.mxu0 0
  %87 = vmatprep.mubr.bf16.mxu0 0
  %88 = vmatmul.mubr.bf16.gmra.mrb[0].mxu0 %v53
  %v89 = vpop.f32.mrb[0].mxu0
  %v90 = vadd.f32 %v37, %v89
  %v91 = vpop.f32.mrb[0].mxu0
  %v92 = vpop.f32.mrb[0].mxu0
  %v93 = vpop.f32.mrb[0].mxu0
  %94 = vdwg.mxu0
  %v95 = vmax.f32 %v90, 0.0
  %v96 = vpack.c.bf16 %v95, %v95
  %v97 = vld [vmem:[%s3] sm:$0xf]
  %v98 = vld [vmem:[%s3 + $0x4] sm:$0xf]
  %v99 = vld [vmem:[%s3 + $0x8] sm:$0xf]
  %v100 = vld [vmem:[%s3 + $0xc] sm:$0xf]
  %v101 = vld [vmem:[%s4] sm:$0x1]
  %v103 = vlaneseq
  %v104 = vshrl.u32 %v103, 7
  %v105 = vsub.s32 0, %v104
  %v106 = vrot.slane %v101, %v105
  %v112 = vunpack.c.l.b16 %v97
  %v113 = vunpack.c.l.b16 %v98
  %v114 = vunpack.c.l.b16 %v99
  %v115 = vunpack.c.l.b16 %v100
  %v116 = vpack.c.b16 %v113, %v112
  %v117 = vpack.c.b16 %v115, %v114
  %v121 = vsel %vm51, %v96, 0
  %123 = vmatprep.subr.bf16.mxu0 0
  %124 = vmatpush1.bf16.msra.mxu0 %v116
  %125 = vmatprep.subr.bf16.mxu0 0
  %126 = vmatpush1.bf16.msra.mxu0 %v117
  %127 = vmatprep.subr.bf16.mxu0 0
  %128 = vmatpush1.bf16.msra.mxu0 0
  %129 = vmatprep.subr.bf16.mxu0 0
  %130 = vmatpush1.bf16.msra.mxu0 0
  %131 = vmatprep.subr.bf16.mxu0 0
  %132 = vmatpush1.bf16.msra.mxu0 0
  %133 = vmatprep.subr.bf16.mxu0 0
  %134 = vmatpush1.bf16.msra.mxu0 0
  %135 = vmatprep.subr.bf16.mxu0 0
  %136 = vmatpush1.bf16.msra.mxu0 0
  %137 = vmatprep.subr.bf16.mxu0 0
  %138 = vmatpush1.bf16.msra.mxu0 0
  %139 = vmatprep.subr.bf16.mxu0 0
  %140 = vmatpush1.bf16.msra.mxu0 0
  %141 = vmatprep.subr.bf16.mxu0 0
  %142 = vmatpush1.bf16.msra.mxu0 0
  %143 = vmatprep.subr.bf16.mxu0 0
  %144 = vmatpush1.bf16.msra.mxu0 0
  %145 = vmatprep.subr.bf16.mxu0 0
  %146 = vmatpush1.bf16.msra.mxu0 0
  %147 = vmatprep.subr.bf16.mxu0 0
  %148 = vmatpush1.bf16.msra.mxu0 0
  %149 = vmatprep.subr.bf16.mxu0 0
  %150 = vmatpush1.bf16.msra.mxu0 0
  %151 = vmatprep.subr.bf16.mxu0 0
  %152 = vmatpush1.bf16.msra.mxu0 0
  %153 = vmatprep.subr.bf16.mxu0 0
  %154 = vmatpush1.bf16.msra.mxu0 0
  %155 = vmatprep.mubr.bf16.mxu0 0
  %156 = vmatmul.mubr.bf16.gmra.mrb[0].mxu0 %v121
  %v157 = vpop.f32.mrb[0].mxu0
  %v158 = vadd.f32 %v106, %v157
  %v159 = vpop.f32.mrb[0].mxu0
  %v160 = vpop.f32.mrb[0].mxu0
  %v161 = vpop.f32.mrb[0].mxu0
  %162 = vdwg.mxu0
  %v163 = vmax.f32 %v158, 0.0
  %v164 = vpack.c.bf16 %v163, %v163
  %v165 = vld [vmem:[%s5] sm:$0xf]
  %v166 = vld [vmem:[%s5 + $0x4] sm:$0xf]
  %v167 = vld [vmem:[%s5 + $0x8] sm:$0xf]
  %v168 = vld [vmem:[%s5 + $0xc] sm:$0xf]
  %v169 = vld [vmem:[%s6] sm:$0x1]
  %v171 = vlaneseq
  %v172 = vshrl.u32 %v171, 7
  %v173 = vsub.s32 0, %v172
  %v174 = vrot.slane %v169, %v173
  %v180 = vunpack.c.l.b16 %v165
  %v181 = vunpack.c.l.b16 %v166
  %v182 = vunpack.c.l.b16 %v167
  %v183 = vunpack.c.l.b16 %v168
  %v184 = vpack.c.b16 %v181, %v180
  %v185 = vpack.c.b16 %v183, %v182
  %v189 = vsel %vm51, %v164, 0
  %191 = vmatprep.subr.bf16.mxu0 0
  %192 = vmatpush1.bf16.msra.mxu0 %v184
  %193 = vmatprep.subr.bf16.mxu0 0
  %194 = vmatpush1.bf16.msra.mxu0 %v185
  %195 = vmatprep.subr.bf16.mxu0 0
  %196 = vmatpush1.bf16.msra.mxu0 0
  %197 = vmatprep.subr.bf16.mxu0 0
  %198 = vmatpush1.bf16.msra.mxu0 0
  %199 = vmatprep.subr.bf16.mxu0 0
  %200 = vmatpush1.bf16.msra.mxu0 0
  %201 = vmatprep.subr.bf16.mxu0 0
  %202 = vmatpush1.bf16.msra.mxu0 0
  %203 = vmatprep.subr.bf16.mxu0 0
  %204 = vmatpush1.bf16.msra.mxu0 0
  %205 = vmatprep.subr.bf16.mxu0 0
  %206 = vmatpush1.bf16.msra.mxu0 0
  %207 = vmatprep.subr.bf16.mxu0 0
  %208 = vmatpush1.bf16.msra.mxu0 0
  %209 = vmatprep.subr.bf16.mxu0 0
  %210 = vmatpush1.bf16.msra.mxu0 0
  %211 = vmatprep.subr.bf16.mxu0 0
  %212 = vmatpush1.bf16.msra.mxu0 0
  %213 = vmatprep.subr.bf16.mxu0 0
  %214 = vmatpush1.bf16.msra.mxu0 0
  %215 = vmatprep.subr.bf16.mxu0 0
  %216 = vmatpush1.bf16.msra.mxu0 0
  %217 = vmatprep.subr.bf16.mxu0 0
  %218 = vmatpush1.bf16.msra.mxu0 0
  %219 = vmatprep.subr.bf16.mxu0 0
  %220 = vmatpush1.bf16.msra.mxu0 0
  %221 = vmatprep.subr.bf16.mxu0 0
  %222 = vmatpush1.bf16.msra.mxu0 0
  %223 = vmatprep.mubr.bf16.mxu0 0
  %224 = vmatmul.mubr.bf16.gmra.mrb[0].mxu0 %v189
  %v225 = vpop.f32.mrb[0].mxu0
  %v226 = vadd.f32 %v174, %v225
  %v227 = vpop.f32.mrb[0].mxu0
  %v228 = vpop.f32.mrb[0].mxu0
  %v229 = vpop.f32.mrb[0].mxu0
  %230 = vdwg.mxu0
  %vm231 = vcmask 25600
  %232 = vst.msk [vmem:[%s7] sm:$0x3] %vm231, %v226
  // Predicated region
  $region30: #{mask_decoder_forward.5} parent=0 // pred_check
    _
  $region31: #{mask_decoder_forward.5} parent=0 // pred_check_branch
    %234 = sbr.rel (0) target = $region33
  $region32: #{mask_decoder_forward.5} parent=0 // pred_region
    _
  $region33: #{mask_decoder_forward.5} parent=0 // pred_fallthru
    _
  // Predicated region
  $region34: #{mask_decoder_forward.5} parent=0 // pred_check
    _
  $region35: #{mask_decoder_forward.5} parent=0 // pred_check_branch
    %236 = sbr.rel (0) target = $region37
  $region36: #{mask_decoder_forward.5} parent=0 // pred_region
    _
  $region37: #{mask_decoder_forward.5} parent=0 // pred_fallthru
    _

// kernel: mask_decoder_forward.3
$region0: #{mask_decoder_forward.3}
  #allocation0 [shape = 'u32[]', space=smem, size = 0x4, offset = 0x4, fixed_abs, tag = 'smem constant byte address 0x4 - core index']
  #allocation1 [shape = 'u32[144,128]{1,0:T(1,128)}', space=vmem, size = 0x12000, scoped, tag = 'internal scratch']
  %s0 = inlined_call_operand.vmem [shape: bf16[4,2,32], index: 0, kind: input, shape index: {}]
  %s1 = inlined_call_operand.vmem [shape: bf16[4,32,32], index: 1, kind: input, shape index: {}]
  %s2 = inlined_call_operand.vmem [shape: f32[4,1,32], index: 2, kind: input, shape index: {}]
  %s3 = inlined_call_operand.vmem [shape: bf16[4,32,32], index: 3, kind: input, shape index: {}]
  %s4 = inlined_call_operand.vmem [shape: f32[4,1,32], index: 4, kind: input, shape index: {}]
  %s5 = inlined_call_operand.vmem [shape: bf16[4,32,4], index: 5, kind: input, shape index: {}]
  %s6 = inlined_call_operand.vmem [shape: f32[4,1,4], index: 6, kind: input, shape index: {}]
  %s7 = inlined_call_operand.vmem [shape: f32[4,2,4], index: 7, kind: output, shape index: {}]
  %s8 = sld [smem:[#allocation0]]
  $region38: #{mask_decoder_forward.3} parent=0
    _
  %s10 = ssub.s32 1, %s8
  %s11 = scalar_select 0, %s10, %s8
  // Predicated region
  $region2: #{mask_decoder_forward.3} parent=0 // pred_check
    _
  $region3: #{mask_decoder_forward.3} parent=0 // pred_check_branch
    %13 = sbr.rel (0) target = $region5
  $region4: #{mask_decoder_forward.3} parent=0 // pred_region
    _
  $region5: #{mask_decoder_forward.3} parent=0 // pred_fallthru
    _
  // Predicated region
  $region6: #{mask_decoder_forward.3} parent=0 // pred_check
    _
  $region7: #{mask_decoder_forward.3} parent=0 // pred_check_branch
    %15 = sbr.rel (0) target = $region9
  $region8: #{mask_decoder_forward.3} parent=0 // pred_region
    _
  $region9: #{mask_decoder_forward.3} parent=0 // pred_fallthru
    _
  // Predicated region
  $region10: #{mask_decoder_forward.3} parent=0 // pred_check
    _
  $region11: #{mask_decoder_forward.3} parent=0 // pred_check_branch
    %17 = sbr.rel (0) target = $region13
  $region12: #{mask_decoder_forward.3} parent=0 // pred_region
    _
  $region13: #{mask_decoder_forward.3} parent=0 // pred_fallthru
    _
  // Predicated region
  $region14: #{mask_decoder_forward.3} parent=0 // pred_check
    _
  $region15: #{mask_decoder_forward.3} parent=0 // pred_check_branch
    %19 = sbr.rel (0) target = $region17
  $region16: #{mask_decoder_forward.3} parent=0 // pred_region
    _
  $region17: #{mask_decoder_forward.3} parent=0 // pred_fallthru
    _
  // Predicated region
  $region18: #{mask_decoder_forward.3} parent=0 // pred_check
    _
  $region19: #{mask_decoder_forward.3} parent=0 // pred_check_branch
    %21 = sbr.rel (0) target = $region21
  $region20: #{mask_decoder_forward.3} parent=0 // pred_region
    _
  $region21: #{mask_decoder_forward.3} parent=0 // pred_fallthru
    _
  // Predicated region
  $region22: #{mask_decoder_forward.3} parent=0 // pred_check
    _
  $region23: #{mask_decoder_forward.3} parent=0 // pred_check_branch
    %23 = sbr.rel (0) target = $region25
  $region24: #{mask_decoder_forward.3} parent=0 // pred_region
    _
  $region25: #{mask_decoder_forward.3} parent=0 // pred_fallthru
    _
  // Predicated region
  $region26: #{mask_decoder_forward.3} parent=0 // pred_check
    _
  $region27: #{mask_decoder_forward.3} parent=0 // pred_check_branch
    %25 = sbr.rel (0) target = $region29
  $region28: #{mask_decoder_forward.3} parent=0 // pred_region
    _
  $region29: #{mask_decoder_forward.3} parent=0 // pred_fallthru
    _
  %v27 = vld [vmem:[%s0] sm:$0x1]
  %v28 = vld [vmem:[%s1] sm:$0xf]
  %v29 = vld [vmem:[%s1 + $0x4] sm:$0xf]
  %v30 = vld [vmem:[%s1 + $0x8] sm:$0xf]
  %v31 = vld [vmem:[%s1 + $0xc] sm:$0xf]
  %v32 = vld [vmem:[%s2] sm:$0x1]
  %v34 = vlaneseq
  %v35 = vshrl.u32 %v34, 7
  %v36 = vsub.s32 0, %v35
  %v37 = vrot.slane %v32, %v36
  %v43 = vunpack.c.l.b16 %v28
  %v44 = vunpack.c.l.b16 %v29
  %v45 = vunpack.c.l.b16 %v30
  %v46 = vunpack.c.l.b16 %v31
  %v47 = vpack.c.b16 %v44, %v43
  %v48 = vpack.c.b16 %v46, %v45
  %vm51 = vcmask 261120
  %v53 = vsel %vm51, %v27, 0
  %55 = vmatprep.subr.bf16.mxu0 0
  %56 = vmatpush1.bf16.msra.mxu0 %v47
  %57 = vmatprep.subr.bf16.mxu0 0
  %58 = vmatpush1.bf16.msra.mxu0 %v48
  %59 = vmatprep.subr.bf16.mxu0 0
  %60 = vmatpush1.bf16.msra.mxu0 0
  %61 = vmatprep.subr.bf16.mxu0 0
  %62 = vmatpush1.bf16.msra.mxu0 0
  %63 = vmatprep.subr.bf16.mxu0 0
  %64 = vmatpush1.bf16.msra.mxu0 0
  %65 = vmatprep.subr.bf16.mxu0 0
  %66 = vmatpush1.bf16.msra.mxu0 0
  %67 = vmatprep.subr.bf16.mxu0 0
  %68 = vmatpush1.bf16.msra.mxu0 0
  %69 = vmatprep.subr.bf16.mxu0 0
  %70 = vmatpush1.bf16.msra.mxu0 0
  %71 = vmatprep.subr.bf16.mxu0 0
  %72 = vmatpush1.bf16.msra.mxu0 0
  %73 = vmatprep.subr.bf16.mxu0 0
  %74 = vmatpush1.bf16.msra.mxu0 0
  %75 = vmatprep.subr.bf16.mxu0 0
  %76 = vmatpush1.bf16.msra.mxu0 0
  %77 = vmatprep.subr.bf16.mxu0 0
  %78 = vmatpush1.bf16.msra.mxu0 0
  %79 = vmatprep.subr.bf16.mxu0 0
  %80 = vmatpush1.bf16.msra.mxu0 0
  %81 = vmatprep.subr.bf16.mxu0 0
  %82 = vmatpush1.bf16.msra.mxu0 0
  %83 = vmatprep.subr.bf16.mxu0 0
  %84 = vmatpush1.bf16.msra.mxu0 0
  %85 = vmatprep.subr.bf16.mxu0 0
  %86 = vmatpush1.bf16.msra.mxu0 0
  %87 = vmatprep.mubr.bf16.mxu0 0
  %88 = vmatmul.mubr.bf16.gmra.mrb[0].mxu0 %v53
  %v89 = vpop.f32.mrb[0].mxu0
  %v90 = vadd.f32 %v37, %v89
  %v91 = vpop.f32.mrb[0].mxu0
  %v92 = vpop.f32.mrb[0].mxu0
  %v93 = vpop.f32.mrb[0].mxu0
  %94 = vdwg.mxu0
  %v95 = vmax.f32 %v90, 0.0
  %v96 = vpack.c.bf16 %v95, %v95
  %v97 = vld [vmem:[%s3] sm:$0xf]
  %v98 = vld [vmem:[%s3 + $0x4] sm:$0xf]
  %v99 = vld [vmem:[%s3 + $0x8] sm:$0xf]
  %v100 = vld [vmem:[%s3 + $0xc] sm:$0xf]
  %v101 = vld [vmem:[%s4] sm:$0x1]
  %v103 = vlaneseq
  %v104 = vshrl.u32 %v103, 7
  %v105 = vsub.s32 0, %v104
  %v106 = vrot.slane %v101, %v105
  %v112 = vunpack.c.l.b16 %v97
  %v113 = vunpack.c.l.b16 %v98
  %v114 = vunpack.c.l.b16 %v99
  %v115 = vunpack.c.l.b16 %v100
  %v116 = vpack.c.b16 %v113, %v112
  %v117 = vpack.c.b16 %v115, %v114
  %v121 = vsel %vm51, %v96, 0
  %123 = vmatprep.subr.bf16.mxu0 0
  %124 = vmatpush1.bf16.msra.mxu0 %v116
  %125 = vmatprep.subr.bf16.mxu0 0
  %126 = vmatpush1.bf16.msra.mxu0 %v117
  %127 = vmatprep.subr.bf16.mxu0 0
  %128 = vmatpush1.bf16.msra.mxu0 0
  %129 = vmatprep.subr.bf16.mxu0 0
  %130 = vmatpush1.bf16.msra.mxu0 0
  %131 = vmatprep.subr.bf16.mxu0 0
  %132 = vmatpush1.bf16.msra.mxu0 0
  %133 = vmatprep.subr.bf16.mxu0 0
  %134 = vmatpush1.bf16.msra.mxu0 0
  %135 = vmatprep.subr.bf16.mxu0 0
  %136 = vmatpush1.bf16.msra.mxu0 0
  %137 = vmatprep.subr.bf16.mxu0 0
  %138 = vmatpush1.bf16.msra.mxu0 0
  %139 = vmatprep.subr.bf16.mxu0 0
  %140 = vmatpush1.bf16.msra.mxu0 0
  %141 = vmatprep.subr.bf16.mxu0 0
  %142 = vmatpush1.bf16.msra.mxu0 0
  %143 = vmatprep.subr.bf16.mxu0 0
  %144 = vmatpush1.bf16.msra.mxu0 0
  %145 = vmatprep.subr.bf16.mxu0 0
  %146 = vmatpush1.bf16.msra.mxu0 0
  %147 = vmatprep.subr.bf16.mxu0 0
  %148 = vmatpush1.bf16.msra.mxu0 0
  %149 = vmatprep.subr.bf16.mxu0 0
  %150 = vmatpush1.bf16.msra.mxu0 0
  %151 = vmatprep.subr.bf16.mxu0 0
  %152 = vmatpush1.bf16.msra.mxu0 0
  %153 = vmatprep.subr.bf16.mxu0 0
  %154 = vmatpush1.bf16.msra.mxu0 0
  %155 = vmatprep.mubr.bf16.mxu0 0
  %156 = vmatmul.mubr.bf16.gmra.mrb[0].mxu0 %v121
  %v157 = vpop.f32.mrb[0].mxu0
  %v158 = vadd.f32 %v106, %v157
  %v159 = vpop.f32.mrb[0].mxu0
  %v160 = vpop.f32.mrb[0].mxu0
  %v161 = vpop.f32.mrb[0].mxu0
  %162 = vdwg.mxu0
  %v163 = vmax.f32 %v158, 0.0
  %v164 = vpack.c.bf16 %v163, %v163
  %v165 = vld [vmem:[%s5] sm:$0xf]
  %v166 = vld [vmem:[%s5 + $0x4] sm:$0xf]
  %v167 = vld [vmem:[%s5 + $0x8] sm:$0xf]
  %v168 = vld [vmem:[%s5 + $0xc] sm:$0xf]
  %v169 = vld [vmem:[%s6] sm:$0x1]
  %v171 = vlaneseq
  %v172 = vshrl.u32 %v171, 7
  %v173 = vsub.s32 0, %v172
  %v174 = vrot.slane %v169, %v173
  %v180 = vunpack.c.l.b16 %v165
  %v181 = vunpack.c.l.b16 %v166
  %v182 = vunpack.c.l.b16 %v167
  %v183 = vunpack.c.l.b16 %v168
  %v184 = vpack.c.b16 %v181, %v180
  %v185 = vpack.c.b16 %v183, %v182
  %v189 = vsel %vm51, %v164, 0
  %191 = vmatprep.subr.bf16.mxu0 0
  %192 = vmatpush1.bf16.msra.mxu0 %v184
  %193 = vmatprep.subr.bf16.mxu0 0
  %194 = vmatpush1.bf16.msra.mxu0 %v185
  %195 = vmatprep.subr.bf16.mxu0 0
  %196 = vmatpush1.bf16.msra.mxu0 0
  %197 = vmatprep.subr.bf16.mxu0 0
  %198 = vmatpush1.bf16.msra.mxu0 0
  %199 = vmatprep.subr.bf16.mxu0 0
  %200 = vmatpush1.bf16.msra.mxu0 0
  %201 = vmatprep.subr.bf16.mxu0 0
  %202 = vmatpush1.bf16.msra.mxu0 0
  %203 = vmatprep.subr.bf16.mxu0 0
  %204 = vmatpush1.bf16.msra.mxu0 0
  %205 = vmatprep.subr.bf16.mxu0 0
  %206 = vmatpush1.bf16.msra.mxu0 0
  %207 = vmatprep.subr.bf16.mxu0 0
  %208 = vmatpush1.bf16.msra.mxu0 0
  %209 = vmatprep.subr.bf16.mxu0 0
  %210 = vmatpush1.bf16.msra.mxu0 0
  %211 = vmatprep.subr.bf16.mxu0 0
  %212 = vmatpush1.bf16.msra.mxu0 0
  %213 = vmatprep.subr.bf16.mxu0 0
  %214 = vmatpush1.bf16.msra.mxu0 0
  %215 = vmatprep.subr.bf16.mxu0 0
  %216 = vmatpush1.bf16.msra.mxu0 0
  %217 = vmatprep.subr.bf16.mxu0 0
  %218 = vmatpush1.bf16.msra.mxu0 0
  %219 = vmatprep.subr.bf16.mxu0 0
  %220 = vmatpush1.bf16.msra.mxu0 0
  %221 = vmatprep.subr.bf16.mxu0 0
  %222 = vmatpush1.bf16.msra.mxu0 0
  %223 = vmatprep.mubr.bf16.mxu0 0
  %224 = vmatmul.mubr.bf16.gmra.mrb[0].mxu0 %v189
  %v225 = vpop.f32.mrb[0].mxu0
  %v226 = vadd.f32 %v174, %v225
  %v227 = vpop.f32.mrb[0].mxu0
  %v228 = vpop.f32.mrb[0].mxu0
  %v229 = vpop.f32.mrb[0].mxu0
  %230 = vdwg.mxu0
  %vm231 = vcmask 25600
  %232 = vst.msk [vmem:[%s7] sm:$0x3] %vm231, %v226
  %s233 = scalar_lea.vmem %s0, 1
  %v234 = vld [vmem:[%s233] sm:$0x1]
  %s235 = scalar_lea.vmem %s1, 16
  %v236 = vld [vmem:[%s235] sm:$0xf]
  %v237 = vld [vmem:[%s235 + $0x4] sm:$0xf]
  %v238 = vld [vmem:[%s235 + $0x8] sm:$0xf]
  %v239 = vld [vmem:[%s235 + $0xc] sm:$0xf]
  %s240 = scalar_lea.vmem %s2, 1
  %v241 = vld [vmem:[%s240] sm:$0x1]
  %v243 = vlaneseq
  %v244 = vshrl.u32 %v243, 7
  %v245 = vsub.s32 0, %v244
  %v246 = vrot.slane %v241, %v245
  %v252 = vunpack.c.l.b16 %v236
  %v253 = vunpack.c.l.b16 %v237
  %v254 = vunpack.c.l.b16 %v238
  %v255 = vunpack.c.l.b16 %v239
  %v256 = vpack.c.b16 %v253, %v252
  %v257 = vpack.c.b16 %v255, %v254
  %v261 = vsel %vm51, %v234, 0
  %263 = vmatprep.subr.bf16.mxu0 0
  %264 = vmatpush1.bf16.msra.mxu0 %v256
  %265 = vmatprep.subr.bf16.mxu0 0
  %266 = vmatpush1.bf16.msra.mxu0 %v257
  %267 = vmatprep.subr.bf16.mxu0 0
  %268 = vmatpush1.bf16.msra.mxu0 0
  %269 = vmatprep.subr.bf16.mxu0 0
  %270 = vmatpush1.bf16.msra.mxu0 0
  %271 = vmatprep.subr.bf16.mxu0 0
  %272 = vmatpush1.bf16.msra.mxu0 0
  %273 = vmatprep.subr.bf16.mxu0 0
  %274 = vmatpush1.bf16.msra.mxu0 0
  %275 = vmatprep.subr.bf16.mxu0 0
  %276 = vmatpush1.bf16.msra.mxu0 0
  %277 = vmatprep.subr.bf16.mxu0 0
  %278 = vmatpush1.bf16.msra.mxu0 0
  %279 = vmatprep.subr.bf16.mxu0 0
  %280 = vmatpush1.bf16.msra.mxu0 0
  %281 = vmatprep.subr.bf16.mxu0 0
  %282 = vmatpush1.bf16.msra.mxu0 0
  %283 = vmatprep.subr.bf16.mxu0 0
  %284 = vmatpush1.bf16.msra.mxu0 0
  %285 = vmatprep.subr.bf16.mxu0 0
  %286 = vmatpush1.bf16.msra.mxu0 0
  %287 = vmatprep.subr.bf16.mxu0 0
  %288 = vmatpush1.bf16.msra.mxu0 0
  %289 = vmatprep.subr.bf16.mxu0 0
  %290 = vmatpush1.bf16.msra.mxu0 0
  %291 = vmatprep.subr.bf16.mxu0 0
  %292 = vmatpush1.bf16.msra.mxu0 0
  %293 = vmatprep.subr.bf16.mxu0 0
  %294 = vmatpush1.bf16.msra.mxu0 0
  %295 = vmatprep.mubr.bf16.mxu0 0
  %296 = vmatmul.mubr.bf16.gmra.mrb[0].mxu0 %v261
  %v297 = vpop.f32.mrb[0].mxu0
  %v298 = vadd.f32 %v246, %v297
  %v299 = vpop.f32.mrb[0].mxu0
  %v300 = vpop.f32.mrb[0].mxu0
  %v301 = vpop.f32.mrb[0].mxu0
  %302 = vdwg.mxu0
  %v303 = vmax.f32 %v298, 0.0
  %v304 = vpack.c.bf16 %v303, %v303
  %s305 = scalar_lea.vmem %s3, 16
  %v306 = vld [vmem:[%s305] sm:$0xf]
  %v307 = vld [vmem:[%s305 + $0x4] sm:$0xf]
  %v308 = vld [vmem:[%s305 + $0x8] sm:$0xf]
  %v309 = vld [vmem:[%s305 + $0xc] sm:$0xf]
  %s310 = scalar_lea.vmem %s4, 1
  %v311 = vld [vmem:[%s310] sm:$0x1]
  %v313 = vlaneseq
  %v314 = vshrl.u32 %v313, 7
  %v315 = vsub.s32 0, %v314
  %v316 = vrot.slane %v311, %v315
  %v322 = vunpack.c.l.b16 %v306
  %v323 = vunpack.c.l.b16 %v307
  %v324 = vunpack.c.l.b16 %v308
  %v325 = vunpack.c.l.b16 %v309
  %v326 = vpack.c.b16 %v323, %v322
  %v327 = vpack.c.b16 %v325, %v324
  %v331 = vsel %vm51, %v304, 0
  %333 = vmatprep.subr.bf16.mxu0 0
  %334 = vmatpush1.bf16.msra.mxu0 %v326
  %335 = vmatprep.subr.bf16.mxu0 0
  %336 = vmatpush1.bf16.msra.mxu0 %v327
  %337 = vmatprep.subr.bf16.mxu0 0
  %338 = vmatpush1.bf16.msra.mxu0 0
  %339 = vmatprep.subr.bf16.mxu0 0
  %340 = vmatpush1.bf16.msra.mxu0 0
  %341 = vmatprep.subr.bf16.mxu0 0
  %342 = vmatpush1.bf16.msra.mxu0 0
  %343 = vmatprep.subr.bf16.mxu0 0
  %344 = vmatpush1.bf16.msra.mxu0 0
  %345 = vmatprep.subr.bf16.mxu0 0
  %346 = vmatpush1.bf16.msra.mxu0 0
  %347 = vmatprep.subr.bf16.mxu0 0
  %348 = vmatpush1.bf16.msra.mxu0 0
  %349 = vmatprep.subr.bf16.mxu0 0
  %350 = vmatpush1.bf16.msra.mxu0 0
  %351 = vmatprep.subr.bf16.mxu0 0
  %352 = vmatpush1.bf16.msra.mxu0 0
  %353 = vmatprep.subr.bf16.mxu0 0
  %354 = vmatpush1.bf16.msra.mxu0 0
  %355 = vmatprep.subr.bf16.mxu0 0
  %356 = vmatpush1.bf16.msra.mxu0 0
  %357 = vmatprep.subr.bf16.mxu0 0
  %358 = vmatpush1.bf16.msra.mxu0 0
  %359 = vmatprep.subr.bf16.mxu0 0
  %360 = vmatpush1.bf16.msra.mxu0 0
  %361 = vmatprep.subr.bf16.mxu0 0
  %362 = vmatpush1.bf16.msra.mxu0 0
  %363 = vmatprep.subr.bf16.mxu0 0
  %364 = vmatpush1.bf16.msra.mxu0 0
  %365 = vmatprep.mubr.bf16.mxu0 0
  %366 = vmatmul.mubr.bf16.gmra.mrb[0].mxu0 %v331
  %v367 = vpop.f32.mrb[0].mxu0
  %v368 = vadd.f32 %v316, %v367
  %v369 = vpop.f32.mrb[0].mxu0
  %v370 = vpop.f32.mrb[0].mxu0
  %v371 = vpop.f32.mrb[0].mxu0
  %372 = vdwg.mxu0
  %v373 = vmax.f32 %v368, 0.0
  %v374 = vpack.c.bf16 %v373, %v373
  %s375 = scalar_lea.vmem %s5, 16
  %v376 = vld [vmem:[%s375] sm:$0xf]
  %v377 = vld [vmem:[%s375 + $0x4] sm:$0xf]
  %v378 = vld [vmem:[%s375 + $0x8] sm:$0xf]
  %v379 = vld [vmem:[%s375 + $0xc] sm:$0xf]
  %s380 = scalar_lea.vmem %s6, 1
  %v381 = vld [vmem:[%s380] sm:$0x1]
  %v383 = vlaneseq
  %v384 = vshrl.u32 %v383, 7
  %v385 = vsub.s32 0, %v384
  %v386 = vrot.slane %v381, %v385
  %v392 = vunpack.c.l.b16 %v376
  %v393 = vunpack.c.l.b16 %v377
  %v394 = vunpack.c.l.b16 %v378
  %v395 = vunpack.c.l.b16 %v379
  %v396 = vpack.c.b16 %v393, %v392
  %v397 = vpack.c.b16 %v395, %v394
  %v401 = vsel %vm51, %v374, 0
  %403 = vmatprep.subr.bf16.mxu0 0
  %404 = vmatpush1.bf16.msra.mxu0 %v396
  %405 = vmatprep.subr.bf16.mxu0 0
  %406 = vmatpush1.bf16.msra.mxu0 %v397
  %407 = vmatprep.subr.bf16.mxu0 0
  %408 = vmatpush1.bf16.msra.mxu0 0
  %409 = vmatprep.subr.bf16.mxu0 0
  %410 = vmatpush1.bf16.msra.mxu0 0
  %411 = vmatprep.subr.bf16.mxu0 0
  %412 = vmatpush1.bf16.msra.mxu0 0
  %413 = vmatprep.subr.bf16.mxu0 0
  %414 = vmatpush1.bf16.msra.mxu0 0
  %415 = vmatprep.subr.bf16.mxu0 0
  %416 = vmatpush1.bf16.msra.mxu0 0
  %417 = vmatprep.subr.bf16.mxu0 0
  %418 = vmatpush1.bf16.msra.mxu0 0
  %419 = vmatprep.subr.bf16.mxu0 0
  %420 = vmatpush1.bf16.msra.mxu0 0
  %421 = vmatprep.subr.bf16.mxu0 0
  %422 = vmatpush1.bf16.msra.mxu0 0
  %423 = vmatprep.subr.bf16.mxu0 0
  %424 = vmatpush1.bf16.msra.mxu0 0
  %425 = vmatprep.subr.bf16.mxu0 0
  %426 = vmatpush1.bf16.msra.mxu0 0
  %427 = vmatprep.subr.bf16.mxu0 0
  %428 = vmatpush1.bf16.msra.mxu0 0
  %429 = vmatprep.subr.bf16.mxu0 0
  %430 = vmatpush1.bf16.msra.mxu0 0
  %431 = vmatprep.subr.bf16.mxu0 0
  %432 = vmatpush1.bf16.msra.mxu0 0
  %433 = vmatprep.subr.bf16.mxu0 0
  %434 = vmatpush1.bf16.msra.mxu0 0
  %435 = vmatprep.mubr.bf16.mxu0 0
  %436 = vmatmul.mubr.bf16.gmra.mrb[0].mxu0 %v401
  %v437 = vpop.f32.mrb[0].mxu0
  %v438 = vadd.f32 %v386, %v437
  %v439 = vpop.f32.mrb[0].mxu0
  %v440 = vpop.f32.mrb[0].mxu0
  %v441 = vpop.f32.mrb[0].mxu0
  %442 = vdwg.mxu0
  %s443 = scalar_lea.vmem %s7, 2
  %444 = vst.msk [vmem:[%s443] sm:$0x3] %vm231, %v438
  %s445 = scalar_lea.vmem %s0, 2
  %v446 = vld [vmem:[%s445] sm:$0x1]
  %s447 = scalar_lea.vmem %s1, 32
  %v448 = vld [vmem:[%s447] sm:$0xf]
  %v449 = vld [vmem:[%s447 + $0x4] sm:$0xf]
  %v450 = vld [vmem:[%s447 + $0x8] sm:$0xf]
  %v451 = vld [vmem:[%s447 + $0xc] sm:$0xf]
  %s452 = scalar_lea.vmem %s2, 2
  %v453 = vld [vmem:[%s452] sm:$0x1]
  %v455 = vlaneseq
  %v456 = vshrl.u32 %v455, 7
  %v457 = vsub.s32 0, %v456
  %v458 = vrot.slane %v453, %v457
  %v464 = vunpack.c.l.b16 %v448
  %v465 = vunpack.c.l.b16 %v449
  %v466 = vunpack.c.l.b16 %v450
  %v467 = vunpack.c.l.b16 %v451
  %v468 = vpack.c.b16 %v465, %v464
  %v469 = vpack.c.b16 %v467, %v466
  %v473 = vsel %vm51, %v446, 0
  %475 = vmatprep.subr.bf16.mxu0 0
  %476 = vmatpush1.bf16.msra.mxu0 %v468
  %477 = vmatprep.subr.bf16.mxu0 0
  %478 = vmatpush1.bf16.msra.mxu0 %v469
  %479 = vmatprep.subr.bf16.mxu0 0
  %480 = vmatpush1.bf16.msra.mxu0 0
  %481 = vmatprep.subr.bf16.mxu0 0
  %482 = vmatpush1.bf16.msra.mxu0 0
  %483 = vmatprep.subr.bf16.mxu0 0
  %484 = vmatpush1.bf16.msra.mxu0 0
  %485 = vmatprep.subr.bf16.mxu0 0
  %486 = vmatpush1.bf16.msra.mxu0 0
  %487 = vmatprep.subr.bf16.mxu0 0
  %488 = vmatpush1.bf16.msra.mxu0 0
  %489 = vmatprep.subr.bf16.mxu0 0
  %490 = vmatpush1.bf16.msra.mxu0 0
  %491 = vmatprep.subr.bf16.mxu0 0
  %492 = vmatpush1.bf16.msra.mxu0 0
  %493 = vmatprep.subr.bf16.mxu0 0
  %494 = vmatpush1.bf16.msra.mxu0 0
  %495 = vmatprep.subr.bf16.mxu0 0
  %496 = vmatpush1.bf16.msra.mxu0 0
  %497 = vmatprep.subr.bf16.mxu0 0
  %498 = vmatpush1.bf16.msra.mxu0 0
  %499 = vmatprep.subr.bf16.mxu0 0
  %500 = vmatpush1.bf16.msra.mxu0 0
  %501 = vmatprep.subr.bf16.mxu0 0
  %502 = vmatpush1.bf16.msra.mxu0 0
  %503 = vmatprep.subr.bf16.mxu0 0
  %504 = vmatpush1.bf16.msra.mxu0 0
  %505 = vmatprep.subr.bf16.mxu0 0
  %506 = vmatpush1.bf16.msra.mxu0 0
  %507 = vmatprep.mubr.bf16.mxu0 0
  %508 = vmatmul.mubr.bf16.gmra.mrb[0].mxu0 %v473
  %v509 = vpop.f32.mrb[0].mxu0
  %v510 = vadd.f32 %v458, %v509
  %v511 = vpop.f32.mrb[0].mxu0
  %v512 = vpop.f32.mrb[0].mxu0
  %v513 = vpop.f32.mrb[0].mxu0
  %514 = vdwg.mxu0
  %v515 = vmax.f32 %v510, 0.0
  %v516 = vpack.c.bf16 %v515, %v515
  %s517 = scalar_lea.vmem %s3, 32
  %v518 = vld [vmem:[%s517] sm:$0xf]
  %v519 = vld [vmem:[%s517 + $0x4] sm:$0xf]
  %v520 = vld [vmem:[%s517 + $0x8] sm:$0xf]
  %v521 = vld [vmem:[%s517 + $0xc] sm:$0xf]
  %s522 = scalar_lea.vmem %s4, 2
  %v523 = vld [vmem:[%s522] sm:$0x1]
  %v525 = vlaneseq
  %v526 = vshrl.u32 %v525, 7
  %v527 = vsub.s32 0, %v526
  %v528 = vrot.slane %v523, %v527
  %v534 = vunpack.c.l.b16 %v518
  %v535 = vunpack.c.l.b16 %v519
  %v536 = vunpack.c.l.b16 %v520
  %v537 = vunpack.c.l.b16 %v521
  %v538 = vpack.c.b16 %v535, %v534
  %v539 = vpack.c.b16 %v537, %v536
  %v543 = vsel %vm51, %v516, 0
  %545 = vmatprep.subr.bf16.mxu0 0
  %546 = vmatpush1.bf16.msra.mxu0 %v538
  %547 = vmatprep.subr.bf16.mxu0 0
  %548 = vmatpush1.bf16.msra.mxu0 %v539
  %549 = vmatprep.subr.bf16.mxu0 0
  %550 = vmatpush1.bf16.msra.mxu0 0
  %551 = vmatprep.subr.bf16.mxu0 0
  %552 = vmatpush1.bf16.msra.mxu0 0
  %553 = vmatprep.subr.bf16.mxu0 0
  %554 = vmatpush1.bf16.msra.mxu0 0
  %555 = vmatprep.subr.bf16.mxu0 0
  %556 = vmatpush1.bf16.msra.mxu0 0
  %557 = vmatprep.subr.bf16.mxu0 0
  %558 = vmatpush1.bf16.msra.mxu0 0
  %559 = vmatprep.subr.bf16.mxu0 0
  %560 = vmatpush1.bf16.msra.mxu0 0
  %561 = vmatprep.subr.bf16.mxu0 0
  %562 = vmatpush1.bf16.msra.mxu0 0
  %563 = vmatprep.subr.bf16.mxu0 0
  %564 = vmatpush1.bf16.msra.mxu0 0
  %565 = vmatprep.subr.bf16.mxu0 0
  %566 = vmatpush1.bf16.msra.mxu0 0
  %567 = vmatprep.subr.bf16.mxu0 0
  %568 = vmatpush1.bf16.msra.mxu0 0
  %569 = vmatprep.subr.bf16.mxu0 0
  %570 = vmatpush1.bf16.msra.mxu0 0
  %571 = vmatprep.subr.bf16.mxu0 0
  %572 = vmatpush1.bf16.msra.mxu0 0
  %573 = vmatprep.subr.bf16.mxu0 0
  %574 = vmatpush1.bf16.msra.mxu0 0
  %575 = vmatprep.subr.bf16.mxu0 0
  %576 = vmatpush1.bf16.msra.mxu0 0
  %577 = vmatprep.mubr.bf16.mxu0 0
  %578 = vmatmul.mubr.bf16.gmra.mrb[0].mxu0 %v543
  %v579 = vpop.f32.mrb[0].mxu0
  %v580 = vadd.f32 %v528, %v579
  %v581 = vpop.f32.mrb[0].mxu0
  %v582 = vpop.f32.mrb[0].mxu0
  %v583 = vpop.f32.mrb[0].mxu0
  %584 = vdwg.mxu0
  %v585 = vmax.f32 %v580, 0.0
  %v586 = vpack.c.bf16 %v585, %v585
  %s587 = scalar_lea.vmem %s5, 32
  %v588 = vld [vmem:[%s587] sm:$0xf]
  %v589 = vld [vmem:[%s587 + $0x4] sm:$0xf]
  %v590 = vld [vmem:[%s587 + $0x8] sm:$0xf]
  %v591 = vld [vmem:[%s587 + $0xc] sm:$0xf]
  %s592 = scalar_lea.vmem %s6, 2
  %v593 = vld [vmem:[%s592] sm:$0x1]
  %v595 = vlaneseq
  %v596 = vshrl.u32 %v595, 7
  %v597 = vsub.s32 0, %v596
  %v598 = vrot.slane %v593, %v597
  %v604 = vunpack.c.l.b16 %v588
  %v605 = vunpack.c.l.b16 %v589
  %v606 = vunpack.c.l.b16 %v590
  %v607 = vunpack.c.l.b16 %v591
  %v608 = vpack.c.b16 %v605, %v604
  %v609 = vpack.c.b16 %v607, %v606
  %v613 = vsel %vm51, %v586, 0
  %615 = vmatprep.subr.bf16.mxu0 0
  %616 = vmatpush1.bf16.msra.mxu0 %v608
  %617 = vmatprep.subr.bf16.mxu0 0
  %618 = vmatpush1.bf16.msra.mxu0 %v609
  %619 = vmatprep.subr.bf16.mxu0 0
  %620 = vmatpush1.bf16.msra.mxu0 0
  %621 = vmatprep.subr.bf16.mxu0 0
  %622 = vmatpush1.bf16.msra.mxu0 0
  %623 = vmatprep.subr.bf16.mxu0 0
  %624 = vmatpush1.bf16.msra.mxu0 0
  %625 = vmatprep.subr.bf16.mxu0 0
  %626 = vmatpush1.bf16.msra.mxu0 0
  %627 = vmatprep.subr.bf16.mxu0 0
  %628 = vmatpush1.bf16.msra.mxu0 0
  %629 = vmatprep.subr.bf16.mxu0 0
  %630 = vmatpush1.bf16.msra.mxu0 0
  %631 = vmatprep.subr.bf16.mxu0 0
  %632 = vmatpush1.bf16.msra.mxu0 0
  %633 = vmatprep.subr.bf16.mxu0 0
  %634 = vmatpush1.bf16.msra.mxu0 0
  %635 = vmatprep.subr.bf16.mxu0 0
  %636 = vmatpush1.bf16.msra.mxu0 0
  %637 = vmatprep.subr.bf16.mxu0 0
  %638 = vmatpush1.bf16.msra.mxu0 0
  %639 = vmatprep.subr.bf16.mxu0 0
  %640 = vmatpush1.bf16.msra.mxu0 0
  %641 = vmatprep.subr.bf16.mxu0 0
  %642 = vmatpush1.bf16.msra.mxu0 0
  %643 = vmatprep.subr.bf16.mxu0 0
  %644 = vmatpush1.bf16.msra.mxu0 0
  %645 = vmatprep.subr.bf16.mxu0 0
  %646 = vmatpush1.bf16.msra.mxu0 0
  %647 = vmatprep.mubr.bf16.mxu0 0
  %648 = vmatmul.mubr.bf16.gmra.mrb[0].mxu0 %v613
  %v649 = vpop.f32.mrb[0].mxu0
  %v650 = vadd.f32 %v598, %v649
  %v651 = vpop.f32.mrb[0].mxu0
  %v652 = vpop.f32.mrb[0].mxu0
  %v653 = vpop.f32.mrb[0].mxu0
  %654 = vdwg.mxu0
  %s655 = scalar_lea.vmem %s7, 4
  %656 = vst.msk [vmem:[%s655] sm:$0x3] %vm231, %v650
  %s657 = scalar_lea.vmem %s0, 3
  %v658 = vld [vmem:[%s657] sm:$0x1]
  %s659 = scalar_lea.vmem %s1, 48
  %v660 = vld [vmem:[%s659] sm:$0xf]
  %v661 = vld [vmem:[%s659 + $0x4] sm:$0xf]
  %v662 = vld [vmem:[%s659 + $0x8] sm:$0xf]
  %v663 = vld [vmem:[%s659 + $0xc] sm:$0xf]
  %s664 = scalar_lea.vmem %s2, 3
  %v665 = vld [vmem:[%s664] sm:$0x1]
  %v667 = vlaneseq
  %v668 = vshrl.u32 %v667, 7
  %v669 = vsub.s32 0, %v668
  %v670 = vrot.slane %v665, %v669
  %v676 = vunpack.c.l.b16 %v660
  %v677 = vunpack.c.l.b16 %v661
  %v678 = vunpack.c.l.b16 %v662
  %v679 = vunpack.c.l.b16 %v663
  %v680 = vpack.c.b16 %v677, %v676
  %v681 = vpack.c.b16 %v679, %v678
  %v685 = vsel %vm51, %v658, 0
  %687 = vmatprep.subr.bf16.mxu0 0
  %688 = vmatpush1.bf16.msra.mxu0 %v680
  %689 = vmatprep.subr.bf16.mxu0 0
  %690 = vmatpush1.bf16.msra.mxu0 %v681
  %691 = vmatprep.subr.bf16.mxu0 0
  %692 = vmatpush1.bf16.msra.mxu0 0
  %693 = vmatprep.subr.bf16.mxu0 0
  %694 = vmatpush1.bf16.msra.mxu0 0
  %695 = vmatprep.subr.bf16.mxu0 0
  %696 = vmatpush1.bf16.msra.mxu0 0
  %697 = vmatprep.subr.bf16.mxu0 0
  %698 = vmatpush1.bf16.msra.mxu0 0
  %699 = vmatprep.subr.bf16.mxu0 0
  %700 = vmatpush1.bf16.msra.mxu0 0
  %701 = vmatprep.subr.bf16.mxu0 0
  %702 = vmatpush1.bf16.msra.mxu0 0
  %703 = vmatprep.subr.bf16.mxu0 0
  %704 = vmatpush1.bf16.msra.mxu0 0
  %705 = vmatprep.subr.bf16.mxu0 0
  %706 = vmatpush1.bf16.msra.mxu0 0
  %707 = vmatprep.subr.bf16.mxu0 0
  %708 = vmatpush1.bf16.msra.mxu0 0
  %709 = vmatprep.subr.bf16.mxu0 0
  %710 = vmatpush1.bf16.msra.mxu0 0
  %711 = vmatprep.subr.bf16.mxu0 0
  %712 = vmatpush1.bf16.msra.mxu0 0
  %713 = vmatprep.subr.bf16.mxu0 0
  %714 = vmatpush1.bf16.msra.mxu0 0
  %715 = vmatprep.subr.bf16.mxu0 0
  %716 = vmatpush1.bf16.msra.mxu0 0
  %717 = vmatprep.subr.bf16.mxu0 0
  %718 = vmatpush1.bf16.msra.mxu0 0
  %719 = vmatprep.mubr.bf16.mxu0 0
  %720 = vmatmul.mubr.bf16.gmra.mrb[0].mxu0 %v685
  %v721 = vpop.f32.mrb[0].mxu0
  %v722 = vadd.f32 %v670, %v721
  %v723 = vpop.f32.mrb[0].mxu0
  %v724 = vpop.f32.mrb[0].mxu0
  %v725 = vpop.f32.mrb[0].mxu0
  %726 = vdwg.mxu0
  %v727 = vmax.f32 %v722, 0.0
  %v728 = vpack.c.bf16 %v727, %v727
  %s729 = scalar_lea.vmem %s3, 48
  %v730 = vld [vmem:[%s729] sm:$0xf]
  %v731 = vld [vmem:[%s729 + $0x4] sm:$0xf]
  %v732 = vld [vmem:[%s729 + $0x8] sm:$0xf]
  %v733 = vld [vmem:[%s729 + $0xc] sm:$0xf]
  %s734 = scalar_lea.vmem %s4, 3
  %v735 = vld [vmem:[%s734] sm:$0x1]
  %v737 = vlaneseq
  %v738 = vshrl.u32 %v737, 7
  %v739 = vsub.s32 0, %v738
  %v740 = vrot.slane %v735, %v739
  %v746 = vunpack.c.l.b16 %v730
  %v747 = vunpack.c.l.b16 %v731
  %v748 = vunpack.c.l.b16 %v732
  %v749 = vunpack.c.l.b16 %v733
  %v750 = vpack.c.b16 %v747, %v746
  %v751 = vpack.c.b16 %v749, %v748
  %v755 = vsel %vm51, %v728, 0
  %757 = vmatprep.subr.bf16.mxu0 0
  %758 = vmatpush1.bf16.msra.mxu0 %v750
  %759 = vmatprep.subr.bf16.mxu0 0
  %760 = vmatpush1.bf16.msra.mxu0 %v751
  %761 = vmatprep.subr.bf16.mxu0 0
  %762 = vmatpush1.bf16.msra.mxu0 0
  %763 = vmatprep.subr.bf16.mxu0 0
  %764 = vmatpush1.bf16.msra.mxu0 0
  %765 = vmatprep.subr.bf16.mxu0 0
  %766 = vmatpush1.bf16.msra.mxu0 0
  %767 = vmatprep.subr.bf16.mxu0 0
  %768 = vmatpush1.bf16.msra.mxu0 0
  %769 = vmatprep.subr.bf16.mxu0 0
  %770 = vmatpush1.bf16.msra.mxu0 0
  %771 = vmatprep.subr.bf16.mxu0 0
  %772 = vmatpush1.bf16.msra.mxu0 0
  %773 = vmatprep.subr.bf16.mxu0 0
  %774 = vmatpush1.bf16.msra.mxu0 0
  %775 = vmatprep.subr.bf16.mxu0 0
  %776 = vmatpush1.bf16.msra.mxu0 0
  %777 = vmatprep.subr.bf16.mxu0 0
  %778 = vmatpush1.bf16.msra.mxu0 0
  %779 = vmatprep.subr.bf16.mxu0 0
  %780 = vmatpush1.bf16.msra.mxu0 0
  %781 = vmatprep.subr.bf16.mxu0 0
  %782 = vmatpush1.bf16.msra.mxu0 0
  %783 = vmatprep.subr.bf16.mxu0 0
  %784 = vmatpush1.bf16.msra.mxu0 0
  %785 = vmatprep.subr.bf16.mxu0 0
  %786 = vmatpush1.bf16.msra.mxu0 0
  %787 = vmatprep.subr.bf16.mxu0 0
  %788 = vmatpush1.bf16.msra.mxu0 0
  %789 = vmatprep.mubr.bf16.mxu0 0
  %790 = vmatmul.mubr.bf16.gmra.mrb[0].mxu0 %v755
  %v791 = vpop.f32.mrb[0].mxu0
  %v792 = vadd.f32 %v740, %v791
  %v793 = vpop.f32.mrb[0].mxu0
  %v794 = vpop.f32.mrb[0].mxu0
  %v795 = vpop.f32.mrb[0].mxu0
  %796 = vdwg.mxu0
  %v797 = vmax.f32 %v792, 0.0
  %v798 = vpack.c.bf16 %v797, %v797
  %s799 = scalar_lea.vmem %s5, 48
  %v800 = vld [vmem:[%s799] sm:$0xf]
  %v801 = vld [vmem:[%s799 + $0x4] sm:$0xf]
  %v802 = vld [vmem:[%s799 + $0x8] sm:$0xf]
  %v803 = vld [vmem:[%s799 + $0xc] sm:$0xf]
  %s804 = scalar_lea.vmem %s6, 3
  %v805 = vld [vmem:[%s804] sm:$0x1]
  %v807 = vlaneseq
  %v808 = vshrl.u32 %v807, 7
  %v809 = vsub.s32 0, %v808
  %v810 = vrot.slane %v805, %v809
  %v816 = vunpack.c.l.b16 %v800
  %v817 = vunpack.c.l.b16 %v801
  %v818 = vunpack.c.l.b16 %v802
  %v819 = vunpack.c.l.b16 %v803
  %v820 = vpack.c.b16 %v817, %v816
  %v821 = vpack.c.b16 %v819, %v818
  %v825 = vsel %vm51, %v798, 0
  %827 = vmatprep.subr.bf16.mxu0 0
  %828 = vmatpush1.bf16.msra.mxu0 %v820
  %829 = vmatprep.subr.bf16.mxu0 0
  %830 = vmatpush1.bf16.msra.mxu0 %v821
  %831 = vmatprep.subr.bf16.mxu0 0
  %832 = vmatpush1.bf16.msra.mxu0 0
  %833 = vmatprep.subr.bf16.mxu0 0
  %834 = vmatpush1.bf16.msra.mxu0 0
  %835 = vmatprep.subr.bf16.mxu0 0
  %836 = vmatpush1.bf16.msra.mxu0 0
  %837 = vmatprep.subr.bf16.mxu0 0
  %838 = vmatpush1.bf16.msra.mxu0 0
  %839 = vmatprep.subr.bf16.mxu0 0
  %840 = vmatpush1.bf16.msra.mxu0 0
  %841 = vmatprep.subr.bf16.mxu0 0
  %842 = vmatpush1.bf16.msra.mxu0 0
  %843 = vmatprep.subr.bf16.mxu0 0
  %844 = vmatpush1.bf16.msra.mxu0 0
  %845 = vmatprep.subr.bf16.mxu0 0
  %846 = vmatpush1.bf16.msra.mxu0 0
  %847 = vmatprep.subr.bf16.mxu0 0
  %848 = vmatpush1.bf16.msra.mxu0 0
  %849 = vmatprep.subr.bf16.mxu0 0
  %850 = vmatpush1.bf16.msra.mxu0 0
  %851 = vmatprep.subr.bf16.mxu0 0
  %852 = vmatpush1.bf16.msra.mxu0 0
  %853 = vmatprep.subr.bf16.mxu0 0
  %854 = vmatpush1.bf16.msra.mxu0 0
  %855 = vmatprep.subr.bf16.mxu0 0
  %856 = vmatpush1.bf16.msra.mxu0 0
  %857 = vmatprep.subr.bf16.mxu0 0
  %858 = vmatpush1.bf16.msra.mxu0 0
  %859 = vmatprep.mubr.bf16.mxu0 0
  %860 = vmatmul.mubr.bf16.gmra.mrb[0].mxu0 %v825
  %v861 = vpop.f32.mrb[0].mxu0
  %v862 = vadd.f32 %v810, %v861
  %v863 = vpop.f32.mrb[0].mxu0
  %v864 = vpop.f32.mrb[0].mxu0
  %v865 = vpop.f32.mrb[0].mxu0
  %866 = vdwg.mxu0
  %s867 = scalar_lea.vmem %s7, 6
  %868 = vst.msk [vmem:[%s867] sm:$0x3] %vm231, %v862
  // Predicated region
  $region30: #{mask_decoder_forward.3} parent=0 // pred_check
    _
  $region31: #{mask_decoder_forward.3} parent=0 // pred_check_branch
    %870 = sbr.rel (0) target = $region33
  $region32: #{mask_decoder_forward.3} parent=0 // pred_region
    _
  $region33: #{mask_decoder_forward.3} parent=0 // pred_fallthru
    _
  // Predicated region
  $region34: #{mask_decoder_forward.3} parent=0 // pred_check
    _
  $region35: #{mask_decoder_forward.3} parent=0 // pred_check_branch
    %872 = sbr.rel (0) target = $region37
  $region36: #{mask_decoder_forward.3} parent=0 // pred_region
    _
  $region37: #{mask_decoder_forward.3} parent=0 // pred_fallthru
    _

// kernel: mask_decoder_forward.4
$region0: #{mask_decoder_forward.4}
  #allocation0 [shape = 'u32[]', space=smem, size = 0x4, offset = 0x4, fixed_abs, tag = 'smem constant byte address 0x4 - core index']
  #allocation1 [shape = 'u32[144,128]{1,0:T(1,128)}', space=vmem, size = 0x12000, scoped, tag = 'internal scratch']
  %s0 = inlined_call_operand.vmem [shape: bf16[2,64,32], index: 0, kind: input, shape index: {}]
  %s1 = inlined_call_operand.vmem [shape: bf16[32,32], index: 1, kind: input, shape index: {}]
  %s2 = inlined_call_operand.vmem [shape: f32[1,32], index: 2, kind: input, shape index: {}]
  %s3 = inlined_call_operand.vmem [shape: f32[1,32], index: 3, kind: input, shape index: {}]
  %s4 = inlined_call_operand.vmem [shape: f32[1,32], index: 4, kind: input, shape index: {}]
  %s5 = inlined_call_operand.vmem [shape: bf16[32,64], index: 5, kind: input, shape index: {}]
  %s6 = inlined_call_operand.vmem [shape: f32[1,64], index: 6, kind: input, shape index: {}]
  %s7 = inlined_call_operand.vmem [shape: bf16[2,64,64], index: 7, kind: input, shape index: {}]
  %s8 = inlined_call_operand.vmem [shape: f32[2,64,64], index: 8, kind: output, shape index: {}]
  %s9 = sld [smem:[#allocation0]]
  $region65: #{mask_decoder_forward.4} parent=0
    _
  %s11 = ssub.s32 1, %s9
  %s12 = scalar_select 0, %s11, %s9
  loop: start=0, step=1, limit=4
  $region2: #{mask_decoder_forward.4} parent=0 // loop_pre_header
    _
  $region3: #{mask_decoder_forward.4} parent=0 // loop_header
    %s14 = sphi 0, %s18
    %p15 = scmp.ge.s32.totalorder %s14, 4
    %s21 = sphi 0, %s33
    %s22 = sphi 0, %s29
    %s23 = sphi 0, %s21
    %s24 = sphi 0, %s22
    %s25 = sphi 0, %s23
    %s26 = sphi 0, %s24
    %s38 = sphi 0, %s40
    %s41 = sphi 0, %s38
    %s42 = sphi 0, %s41
    %s58 = sphi 0, %s42
    %s62 = sphi 0, %s62
    %s64 = sphi 0, %s62
    %s65 = sphi 0, %s64
    %s79 = sphi 0, %s65
    %s83 = sphi 0, %s83
    %s85 = sphi 0, %s83
    %s86 = sphi 0, %s85
    %s100 = sphi 0, %s86
    %s104 = sphi 0, %s104
    %s106 = sphi 0, %s104
    %s107 = sphi 0, %s106
    %s121 = sphi 0, %s107
    %s125 = sphi 0, %s125
    %s127 = sphi 0, %s125
    %s128 = sphi 0, %s127
    %s142 = sphi 0, %s128
    %s146 = sphi 0, %s146
    %s148 = sphi 0, %s146
    %s149 = sphi 0, %s148
    %s163 = sphi 0, %s149
    %s167 = sphi 0, %s167
    %s169 = sphi 0, %s167
    %s170 = sphi 0, %s169
    %s184 = sphi 0, %s170
    %s190 = sphi 0, %s192
    %s193 = sphi 0, %s190
    %s194 = sphi 0, %s193
    %s210 = sphi 0, %s194
    %s218 = sphi 0, %s220
    %s221 = sphi 0, %s218
    %s222 = sphi 0, %s221
    %s238 = sphi 0, %s222
  $region4: #{mask_decoder_forward.4} parent=0 // loop_header_branch
    %17 = sbr.rel (%p15) target = $region8
  $region5: #{mask_decoder_forward.4} parent=0 // loop_body
    %s19 = ssub.s32 %s14, 1
    %s20 = ssub.s32 %s14, 2
    %s27 = sadd.s32 1, %s22
    %p28 = scmp.ge.s32.totalorder %s27, 1
    %s29 = scalar_select %p28, 0, %s27
    %s30 = sadd.s32 1, %s21
    %s31 = scalar_select %p28, %s30, %s21
    %p32 = scmp.ge.s32.totalorder %s31, 2
    %s33 = scalar_select %p32, 0, %s31
    %s34 = ssub.s32 %s21, %s33
    %s35 = ssub.s32 %s22, %s29
    %s36 = sor.u32 %s34, %s35
    %p37 = scmp.eq.s32.totalorder %s36, 0
    %s39 = sadd.s32 %s38, 1
    %s40 = scalar_select %p37, %s38, %s39
    %p43 = pneg %p37
    %p44 = scmp.eq.s32.totalorder %s14, 1
    %p45 = por %p43, %p44
    %p46 = scmp.ne.s32.totalorder %s38, %s41
    %p47 = scmp.eq.s32.totalorder %s14, 0
    %p48 = por %p46, %p47
    %p49 = scmp.ne.s32.totalorder %s38, %s41
    %p50 = scmp.eq.s32.totalorder %s19, 1
    %p51 = por %p49, %p50
    %p52 = scmp.ne.s32.totalorder %s41, %s42
    %p53 = scmp.eq.s32.totalorder %s19, 0
    %p54 = por %p52, %p53
    %p55 = scmp.ne.s32.totalorder %s41, %s42
    %p56 = scmp.eq.s32.totalorder %s20, 1
    %p57 = por %p55, %p56
    %p59 = scmp.ne.s32.totalorder %s42, %s58
    %p60 = scmp.eq.s32.totalorder %s20, 0
    %p61 = por %p59, %p60
    %s63 = sadd.s32 %s62, 1
    %p66 = scmp.eq.s32.totalorder %s14, 1
    %p67 = scmp.ne.s32.totalorder %s62, %s64
    %p68 = scmp.eq.s32.totalorder %s14, 0
    %p69 = por %p67, %p68
    %p70 = scmp.ne.s32.totalorder %s62, %s64
    %p71 = scmp.eq.s32.totalorder %s19, 1
    %p72 = por %p70, %p71
    %p73 = scmp.ne.s32.totalorder %s64, %s65
    %p74 = scmp.eq.s32.totalorder %s19, 0
    %p75 = por %p73, %p74
    %p76 = scmp.ne.s32.totalorder %s64, %s65
    %p77 = scmp.eq.s32.totalorder %s20, 1
    %p78 = por %p76, %p77
    %p80 = scmp.ne.s32.totalorder %s65, %s79
    %p81 = scmp.eq.s32.totalorder %s20, 0
    %p82 = por %p80, %p81
    %s84 = sadd.s32 %s83, 1
    %p87 = scmp.eq.s32.totalorder %s14, 1
    %p88 = scmp.ne.s32.totalorder %s83, %s85
    %p89 = scmp.eq.s32.totalorder %s14, 0
    %p90 = por %p88, %p89
    %p91 = scmp.ne.s32.totalorder %s83, %s85
    %p92 = scmp.eq.s32.totalorder %s19, 1
    %p93 = por %p91, %p92
    %p94 = scmp.ne.s32.totalorder %s85, %s86
    %p95 = scmp.eq.s32.totalorder %s19, 0
    %p96 = por %p94, %p95
    %p97 = scmp.ne.s32.totalorder %s85, %s86
    %p98 = scmp.eq.s32.totalorder %s20, 1
    %p99 = por %p97, %p98
    %p101 = scmp.ne.s32.totalorder %s86, %s100
    %p102 = scmp.eq.s32.totalorder %s20, 0
    %p103 = por %p101, %p102
    %s105 = sadd.s32 %s104, 1
    %p108 = scmp.eq.s32.totalorder %s14, 1
    %p109 = scmp.ne.s32.totalorder %s104, %s106
    %p110 = scmp.eq.s32.totalorder %s14, 0
    %p111 = por %p109, %p110
    %p112 = scmp.ne.s32.totalorder %s104, %s106
    %p113 = scmp.eq.s32.totalorder %s19, 1
    %p114 = por %p112, %p113
    %p115 = scmp.ne.s32.totalorder %s106, %s107
    %p116 = scmp.eq.s32.totalorder %s19, 0
    %p117 = por %p115, %p116
    %p118 = scmp.ne.s32.totalorder %s106, %s107
    %p119 = scmp.eq.s32.totalorder %s20, 1
    %p120 = por %p118, %p119
    %p122 = scmp.ne.s32.totalorder %s107, %s121
    %p123 = scmp.eq.s32.totalorder %s20, 0
    %p124 = por %p122, %p123
    %s126 = sadd.s32 %s125, 1
    %p129 = scmp.eq.s32.totalorder %s14, 1
    %p130 = scmp.ne.s32.totalorder %s125, %s127
    %p131 = scmp.eq.s32.totalorder %s14, 0
    %p132 = por %p130, %p131
    %p133 = scmp.ne.s32.totalorder %s125, %s127
    %p134 = scmp.eq.s32.totalorder %s19, 1
    %p135 = por %p133, %p134
    %p136 = scmp.ne.s32.totalorder %s127, %s128
    %p137 = scmp.eq.s32.totalorder %s19, 0
    %p138 = por %p136, %p137
    %p139 = scmp.ne.s32.totalorder %s127, %s128
    %p140 = scmp.eq.s32.totalorder %s20, 1
    %p141 = por %p139, %p140
    %p143 = scmp.ne.s32.totalorder %s128, %s142
    %p144 = scmp.eq.s32.totalorder %s20, 0
    %p145 = por %p143, %p144
    %s147 = sadd.s32 %s146, 1
    %p150 = scmp.eq.s32.totalorder %s14, 1
    %p151 = scmp.ne.s32.totalorder %s146, %s148
    %p152 = scmp.eq.s32.totalorder %s14, 0
    %p153 = por %p151, %p152
    %p154 = scmp.ne.s32.totalorder %s146, %s148
    %p155 = scmp.eq.s32.totalorder %s19, 1
    %p156 = por %p154, %p155
    %p157 = scmp.ne.s32.totalorder %s148, %s149
    %p158 = scmp.eq.s32.totalorder %s19, 0
    %p159 = por %p157, %p158
    %p160 = scmp.ne.s32.totalorder %s148, %s149
    %p161 = scmp.eq.s32.totalorder %s20, 1
    %p162 = por %p160, %p161
    %p164 = scmp.ne.s32.totalorder %s149, %s163
    %p165 = scmp.eq.s32.totalorder %s20, 0
    %p166 = por %p164, %p165
    %s168 = sadd.s32 %s167, 1
    %p171 = scmp.eq.s32.totalorder %s14, 1
    %p172 = scmp.ne.s32.totalorder %s167, %s169
    %p173 = scmp.eq.s32.totalorder %s14, 0
    %p174 = por %p172, %p173
    %p175 = scmp.ne.s32.totalorder %s167, %s169
    %p176 = scmp.eq.s32.totalorder %s19, 1
    %p177 = por %p175, %p176
    %p178 = scmp.ne.s32.totalorder %s169, %s170
    %p179 = scmp.eq.s32.totalorder %s19, 0
    %p180 = por %p178, %p179
    %p181 = scmp.ne.s32.totalorder %s169, %s170
    %p182 = scmp.eq.s32.totalorder %s20, 1
    %p183 = por %p181, %p182
    %p185 = scmp.ne.s32.totalorder %s170, %s184
    %p186 = scmp.eq.s32.totalorder %s20, 0
    %p187 = por %p185, %p186
    %s188 = ssub.s32 %s21, %s33
    %p189 = scmp.eq.s32.totalorder %s188, 0
    %s191 = sadd.s32 %s190, 1
    %s192 = scalar_select %p189, %s190, %s191
    %p195 = pneg %p189
    %p196 = scmp.eq.s32.totalorder %s14, 1
    %p197 = por %p195, %p196
    %p198 = scmp.ne.s32.totalorder %s190, %s193
    %p199 = scmp.eq.s32.totalorder %s14, 0
    %p200 = por %p198, %p199
    %p201 = scmp.ne.s32.totalorder %s190, %s193
    %p202 = scmp.eq.s32.totalorder %s19, 1
    %p203 = por %p201, %p202
    %p204 = scmp.ne.s32.totalorder %s193, %s194
    %p205 = scmp.eq.s32.totalorder %s19, 0
    %p206 = por %p204, %p205
    %p207 = scmp.ne.s32.totalorder %s193, %s194
    %p208 = scmp.eq.s32.totalorder %s20, 1
    %p209 = por %p207, %p208
    %p211 = scmp.ne.s32.totalorder %s194, %s210
    %p212 = scmp.eq.s32.totalorder %s20, 0
    %p213 = por %p211, %p212
    %s214 = ssub.s32 %s21, %s33
    %s215 = ssub.s32 %s22, %s29
    %s216 = sor.u32 %s214, %s215
    %p217 = scmp.eq.s32.totalorder %s216, 0
    %s219 = sadd.s32 %s218, 1
    %s220 = scalar_select %p217, %s218, %s219
    %p223 = pneg %p217
    %p224 = scmp.eq.s32.totalorder %s14, 1
    %p225 = por %p223, %p224
    %p226 = scmp.ne.s32.totalorder %s218, %s221
    %p227 = scmp.eq.s32.totalorder %s14, 0
    %p228 = por %p226, %p227
    %p229 = scmp.ne.s32.totalorder %s218, %s221
    %p230 = scmp.eq.s32.totalorder %s19, 1
    %p231 = por %p229, %p230
    %p232 = scmp.ne.s32.totalorder %s221, %s222
    %p233 = scmp.eq.s32.totalorder %s19, 0
    %p234 = por %p232, %p233
    %p235 = scmp.ne.s32.totalorder %s221, %s222
    %p236 = scmp.eq.s32.totalorder %s20, 1
    %p237 = por %p235, %p236
    %p239 = scmp.ne.s32.totalorder %s222, %s238
    %p240 = scmp.eq.s32.totalorder %s20, 0
    %p241 = por %p239, %p240
    %p242 = scmp.le.s32.totalorder 1, %s14
    %p243 = scmp.lt.s32.totalorder %s14, 3
    %p244 = pnand %p242, %p243
    %p245 = pneg %p244
    // Predicated region
    $region9: #{mask_decoder_forward.4} parent=5 // pred_check
      _
    $region10: #{mask_decoder_forward.4} parent=5 // pred_check_branch
      %247 = sbr.rel (%p244) target = $region12
    $region11: #{mask_decoder_forward.4} parent=5 // pred_region
      %s248 = ssub.s32 %s14, 1
      // Predicated region
      $region13: #{mask_decoder_forward.4} parent=11 // pred_check
        %p249 = pneg %p75
      $region14: #{mask_decoder_forward.4} parent=11 // pred_check_branch
        %251 = sbr.rel (%p249) target = $region16
      $region15: #{mask_decoder_forward.4} parent=11 // pred_region
        _
      $region16: #{mask_decoder_forward.4} parent=11 // pred_fallthru
        _
      // Predicated region
      $region17: #{mask_decoder_forward.4} parent=11 // pred_check
        %p252 = pneg %p96
      $region18: #{mask_decoder_forward.4} parent=11 // pred_check_branch
        %254 = sbr.rel (%p252) target = $region20
      $region19: #{mask_decoder_forward.4} parent=11 // pred_region
        _
      $region20: #{mask_decoder_forward.4} parent=11 // pred_fallthru
        _
      // Predicated region
      $region21: #{mask_decoder_forward.4} parent=11 // pred_check
        %p255 = pneg %p117
      $region22: #{mask_decoder_forward.4} parent=11 // pred_check_branch
        %257 = sbr.rel (%p255) target = $region24
      $region23: #{mask_decoder_forward.4} parent=11 // pred_region
        _
      $region24: #{mask_decoder_forward.4} parent=11 // pred_fallthru
        _
      // Predicated region
      $region25: #{mask_decoder_forward.4} parent=11 // pred_check
        %p258 = pneg %p138
      $region26: #{mask_decoder_forward.4} parent=11 // pred_check_branch
        %260 = sbr.rel (%p258) target = $region28
      $region27: #{mask_decoder_forward.4} parent=11 // pred_region
        _
      $region28: #{mask_decoder_forward.4} parent=11 // pred_fallthru
        _
      // Predicated region
      $region29: #{mask_decoder_forward.4} parent=11 // pred_check
        %p261 = pneg %p159
      $region30: #{mask_decoder_forward.4} parent=11 // pred_check_branch
        %263 = sbr.rel (%p261) target = $region32
      $region31: #{mask_decoder_forward.4} parent=11 // pred_region
        _
      $region32: #{mask_decoder_forward.4} parent=11 // pred_fallthru
        _
      // Predicated region
      $region33: #{mask_decoder_forward.4} parent=11 // pred_check
        %p264 = pneg %p180
      $region34: #{mask_decoder_forward.4} parent=11 // pred_check_branch
        %266 = sbr.rel (%p264) target = $region36
      $region35: #{mask_decoder_forward.4} parent=11 // pred_region
        _
      $region36: #{mask_decoder_forward.4} parent=11 // pred_fallthru
        _
    $region12: #{mask_decoder_forward.4} parent=5 // pred_fallthru
      _
    %p267 = scmp.lt.s32.totalorder %s14, 2
    // Predicated region
    $region37: #{mask_decoder_forward.4} parent=5 // pred_check
      %p268 = pneg %p267
    $region38: #{mask_decoder_forward.4} parent=5 // pred_check_branch
      %270 = sbr.rel (%p268) target = $region40
    $region39: #{mask_decoder_forward.4} parent=5 // pred_region
      // Predicated region
      $region41: #{mask_decoder_forward.4} parent=39 // pred_check
        %p271 = pneg %p48
      $region42: #{mask_decoder_forward.4} parent=39 // pred_check_branch
        %273 = sbr.rel (%p271) target = $region44
      $region43: #{mask_decoder_forward.4} parent=39 // pred_region
        %s274 = smul.u32 8, %s22
        %p275 = scmp.lt.s32.totalorder %s21, 1
        %s276 = scalar_select %p275, %s21, 1
        %p277 = scmp.lt.s32.totalorder %s274, 7
        %s278 = scalar_select %p277, %s274, 7
        %s279 = smul.addr %s276, 8
        %s280 = sadd.s32 %s278, %s279
        %s281 = smul.addr %s280, 4
        %s282 = scalar_lea.vmem %s0, %s281
        %s283 = smul.u32 8, %s22
      $region44: #{mask_decoder_forward.4} parent=39 // pred_fallthru
        _
      // Predicated region
      $region45: #{mask_decoder_forward.4} parent=39 // pred_check
        %p284 = pneg %p200
      $region46: #{mask_decoder_forward.4} parent=39 // pred_check_branch
        %286 = sbr.rel (%p284) target = $region48
      $region47: #{mask_decoder_forward.4} parent=39 // pred_region
        %p287 = scmp.lt.s32.totalorder %s21, 1
        %s288 = scalar_select %p287, %s21, 1
        %s289 = smul.addr %s288, 8
        %s290 = smul.addr %s289, 4
        %s291 = scalar_lea.vmem %s7, %s290
      $region48: #{mask_decoder_forward.4} parent=39 // pred_fallthru
        _
    $region40: #{mask_decoder_forward.4} parent=5 // pred_fallthru
      _
    %p292 = scmp.le.s32.totalorder 1, %s14
    %p293 = scmp.lt.s32.totalorder %s14, 3
    %p294 = pnand %p292, %p293
    %p295 = pneg %p294
    // Predicated region
    $region49: #{mask_decoder_forward.4} parent=5 // pred_check
      _
    $region50: #{mask_decoder_forward.4} parent=5 // pred_check_branch
      %297 = sbr.rel (%p294) target = $region52
    $region51: #{mask_decoder_forward.4} parent=5 // pred_region
      %s298 = ssub.s32 %s14, 1
      %s299 = smul.u32 8, %s24
      %p300 = scmp.lt.s32.totalorder %s23, 1
      %s301 = scalar_select %p300, %s23, 1
      %p302 = scmp.lt.s32.totalorder %s299, 7
      %s303 = scalar_select %p302, %s299, 7
      %s304 = smul.addr %s301, 8
      %s305 = sadd.s32 %s303, %s304
      %s306 = smul.addr %s305, 4
      %s307 = scalar_lea.vmem %s0, %s306
      %p308 = pneg %p54
      %p309 = pneg %p51
      %p310 = pneg %p75
      %p311 = pneg %p72
      %p312 = pneg %p96
      %p313 = pneg %p93
      %p314 = pneg %p117
      %p315 = pneg %p114
      %p316 = pneg %p138
      %p317 = pneg %p135
      %p318 = pneg %p159
      %p319 = pneg %p156
      %p320 = pneg %p180
      %p321 = pneg %p177
      %p322 = scmp.lt.s32.totalorder %s23, 1
      %s323 = scalar_select %p322, %s23, 1
      %s324 = smul.addr %s323, 8
      %s325 = smul.addr %s324, 4
      %s326 = scalar_lea.vmem %s7, %s325
      %p327 = pneg %p206
      %p328 = pneg %p203
      %p329 = pneg %p234
      %p330 = pneg %p231
      %s331 = smul.u32 8, %s24
      %p332 = scmp.lt.s32.totalorder %s23, 1
      %s333 = scalar_select %p332, %s23, 1
      %p334 = scmp.lt.s32.totalorder %s331, 7
      %s335 = scalar_select %p334, %s331, 7
      %s336 = smul.addr %s333, 8
      %s337 = sadd.s32 %s335, %s336
      %s338 = smul.addr %s337, 8
      %s339 = scalar_lea.vmem %s8, %s338
      %s340 = smul.u32 8, %s24
      %p341 = scmp.lt.s32.totalorder %s23, 1
      %s342 = scalar_select %p341, %s23, 1
      %p343 = scmp.lt.s32.totalorder %s340, 7
      %s344 = scalar_select %p343, %s340, 7
      %s345 = smul.addr %s342, 8
      %s346 = sadd.s32 %s344, %s345
      %s347 = smul.addr %s346, 4
      %s348 = scalar_lea.vmem %s0, %s347
      %s349 = smul.u32 8, %s24
      %p350 = scmp.lt.s32.totalorder %s23, 1
      %s351 = scalar_select %p350, %s23, 1
      %s352 = smul.addr %s351, 8
      %s353 = smul.addr %s352, 4
      %s354 = scalar_lea.vmem %s7, %s353
      %s355 = smul.u32 8, %s24
      %p356 = scmp.lt.s32.totalorder %s23, 1
      %s357 = scalar_select %p356, %s23, 1
      %p358 = scmp.lt.s32.totalorder %s355, 7
      %s359 = scalar_select %p358, %s355, 7
      %s360 = smul.addr %s357, 8
      %s361 = sadd.s32 %s359, %s360
      %s362 = smul.addr %s361, 8
      %s363 = scalar_lea.vmem %s8, %s362
      %s364 = smul.u32 8, %s24
      %v366 = vld [vmem:[%s348] sm:$0xf]
      %v367 = vld [vmem:[%s348 + $0x4] sm:$0xf]
      %v368 = vld [vmem:[%s348 + $0x8] sm:$0xf]
      %v369 = vld [vmem:[%s348 + $0xc] sm:$0xf]
      %v370 = vld [vmem:[%s348 + $0x10] sm:$0xf]
      %v371 = vld [vmem:[%s348 + $0x14] sm:$0xf]
      %v372 = vld [vmem:[%s348 + $0x18] sm:$0xf]
      %v373 = vld [vmem:[%s348 + $0x1c] sm:$0xf]
      %v374 = vld [vmem:[%s1] sm:$0xf]
      %v375 = vld [vmem:[%s1 + $0x4] sm:$0xf]
      %v376 = vld [vmem:[%s1 + $0x8] sm:$0xf]
      %v377 = vld [vmem:[%s1 + $0xc] sm:$0xf]
      %v378 = vld [vmem:[%s2] sm:$0x1]
      %v380 = vlaneseq
      %v381 = vshrl.u32 %v380, 7
      %v382 = vsub.s32 0, %v381
      %v383 = vrot.slane %v378, %v382
      %v393 = vunpack.c.l.b16 %v366
      %v394 = vunpack.c.l.b16 %v367
      %v395 = vunpack.c.l.b16 %v368
      %v396 = vunpack.c.l.b16 %v369
      %v397 = vunpack.c.l.b16 %v370
      %v398 = vunpack.c.l.b16 %v371
      %v399 = vunpack.c.l.b16 %v372
      %v400 = vunpack.c.l.b16 %v373
      %v401 = vpack.c.b16 %v394, %v393
      %v402 = vpack.c.b16 %v396, %v395
      %v403 = vpack.c.b16 %v398, %v397
      %v404 = vpack.c.b16 %v400, %v399
      %v409 = vunpack.c.l.b16 %v374
      %v410 = vunpack.c.l.b16 %v375
      %v411 = vunpack.c.l.b16 %v376
      %v412 = vunpack.c.l.b16 %v377
      %v413 = vpack.c.b16 %v410, %v409
      %v414 = vpack.c.b16 %v412, %v411
      %vm417 = vcmask 261120
      %v419 = vsel %vm417, %v401, 0
      %v422 = vsel %vm417, %v402, 0
      %v425 = vsel %vm417, %v403, 0
      %v428 = vsel %vm417, %v404, 0
      %430 = vmatprep.subr.bf16.mxu0 0
      %431 = vmatpush1.bf16.msra.mxu0 %v413
      %432 = vmatprep.subr.bf16.mxu0 0
      %433 = vmatpush1.bf16.msra.mxu0 %v414
      %434 = vmatprep.subr.bf16.mxu0 0
      %435 = vmatpush1.bf16.msra.mxu0 0
      %436 = vmatprep.subr.bf16.mxu0 0
      %437 = vmatpush1.bf16.msra.mxu0 0
      %438 = vmatprep.subr.bf16.mxu0 0
      %439 = vmatpush1.bf16.msra.mxu0 0
      %440 = vmatprep.subr.bf16.mxu0 0
      %441 = vmatpush1.bf16.msra.mxu0 0
      %442 = vmatprep.subr.bf16.mxu0 0
      %443 = vmatpush1.bf16.msra.mxu0 0
      %444 = vmatprep.subr.bf16.mxu0 0
      %445 = vmatpush1.bf16.msra.mxu0 0
      %446 = vmatprep.subr.bf16.mxu0 0
      %447 = vmatpush1.bf16.msra.mxu0 0
      %448 = vmatprep.subr.bf16.mxu0 0
      %449 = vmatpush1.bf16.msra.mxu0 0
      %450 = vmatprep.subr.bf16.mxu0 0
      %451 = vmatpush1.bf16.msra.mxu0 0
      %452 = vmatprep.subr.bf16.mxu0 0
      %453 = vmatpush1.bf16.msra.mxu0 0
      %454 = vmatprep.subr.bf16.mxu0 0
      %455 = vmatpush1.bf16.msra.mxu0 0
      %456 = vmatprep.subr.bf16.mxu0 0
      %457 = vmatpush1.bf16.msra.mxu0 0
      %458 = vmatprep.subr.bf16.mxu0 0
      %459 = vmatpush1.bf16.msra.mxu0 0
      %460 = vmatprep.subr.bf16.mxu0 0
      %461 = vmatpush1.bf16.msra.mxu0 0
      %462 = vmatprep.mubr.bf16.mxu0 0
      %463 = vmatmul.mubr.bf16.gmra.mrb[0].mxu0 %v419
      %v464 = vpop.f32.mrb[0].mxu0
      %v465 = vadd.f32 %v383, %v464
      %v466 = vpop.f32.mrb[0].mxu0
      %v467 = vpop.f32.mrb[0].mxu0
      %v468 = vadd.f32 %v383, %v467
      %v469 = vpop.f32.mrb[0].mxu0
      %470 = vmatprep.mubr.bf16.mxu0 0
      %471 = vmatmul.mubr.bf16.gmra.mrb[0].mxu0 %v422
      %v472 = vpop.f32.mrb[0].mxu0
      %v473 = vadd.f32 %v383, %v472
      %v474 = vpop.f32.mrb[0].mxu0
      %v475 = vpop.f32.mrb[0].mxu0
      %v476 = vadd.f32 %v383, %v475
      %v477 = vpop.f32.mrb[0].mxu0
      %478 = vmatprep.mubr.bf16.mxu0 0
      %479 = vmatmul.mubr.bf16.gmra.mrb[0].mxu0 %v425
      %v480 = vpop.f32.mrb[0].mxu0
      %v481 = vadd.f32 %v383, %v480
      %v482 = vpop.f32.mrb[0].mxu0
      %v483 = vpop.f32.mrb[0].mxu0
      %v484 = vadd.f32 %v383, %v483
      %v485 = vpop.f32.mrb[0].mxu0
      %486 = vmatprep.mubr.bf16.mxu0 0
      %487 = vmatmul.mubr.bf16.gmra.mrb[0].mxu0 %v428
      %v488 = vpop.f32.mrb[0].mxu0
      %v489 = vadd.f32 %v383, %v488
      %v490 = vpop.f32.mrb[0].mxu0
      %v491 = vpop.f32.mrb[0].mxu0
      %v492 = vadd.f32 %v383, %v491
      %v493 = vpop.f32.mrb[0].mxu0
      %494 = vdwg.mxu0
      %vm495 = vcmask 64512
      %v496 = vsel %vm495, %v465, 0.0
      %497 = vadd.xlane.f32.xlu0 %v496
      %v498 = vpop.xlane.xlu0 %497
      %v499 = vsel %vm495, %v468, 0.0
      %500 = vadd.xlane.f32.xlu0 %v499
      %v501 = vpop.xlane.xlu0 %500
      %v502 = vsel %vm495, %v473, 0.0
      %503 = vadd.xlane.f32.xlu0 %v502
      %v504 = vpop.xlane.xlu0 %503
      %v505 = vsel %vm495, %v476, 0.0
      %506 = vadd.xlane.f32.xlu0 %v505
      %v507 = vpop.xlane.xlu0 %506
      %v508 = vsel %vm495, %v481, 0.0
      %509 = vadd.xlane.f32.xlu0 %v508
      %v510 = vpop.xlane.xlu0 %509
      %v511 = vsel %vm495, %v484, 0.0
      %512 = vadd.xlane.f32.xlu0 %v511
      %v513 = vpop.xlane.xlu0 %512
      %v514 = vsel %vm495, %v489, 0.0
      %515 = vadd.xlane.f32.xlu0 %v514
      %v516 = vpop.xlane.xlu0 %515
      %v517 = vsel %vm495, %v492, 0.0
      %518 = vadd.xlane.f32.xlu0 %v517
      %v519 = vpop.xlane.xlu0 %518
      %v520 = vmul.f32 %v498, 0.125
      %v521 = vmul.f32 %v501, 0.125
      %v522 = vmul.f32 %v504, 0.125
      %v523 = vmul.f32 %v507, 0.125
      %v524 = vmul.f32 %v510, 0.125
      %v525 = vmul.f32 %v513, 0.125
      %v526 = vmul.f32 %v516, 0.125
      %v527 = vmul.f32 %v519, 0.125
      %v528 = vmul.f32 %v465, %v465
      %v529 = vmul.f32 %v468, %v468
      %v530 = vmul.f32 %v473, %v473
      %v531 = vmul.f32 %v476, %v476
      %v532 = vmul.f32 %v481, %v481
      %v533 = vmul.f32 %v484, %v484
      %v534 = vmul.f32 %v489, %v489
      %v535 = vmul.f32 %v492, %v492
      %v536 = vsel %vm495, %v528, 0.0
      %537 = vadd.xlane.f32.xlu0 %v536
      %v538 = vpop.xlane.xlu0 %537
      %v539 = vsel %vm495, %v529, 0.0
      %540 = vadd.xlane.f32.xlu0 %v539
      %v541 = vpop.xlane.xlu0 %540
      %v542 = vsel %vm495, %v530, 0.0
      %543 = vadd.xlane.f32.xlu0 %v542
      %v544 = vpop.xlane.xlu0 %543
      %v545 = vsel %vm495, %v531, 0.0
      %546 = vadd.xlane.f32.xlu0 %v545
      %v547 = vpop.xlane.xlu0 %546
      %v548 = vsel %vm495, %v532, 0.0
      %549 = vadd.xlane.f32.xlu0 %v548
      %v550 = vpop.xlane.xlu0 %549
      %v551 = vsel %vm495, %v533, 0.0
      %552 = vadd.xlane.f32.xlu0 %v551
      %v553 = vpop.xlane.xlu0 %552
      %v554 = vsel %vm495, %v534, 0.0
      %555 = vadd.xlane.f32.xlu0 %v554
      %v556 = vpop.xlane.xlu0 %555
      %v557 = vsel %vm495, %v535, 0.0
      %558 = vadd.xlane.f32.xlu0 %v557
      %v559 = vpop.xlane.xlu0 %558
      %v560 = vmul.f32 %v538, 0.125
      %v561 = vmul.f32 %v541, 0.125
      %v562 = vmul.f32 %v544, 0.125
      %v563 = vmul.f32 %v547, 0.125
      %v564 = vmul.f32 %v550, 0.125
      %v565 = vmul.f32 %v553, 0.125
      %v566 = vmul.f32 %v556, 0.125
      %v567 = vmul.f32 %v559, 0.125
      %v568 = vmul.f32 %v520, %v520
      %v569 = vmul.f32 %v521, %v521
      %v570 = vmul.f32 %v522, %v522
      %v571 = vmul.f32 %v523, %v523
      %v572 = vmul.f32 %v524, %v524
      %v573 = vmul.f32 %v525, %v525
      %v574 = vmul.f32 %v526, %v526
      %v575 = vmul.f32 %v527, %v527
      %v576 = vsub.f32 %v560, %v568
      %v577 = vsub.f32 %v561, %v569
      %v578 = vsub.f32 %v562, %v570
      %v579 = vsub.f32 %v563, %v571
      %v580 = vsub.f32 %v564, %v572
      %v581 = vsub.f32 %v565, %v573
      %v582 = vsub.f32 %v566, %v574
      %v583 = vsub.f32 %v567, %v575
      %v584 = vmax.f32 %v576, 0.0
      %v585 = vmax.f32 %v577, 0.0
      %v586 = vmax.f32 %v578, 0.0
      %v587 = vmax.f32 %v579, 0.0
      %v588 = vmax.f32 %v580, 0.0
      %v589 = vmax.f32 %v581, 0.0
      %v590 = vmax.f32 %v582, 0.0
      %v591 = vmax.f32 %v583, 0.0
      %v592 = vsub.f32 %v465, %v520
      %v593 = vsub.f32 %v468, %v521
      %v594 = vsub.f32 %v473, %v522
      %v595 = vsub.f32 %v476, %v523
      %v596 = vsub.f32 %v481, %v524
      %v597 = vsub.f32 %v484, %v525
      %v598 = vsub.f32 %v489, %v526
      %v599 = vsub.f32 %v492, %v527
      %v600 = vadd.f32 %v584, 1e-06
      %v601 = vadd.f32 %v585, 1e-06
      %v602 = vadd.f32 %v586, 1e-06
      %v603 = vadd.f32 %v587, 1e-06
      %v604 = vadd.f32 %v588, 1e-06
      %v605 = vadd.f32 %v589, 1e-06
      %v606 = vadd.f32 %v590, 1e-06
      %v607 = vadd.f32 %v591, 1e-06
      %v608 = vrsqrt.pop %v600
      %v609 = vrsqrt.pop %v601
      %v610 = vrsqrt.pop %v602
      %v611 = vrsqrt.pop %v603
      %v612 = vrsqrt.pop %v604
      %v613 = vrsqrt.pop %v605
      %v614 = vrsqrt.pop %v606
      %v615 = vrsqrt.pop %v607
      %v616 = vmul.f32 %v592, %v608
      %v617 = vmul.f32 %v593, %v609
      %v618 = vmul.f32 %v594, %v610
      %v619 = vmul.f32 %v595, %v611
      %v620 = vmul.f32 %v596, %v612
      %v621 = vmul.f32 %v597, %v613
      %v622 = vmul.f32 %v598, %v614
      %v623 = vmul.f32 %v599, %v615
      %632 = vrot.lane.b32.xlu0 %v465, 120
      %v633 = vpop.permute.xlu0 %632
      %634 = vrot.lane.b32.xlu0 %v468, 120
      %v635 = vpop.permute.xlu0 %634
      %636 = vrot.lane.b32.xlu0 %v473, 120
      %v637 = vpop.permute.xlu0 %636
      %638 = vrot.lane.b32.xlu0 %v476, 120
      %v639 = vpop.permute.xlu0 %638
      %640 = vrot.lane.b32.xlu0 %v481, 120
      %v641 = vpop.permute.xlu0 %640
      %642 = vrot.lane.b32.xlu0 %v484, 120
      %v643 = vpop.permute.xlu0 %642
      %644 = vrot.lane.b32.xlu0 %v489, 120
      %v645 = vpop.permute.xlu0 %644
      %646 = vrot.lane.b32.xlu0 %v492, 120
      %v647 = vpop.permute.xlu0 %646
      %v656 = vsel %vm495, %v633, 0.0
      %657 = vadd.xlane.f32.xlu0 %v656
      %v658 = vpop.xlane.xlu0 %657
      %v659 = vsel %vm495, %v635, 0.0
      %660 = vadd.xlane.f32.xlu0 %v659
      %v661 = vpop.xlane.xlu0 %660
      %v662 = vsel %vm495, %v637, 0.0
      %663 = vadd.xlane.f32.xlu0 %v662
      %v664 = vpop.xlane.xlu0 %663
      %v665 = vsel %vm495, %v639, 0.0
      %666 = vadd.xlane.f32.xlu0 %v665
      %v667 = vpop.xlane.xlu0 %666
      %v668 = vsel %vm495, %v641, 0.0
      %669 = vadd.xlane.f32.xlu0 %v668
      %v670 = vpop.xlane.xlu0 %669
      %v671 = vsel %vm495, %v643, 0.0
      %672 = vadd.xlane.f32.xlu0 %v671
      %v673 = vpop.xlane.xlu0 %672
      %v674 = vsel %vm495, %v645, 0.0
      %675 = vadd.xlane.f32.xlu0 %v674
      %v676 = vpop.xlane.xlu0 %675
      %v677 = vsel %vm495, %v647, 0.0
      %678 = vadd.xlane.f32.xlu0 %v677
      %v679 = vpop.xlane.xlu0 %678
      %v680 = vmul.f32 %v658, 0.125
      %v681 = vmul.f32 %v661, 0.125
      %v682 = vmul.f32 %v664, 0.125
      %v683 = vmul.f32 %v667, 0.125
      %v684 = vmul.f32 %v670, 0.125
      %v685 = vmul.f32 %v673, 0.125
      %v686 = vmul.f32 %v676, 0.125
      %v687 = vmul.f32 %v679, 0.125
      %696 = vrot.lane.b32.xlu0 %v528, 120
      %v697 = vpop.permute.xlu0 %696
      %698 = vrot.lane.b32.xlu0 %v529, 120
      %v699 = vpop.permute.xlu0 %698
      %700 = vrot.lane.b32.xlu0 %v530, 120
      %v701 = vpop.permute.xlu0 %700
      %702 = vrot.lane.b32.xlu0 %v531, 120
      %v703 = vpop.permute.xlu0 %702
      %704 = vrot.lane.b32.xlu0 %v532, 120
      %v705 = vpop.permute.xlu0 %704
      %706 = vrot.lane.b32.xlu0 %v533, 120
      %v707 = vpop.permute.xlu0 %706
      %708 = vrot.lane.b32.xlu0 %v534, 120
      %v709 = vpop.permute.xlu0 %708
      %710 = vrot.lane.b32.xlu0 %v535, 120
      %v711 = vpop.permute.xlu0 %710
      %v720 = vsel %vm495, %v697, 0.0
      %721 = vadd.xlane.f32.xlu0 %v720
      %v722 = vpop.xlane.xlu0 %721
      %v723 = vsel %vm495, %v699, 0.0
      %724 = vadd.xlane.f32.xlu0 %v723
      %v725 = vpop.xlane.xlu0 %724
      %v726 = vsel %vm495, %v701, 0.0
      %727 = vadd.xlane.f32.xlu0 %v726
      %v728 = vpop.xlane.xlu0 %727
      %v729 = vsel %vm495, %v703, 0.0
      %730 = vadd.xlane.f32.xlu0 %v729
      %v731 = vpop.xlane.xlu0 %730
      %v732 = vsel %vm495, %v705, 0.0
      %733 = vadd.xlane.f32.xlu0 %v732
      %v734 = vpop.xlane.xlu0 %733
      %v735 = vsel %vm495, %v707, 0.0
      %736 = vadd.xlane.f32.xlu0 %v735
      %v737 = vpop.xlane.xlu0 %736
      %v738 = vsel %vm495, %v709, 0.0
      %739 = vadd.xlane.f32.xlu0 %v738
      %v740 = vpop.xlane.xlu0 %739
      %v741 = vsel %vm495, %v711, 0.0
      %742 = vadd.xlane.f32.xlu0 %v741
      %v743 = vpop.xlane.xlu0 %742
      %v744 = vmul.f32 %v722, 0.125
      %v745 = vmul.f32 %v725, 0.125
      %v746 = vmul.f32 %v728, 0.125
      %v747 = vmul.f32 %v731, 0.125
      %v748 = vmul.f32 %v734, 0.125
      %v749 = vmul.f32 %v737, 0.125
      %v750 = vmul.f32 %v740, 0.125
      %v751 = vmul.f32 %v743, 0.125
      %v752 = vmul.f32 %v680, %v680
      %v753 = vmul.f32 %v681, %v681
      %v754 = vmul.f32 %v682, %v682
      %v755 = vmul.f32 %v683, %v683
      %v756 = vmul.f32 %v684, %v684
      %v757 = vmul.f32 %v685, %v685
      %v758 = vmul.f32 %v686, %v686
      %v759 = vmul.f32 %v687, %v687
      %v760 = vsub.f32 %v744, %v752
      %v761 = vsub.f32 %v745, %v753
      %v762 = vsub.f32 %v746, %v754
      %v763 = vsub.f32 %v747, %v755
      %v764 = vsub.f32 %v748, %v756
      %v765 = vsub.f32 %v749, %v757
      %v766 = vsub.f32 %v750, %v758
      %v767 = vsub.f32 %v751, %v759
      %v768 = vmax.f32 %v760, 0.0
      %v769 = vmax.f32 %v761, 0.0
      %v770 = vmax.f32 %v762, 0.0
      %v771 = vmax.f32 %v763, 0.0
      %v772 = vmax.f32 %v764, 0.0
      %v773 = vmax.f32 %v765, 0.0
      %v774 = vmax.f32 %v766, 0.0
      %v775 = vmax.f32 %v767, 0.0
      %v776 = vsub.f32 %v465, %v680
      %v777 = vsub.f32 %v468, %v681
      %v778 = vsub.f32 %v473, %v682
      %v779 = vsub.f32 %v476, %v683
      %v780 = vsub.f32 %v481, %v684
      %v781 = vsub.f32 %v484, %v685
      %v782 = vsub.f32 %v489, %v686
      %v783 = vsub.f32 %v492, %v687
      %v784 = vadd.f32 %v768, 1e-06
      %v785 = vadd.f32 %v769, 1e-06
      %v786 = vadd.f32 %v770, 1e-06
      %v787 = vadd.f32 %v771, 1e-06
      %v788 = vadd.f32 %v772, 1e-06
      %v789 = vadd.f32 %v773, 1e-06
      %v790 = vadd.f32 %v774, 1e-06
      %v791 = vadd.f32 %v775, 1e-06
      %v792 = vrsqrt.pop %v784
      %v793 = vrsqrt.pop %v785
      %v794 = vrsqrt.pop %v786
      %v795 = vrsqrt.pop %v787
      %v796 = vrsqrt.pop %v788
      %v797 = vrsqrt.pop %v789
      %v798 = vrsqrt.pop %v790
      %v799 = vrsqrt.pop %v791
      %v800 = vmul.f32 %v776, %v792
      %v801 = vmul.f32 %v777, %v793
      %v802 = vmul.f32 %v778, %v794
      %v803 = vmul.f32 %v779, %v795
      %v804 = vmul.f32 %v780, %v796
      %v805 = vmul.f32 %v781, %v797
      %v806 = vmul.f32 %v782, %v798
      %v807 = vmul.f32 %v783, %v799
      %808 = vrot.lane.b32.xlu0 %v465, 112
      %v809 = vpop.permute.xlu0 %808
      %810 = vrot.lane.b32.xlu0 %v468, 112
      %v811 = vpop.permute.xlu0 %810
      %812 = vrot.lane.b32.xlu0 %v473, 112
      %v813 = vpop.permute.xlu0 %812
      %814 = vrot.lane.b32.xlu0 %v476, 112
      %v815 = vpop.permute.xlu0 %814
      %816 = vrot.lane.b32.xlu0 %v481, 112
      %v817 = vpop.permute.xlu0 %816
      %818 = vrot.lane.b32.xlu0 %v484, 112
      %v819 = vpop.permute.xlu0 %818
      %820 = vrot.lane.b32.xlu0 %v489, 112
      %v821 = vpop.permute.xlu0 %820
      %822 = vrot.lane.b32.xlu0 %v492, 112
      %v823 = vpop.permute.xlu0 %822
      %v832 = vsel %vm495, %v809, 0.0
      %833 = vadd.xlane.f32.xlu0 %v832
      %v834 = vpop.xlane.xlu0 %833
      %v835 = vsel %vm495, %v811, 0.0
      %836 = vadd.xlane.f32.xlu0 %v835
      %v837 = vpop.xlane.xlu0 %836
      %v838 = vsel %vm495, %v813, 0.0
      %839 = vadd.xlane.f32.xlu0 %v838
      %v840 = vpop.xlane.xlu0 %839
      %v841 = vsel %vm495, %v815, 0.0
      %842 = vadd.xlane.f32.xlu0 %v841
      %v843 = vpop.xlane.xlu0 %842
      %v844 = vsel %vm495, %v817, 0.0
      %845 = vadd.xlane.f32.xlu0 %v844
      %v846 = vpop.xlane.xlu0 %845
      %v847 = vsel %vm495, %v819, 0.0
      %848 = vadd.xlane.f32.xlu0 %v847
      %v849 = vpop.xlane.xlu0 %848
      %v850 = vsel %vm495, %v821, 0.0
      %851 = vadd.xlane.f32.xlu0 %v850
      %v852 = vpop.xlane.xlu0 %851
      %v853 = vsel %vm495, %v823, 0.0
      %854 = vadd.xlane.f32.xlu0 %v853
      %v855 = vpop.xlane.xlu0 %854
      %v856 = vmul.f32 %v834, 0.125
      %v857 = vmul.f32 %v837, 0.125
      %v858 = vmul.f32 %v840, 0.125
      %v859 = vmul.f32 %v843, 0.125
      %v860 = vmul.f32 %v846, 0.125
      %v861 = vmul.f32 %v849, 0.125
      %v862 = vmul.f32 %v852, 0.125
      %v863 = vmul.f32 %v855, 0.125
      %864 = vrot.lane.b32.xlu0 %v528, 112
      %v865 = vpop.permute.xlu0 %864
      %866 = vrot.lane.b32.xlu0 %v529, 112
      %v867 = vpop.permute.xlu0 %866
      %868 = vrot.lane.b32.xlu0 %v530, 112
      %v869 = vpop.permute.xlu0 %868
      %870 = vrot.lane.b32.xlu0 %v531, 112
      %v871 = vpop.permute.xlu0 %870
      %872 = vrot.lane.b32.xlu0 %v532, 112
      %v873 = vpop.permute.xlu0 %872
      %874 = vrot.lane.b32.xlu0 %v533, 112
      %v875 = vpop.permute.xlu0 %874
      %876 = vrot.lane.b32.xlu0 %v534, 112
      %v877 = vpop.permute.xlu0 %876
      %878 = vrot.lane.b32.xlu0 %v535, 112
      %v879 = vpop.permute.xlu0 %878
      %v888 = vsel %vm495, %v865, 0.0
      %889 = vadd.xlane.f32.xlu0 %v888
      %v890 = vpop.xlane.xlu0 %889
      %v891 = vsel %vm495, %v867, 0.0
      %892 = vadd.xlane.f32.xlu0 %v891
      %v893 = vpop.xlane.xlu0 %892
      %v894 = vsel %vm495, %v869, 0.0
      %895 = vadd.xlane.f32.xlu0 %v894
      %v896 = vpop.xlane.xlu0 %895
      %v897 = vsel %vm495, %v871, 0.0
      %898 = vadd.xlane.f32.xlu0 %v897
      %v899 = vpop.xlane.xlu0 %898
      %v900 = vsel %vm495, %v873, 0.0
      %901 = vadd.xlane.f32.xlu0 %v900
      %v902 = vpop.xlane.xlu0 %901
      %v903 = vsel %vm495, %v875, 0.0
      %904 = vadd.xlane.f32.xlu0 %v903
      %v905 = vpop.xlane.xlu0 %904
      %v906 = vsel %vm495, %v877, 0.0
      %907 = vadd.xlane.f32.xlu0 %v906
      %v908 = vpop.xlane.xlu0 %907
      %v909 = vsel %vm495, %v879, 0.0
      %910 = vadd.xlane.f32.xlu0 %v909
      %v911 = vpop.xlane.xlu0 %910
      %v912 = vmul.f32 %v890, 0.125
      %v913 = vmul.f32 %v893, 0.125
      %v914 = vmul.f32 %v896, 0.125
      %v915 = vmul.f32 %v899, 0.125
      %v916 = vmul.f32 %v902, 0.125
      %v917 = vmul.f32 %v905, 0.125
      %v918 = vmul.f32 %v908, 0.125
      %v919 = vmul.f32 %v911, 0.125
      %v920 = vmul.f32 %v856, %v856
      %v921 = vmul.f32 %v857, %v857
      %v922 = vmul.f32 %v858, %v858
      %v923 = vmul.f32 %v859, %v859
      %v924 = vmul.f32 %v860, %v860
      %v925 = vmul.f32 %v861, %v861
      %v926 = vmul.f32 %v862, %v862
      %v927 = vmul.f32 %v863, %v863
      %v928 = vsub.f32 %v912, %v920
      %v929 = vsub.f32 %v913, %v921
      %v930 = vsub.f32 %v914, %v922
      %v931 = vsub.f32 %v915, %v923
      %v932 = vsub.f32 %v916, %v924
      %v933 = vsub.f32 %v917, %v925
      %v934 = vsub.f32 %v918, %v926
      %v935 = vsub.f32 %v919, %v927
      %v936 = vmax.f32 %v928, 0.0
      %v937 = vmax.f32 %v929, 0.0
      %v938 = vmax.f32 %v930, 0.0
      %v939 = vmax.f32 %v931, 0.0
      %v940 = vmax.f32 %v932, 0.0
      %v941 = vmax.f32 %v933, 0.0
      %v942 = vmax.f32 %v934, 0.0
      %v943 = vmax.f32 %v935, 0.0
      %v944 = vsub.f32 %v465, %v856
      %v945 = vsub.f32 %v468, %v857
      %v946 = vsub.f32 %v473, %v858
      %v947 = vsub.f32 %v476, %v859
      %v948 = vsub.f32 %v481, %v860
      %v949 = vsub.f32 %v484, %v861
      %v950 = vsub.f32 %v489, %v862
      %v951 = vsub.f32 %v492, %v863
      %v952 = vadd.f32 %v936, 1e-06
      %v953 = vadd.f32 %v937, 1e-06
      %v954 = vadd.f32 %v938, 1e-06
      %v955 = vadd.f32 %v939, 1e-06
      %v956 = vadd.f32 %v940, 1e-06
      %v957 = vadd.f32 %v941, 1e-06
      %v958 = vadd.f32 %v942, 1e-06
      %v959 = vadd.f32 %v943, 1e-06
      %v960 = vrsqrt.pop %v952
      %v961 = vrsqrt.pop %v953
      %v962 = vrsqrt.pop %v954
      %v963 = vrsqrt.pop %v955
      %v964 = vrsqrt.pop %v956
      %v965 = vrsqrt.pop %v957
      %v966 = vrsqrt.pop %v958
      %v967 = vrsqrt.pop %v959
      %v968 = vmul.f32 %v944, %v960
      %v969 = vmul.f32 %v945, %v961
      %v970 = vmul.f32 %v946, %v962
      %v971 = vmul.f32 %v947, %v963
      %v972 = vmul.f32 %v948, %v964
      %v973 = vmul.f32 %v949, %v965
      %v974 = vmul.f32 %v950, %v966
      %v975 = vmul.f32 %v951, %v967
      %976 = vrot.lane.b32.xlu0 %v465, 104
      %v977 = vpop.permute.xlu0 %976
      %978 = vrot.lane.b32.xlu0 %v468, 104
      %v979 = vpop.permute.xlu0 %978
      %980 = vrot.lane.b32.xlu0 %v473, 104
      %v981 = vpop.permute.xlu0 %980
      %982 = vrot.lane.b32.xlu0 %v476, 104
      %v983 = vpop.permute.xlu0 %982
      %984 = vrot.lane.b32.xlu0 %v481, 104
      %v985 = vpop.permute.xlu0 %984
      %986 = vrot.lane.b32.xlu0 %v484, 104
      %v987 = vpop.permute.xlu0 %986
      %988 = vrot.lane.b32.xlu0 %v489, 104
      %v989 = vpop.permute.xlu0 %988
      %990 = vrot.lane.b32.xlu0 %v492, 104
      %v991 = vpop.permute.xlu0 %990
      %v1000 = vsel %vm495, %v977, 0.0
      %1001 = vadd.xlane.f32.xlu0 %v1000
      %v1002 = vpop.xlane.xlu0 %1001
      %v1003 = vsel %vm495, %v979, 0.0
      %1004 = vadd.xlane.f32.xlu0 %v1003
      %v1005 = vpop.xlane.xlu0 %1004
      %v1006 = vsel %vm495, %v981, 0.0
      %1007 = vadd.xlane.f32.xlu0 %v1006
      %v1008 = vpop.xlane.xlu0 %1007
      %v1009 = vsel %vm495, %v983, 0.0
      %1010 = vadd.xlane.f32.xlu0 %v1009
      %v1011 = vpop.xlane.xlu0 %1010
      %v1012 = vsel %vm495, %v985, 0.0
      %1013 = vadd.xlane.f32.xlu0 %v1012
      %v1014 = vpop.xlane.xlu0 %1013
      %v1015 = vsel %vm495, %v987, 0.0
      %1016 = vadd.xlane.f32.xlu0 %v1015
      %v1017 = vpop.xlane.xlu0 %1016
      %v1018 = vsel %vm495, %v989, 0.0
      %1019 = vadd.xlane.f32.xlu0 %v1018
      %v1020 = vpop.xlane.xlu0 %1019
      %v1021 = vsel %vm495, %v991, 0.0
      %1022 = vadd.xlane.f32.xlu0 %v1021
      %v1023 = vpop.xlane.xlu0 %1022
      %v1024 = vmul.f32 %v1002, 0.125
      %v1025 = vmul.f32 %v1005, 0.125
      %v1026 = vmul.f32 %v1008, 0.125
      %v1027 = vmul.f32 %v1011, 0.125
      %v1028 = vmul.f32 %v1014, 0.125
      %v1029 = vmul.f32 %v1017, 0.125
      %v1030 = vmul.f32 %v1020, 0.125
      %v1031 = vmul.f32 %v1023, 0.125
      %1032 = vrot.lane.b32.xlu0 %v528, 104
      %v1033 = vpop.permute.xlu0 %1032
      %1034 = vrot.lane.b32.xlu0 %v529, 104
      %v1035 = vpop.permute.xlu0 %1034
      %1036 = vrot.lane.b32.xlu0 %v530, 104
      %v1037 = vpop.permute.xlu0 %1036
      %1038 = vrot.lane.b32.xlu0 %v531, 104
      %v1039 = vpop.permute.xlu0 %1038
      %1040 = vrot.lane.b32.xlu0 %v532, 104
      %v1041 = vpop.permute.xlu0 %1040
      %1042 = vrot.lane.b32.xlu0 %v533, 104
      %v1043 = vpop.permute.xlu0 %1042
      %1044 = vrot.lane.b32.xlu0 %v534, 104
      %v1045 = vpop.permute.xlu0 %1044
      %1046 = vrot.lane.b32.xlu0 %v535, 104
      %v1047 = vpop.permute.xlu0 %1046
      %v1056 = vsel %vm495, %v1033, 0.0
      %1057 = vadd.xlane.f32.xlu0 %v1056
      %v1058 = vpop.xlane.xlu0 %1057
      %v1059 = vsel %vm495, %v1035, 0.0
      %1060 = vadd.xlane.f32.xlu0 %v1059
      %v1061 = vpop.xlane.xlu0 %1060
      %v1062 = vsel %vm495, %v1037, 0.0
      %1063 = vadd.xlane.f32.xlu0 %v1062
      %v1064 = vpop.xlane.xlu0 %1063
      %v1065 = vsel %vm495, %v1039, 0.0
      %1066 = vadd.xlane.f32.xlu0 %v1065
      %v1067 = vpop.xlane.xlu0 %1066
      %v1068 = vsel %vm495, %v1041, 0.0
      %1069 = vadd.xlane.f32.xlu0 %v1068
      %v1070 = vpop.xlane.xlu0 %1069
      %v1071 = vsel %vm495, %v1043, 0.0
      %1072 = vadd.xlane.f32.xlu0 %v1071
      %v1073 = vpop.xlane.xlu0 %1072
      %v1074 = vsel %vm495, %v1045, 0.0
      %1075 = vadd.xlane.f32.xlu0 %v1074
      %v1076 = vpop.xlane.xlu0 %1075
      %v1077 = vsel %vm495, %v1047, 0.0
      %1078 = vadd.xlane.f32.xlu0 %v1077
      %v1079 = vpop.xlane.xlu0 %1078
      %v1080 = vmul.f32 %v1058, 0.125
      %v1081 = vmul.f32 %v1061, 0.125
      %v1082 = vmul.f32 %v1064, 0.125
      %v1083 = vmul.f32 %v1067, 0.125
      %v1084 = vmul.f32 %v1070, 0.125
      %v1085 = vmul.f32 %v1073, 0.125
      %v1086 = vmul.f32 %v1076, 0.125
      %v1087 = vmul.f32 %v1079, 0.125
      %v1088 = vmul.f32 %v1024, %v1024
      %v1089 = vmul.f32 %v1025, %v1025
      %v1090 = vmul.f32 %v1026, %v1026
      %v1091 = vmul.f32 %v1027, %v1027
      %v1092 = vmul.f32 %v1028, %v1028
      %v1093 = vmul.f32 %v1029, %v1029
      %v1094 = vmul.f32 %v1030, %v1030
      %v1095 = vmul.f32 %v1031, %v1031
      %v1096 = vsub.f32 %v1080, %v1088
      %v1097 = vsub.f32 %v1081, %v1089
      %v1098 = vsub.f32 %v1082, %v1090
      %v1099 = vsub.f32 %v1083, %v1091
      %v1100 = vsub.f32 %v1084, %v1092
      %v1101 = vsub.f32 %v1085, %v1093
      %v1102 = vsub.f32 %v1086, %v1094
      %v1103 = vsub.f32 %v1087, %v1095
      %v1104 = vmax.f32 %v1096, 0.0
      %v1105 = vmax.f32 %v1097, 0.0
      %v1106 = vmax.f32 %v1098, 0.0
      %v1107 = vmax.f32 %v1099, 0.0
      %v1108 = vmax.f32 %v1100, 0.0
      %v1109 = vmax.f32 %v1101, 0.0
      %v1110 = vmax.f32 %v1102, 0.0
      %v1111 = vmax.f32 %v1103, 0.0
      %v1112 = vsub.f32 %v465, %v1024
      %v1113 = vsub.f32 %v468, %v1025
      %v1114 = vsub.f32 %v473, %v1026
      %v1115 = vsub.f32 %v476, %v1027
      %v1116 = vsub.f32 %v481, %v1028
      %v1117 = vsub.f32 %v484, %v1029
      %v1118 = vsub.f32 %v489, %v1030
      %v1119 = vsub.f32 %v492, %v1031
      %v1120 = vadd.f32 %v1104, 1e-06
      %v1121 = vadd.f32 %v1105, 1e-06
      %v1122 = vadd.f32 %v1106, 1e-06
      %v1123 = vadd.f32 %v1107, 1e-06
      %v1124 = vadd.f32 %v1108, 1e-06
      %v1125 = vadd.f32 %v1109, 1e-06
      %v1126 = vadd.f32 %v1110, 1e-06
      %v1127 = vadd.f32 %v1111, 1e-06
      %v1128 = vrsqrt.pop %v1120
      %v1129 = vrsqrt.pop %v1121
      %v1130 = vrsqrt.pop %v1122
      %v1131 = vrsqrt.pop %v1123
      %v1132 = vrsqrt.pop %v1124
      %v1133 = vrsqrt.pop %v1125
      %v1134 = vrsqrt.pop %v1126
      %v1135 = vrsqrt.pop %v1127
      %v1136 = vmul.f32 %v1112, %v1128
      %v1137 = vmul.f32 %v1113, %v1129
      %v1138 = vmul.f32 %v1114, %v1130
      %v1139 = vmul.f32 %v1115, %v1131
      %v1140 = vmul.f32 %v1116, %v1132
      %v1141 = vmul.f32 %v1117, %v1133
      %v1142 = vmul.f32 %v1118, %v1134
      %v1143 = vmul.f32 %v1119, %v1135
      %v1144 = vsel %vm495, %v616, %v800
      %v1145 = vsel %vm495, %v617, %v801
      %v1146 = vsel %vm495, %v618, %v802
      %v1147 = vsel %vm495, %v619, %v803
      %v1148 = vsel %vm495, %v620, %v804
      %v1149 = vsel %vm495, %v621, %v805
      %v1150 = vsel %vm495, %v622, %v806
      %v1151 = vsel %vm495, %v623, %v807
      %vm1152 = vcmask 130048
      %v1153 = vsel %vm1152, %v1144, %v968
      %v1154 = vsel %vm1152, %v1145, %v969
      %v1155 = vsel %vm1152, %v1146, %v970
      %v1156 = vsel %vm1152, %v1147, %v971
      %v1157 = vsel %vm1152, %v1148, %v972
      %v1158 = vsel %vm1152, %v1149, %v973
      %v1159 = vsel %vm1152, %v1150, %v974
      %v1160 = vsel %vm1152, %v1151, %v975
      %vm1161 = vcmask 195584
      %v1162 = vsel %vm1161, %v1153, %v1136
      %v1163 = vsel %vm1161, %v1154, %v1137
      %v1164 = vsel %vm1161, %v1155, %v1138
      %v1165 = vsel %vm1161, %v1156, %v1139
      %v1166 = vsel %vm1161, %v1157, %v1140
      %v1167 = vsel %vm1161, %v1158, %v1141
      %v1168 = vsel %vm1161, %v1159, %v1142
      %v1169 = vsel %vm1161, %v1160, %v1143
      %v1170 = vld [vmem:[%s3] sm:$0x1]
      %v1172 = vlaneseq
      %v1173 = vshrl.u32 %v1172, 7
      %v1174 = vsub.s32 0, %v1173
      %v1175 = vrot.slane %v1170, %v1174
      %v1177 = vmul.f32 %v1162, %v1175
      %v1178 = vmul.f32 %v1163, %v1175
      %v1179 = vmul.f32 %v1164, %v1175
      %v1180 = vmul.f32 %v1165, %v1175
      %v1181 = vmul.f32 %v1166, %v1175
      %v1182 = vmul.f32 %v1167, %v1175
      %v1183 = vmul.f32 %v1168, %v1175
      %v1184 = vmul.f32 %v1169, %v1175
      %v1185 = vld [vmem:[%s4] sm:$0x1]
      %v1187 = vlaneseq
      %v1188 = vshrl.u32 %v1187, 7
      %v1189 = vsub.s32 0, %v1188
      %v1190 = vrot.slane %v1185, %v1189
      %v1192 = vadd.f32 %v1177, %v1190
      %v1193 = vadd.f32 %v1178, %v1190
      %v1194 = vadd.f32 %v1179, %v1190
      %v1195 = vadd.f32 %v1180, %v1190
      %v1196 = vadd.f32 %v1181, %v1190
      %v1197 = vadd.f32 %v1182, %v1190
      %v1198 = vadd.f32 %v1183, %v1190
      %v1199 = vadd.f32 %v1184, %v1190
      %v1200 = vmul.f32 %v1192, 0.5
      %v1201 = vmul.f32 %v1193, 0.5
      %v1202 = vmul.f32 %v1194, 0.5
      %v1203 = vmul.f32 %v1195, 0.5
      %v1204 = vmul.f32 %v1196, 0.5
      %v1205 = vmul.f32 %v1197, 0.5
      %v1206 = vmul.f32 %v1198, 0.5
      %v1207 = vmul.f32 %v1199, 0.5
      %v1208 = vmul.f32 %v1192, 0.044715
      %v1209 = vmul.f32 %v1193, 0.044715
      %v1210 = vmul.f32 %v1194, 0.044715
      %v1211 = vmul.f32 %v1195, 0.044715
      %v1212 = vmul.f32 %v1196, 0.044715
      %v1213 = vmul.f32 %v1197, 0.044715
      %v1214 = vmul.f32 %v1198, 0.044715
      %v1215 = vmul.f32 %v1199, 0.044715
      %v1216 = vmul.f32 %v1208, %v1192
      %v1217 = vmul.f32 %v1209, %v1193
      %v1218 = vmul.f32 %v1210, %v1194
      %v1219 = vmul.f32 %v1211, %v1195
      %v1220 = vmul.f32 %v1212, %v1196
      %v1221 = vmul.f32 %v1213, %v1197
      %v1222 = vmul.f32 %v1214, %v1198
      %v1223 = vmul.f32 %v1215, %v1199
      %v1224 = vmul.f32 %v1216, %v1192
      %v1225 = vmul.f32 %v1217, %v1193
      %v1226 = vmul.f32 %v1218, %v1194
      %v1227 = vmul.f32 %v1219, %v1195
      %v1228 = vmul.f32 %v1220, %v1196
      %v1229 = vmul.f32 %v1221, %v1197
      %v1230 = vmul.f32 %v1222, %v1198
      %v1231 = vmul.f32 %v1223, %v1199
      %v1232 = vadd.f32 %v1192, %v1224
      %v1233 = vadd.f32 %v1193, %v1225
      %v1234 = vadd.f32 %v1194, %v1226
      %v1235 = vadd.f32 %v1195, %v1227
      %v1236 = vadd.f32 %v1196, %v1228
      %v1237 = vadd.f32 %v1197, %v1229
      %v1238 = vadd.f32 %v1198, %v1230
      %v1239 = vadd.f32 %v1199, %v1231
      %v1240 = vmul.f32 %v1232, 0.7978846
      %v1241 = vmul.f32 %v1233, 0.7978846
      %v1242 = vmul.f32 %v1234, 0.7978846
      %v1243 = vmul.f32 %v1235, 0.7978846
      %v1244 = vmul.f32 %v1236, 0.7978846
      %v1245 = vmul.f32 %v1237, 0.7978846
      %v1246 = vmul.f32 %v1238, 0.7978846
      %v1247 = vmul.f32 %v1239, 0.7978846
      %v1248 = vtanh.pop %v1240
      %v1249 = vtanh.pop %v1241
      %v1250 = vtanh.pop %v1242
      %v1251 = vtanh.pop %v1243
      %v1252 = vtanh.pop %v1244
      %v1253 = vtanh.pop %v1245
      %v1254 = vtanh.pop %v1246
      %v1255 = vtanh.pop %v1247
      %v1256 = vadd.f32 %v1248, 1.0
      %v1257 = vadd.f32 %v1249, 1.0
      %v1258 = vadd.f32 %v1250, 1.0
      %v1259 = vadd.f32 %v1251, 1.0
      %v1260 = vadd.f32 %v1252, 1.0
      %v1261 = vadd.f32 %v1253, 1.0
      %v1262 = vadd.f32 %v1254, 1.0
      %v1263 = vadd.f32 %v1255, 1.0
      %v1264 = vmul.f32 %v1200, %v1256
      %v1265 = vmul.f32 %v1201, %v1257
      %v1266 = vmul.f32 %v1202, %v1258
      %v1267 = vmul.f32 %v1203, %v1259
      %v1268 = vmul.f32 %v1204, %v1260
      %v1269 = vmul.f32 %v1205, %v1261
      %v1270 = vmul.f32 %v1206, %v1262
      %v1271 = vmul.f32 %v1207, %v1263
      %v1272 = vpack.c.bf16 %v1265, %v1264
      %v1273 = vpack.c.bf16 %v1267, %v1266
      %v1274 = vpack.c.bf16 %v1269, %v1268
      %v1275 = vpack.c.bf16 %v1271, %v1270
      %v1276 = vld [vmem:[%s5] sm:$0xf]
      %v1277 = vld [vmem:[%s5 + $0x4] sm:$0xf]
      %v1278 = vld [vmem:[%s5 + $0x8] sm:$0xf]
      %v1279 = vld [vmem:[%s5 + $0xc] sm:$0xf]
      %v1280 = vld [vmem:[%s6] sm:$0x1]
      %v1282 = vlaneseq
      %v1283 = vshrl.u32 %v1282, 7
      %v1284 = vsub.s32 0, %v1283
      %v1285 = vrot.slane %v1280, %v1284
      %v1291 = vunpack.c.l.b16 %v1276
      %v1292 = vunpack.c.l.b16 %v1277
      %v1293 = vunpack.c.l.b16 %v1278
      %v1294 = vunpack.c.l.b16 %v1279
      %v1295 = vpack.c.b16 %v1292, %v1291
      %v1296 = vpack.c.b16 %v1294, %v1293
      %v1300 = vsel %vm417, %v1272, 0
      %v1303 = vsel %vm417, %v1273, 0
      %v1306 = vsel %vm417, %v1274, 0
      %v1309 = vsel %vm417, %v1275, 0
      %1311 = vmatprep.subr.bf16.mxu0 0
      %1312 = vmatpush1.bf16.msra.mxu0 %v1295
      %1313 = vmatprep.subr.bf16.mxu0 0
      %1314 = vmatpush1.bf16.msra.mxu0 %v1296
      %1315 = vmatprep.subr.bf16.mxu0 0
      %1316 = vmatpush1.bf16.msra.mxu0 0
      %1317 = vmatprep.subr.bf16.mxu0 0
      %1318 = vmatpush1.bf16.msra.mxu0 0
      %1319 = vmatprep.subr.bf16.mxu0 0
      %1320 = vmatpush1.bf16.msra.mxu0 0
      %1321 = vmatprep.subr.bf16.mxu0 0
      %1322 = vmatpush1.bf16.msra.mxu0 0
      %1323 = vmatprep.subr.bf16.mxu0 0
      %1324 = vmatpush1.bf16.msra.mxu0 0
      %1325 = vmatprep.subr.bf16.mxu0 0
      %1326 = vmatpush1.bf16.msra.mxu0 0
      %1327 = vmatprep.subr.bf16.mxu0 0
      %1328 = vmatpush1.bf16.msra.mxu0 0
      %1329 = vmatprep.subr.bf16.mxu0 0
      %1330 = vmatpush1.bf16.msra.mxu0 0
      %1331 = vmatprep.subr.bf16.mxu0 0
      %1332 = vmatpush1.bf16.msra.mxu0 0
      %1333 = vmatprep.subr.bf16.mxu0 0
      %1334 = vmatpush1.bf16.msra.mxu0 0
      %1335 = vmatprep.subr.bf16.mxu0 0
      %1336 = vmatpush1.bf16.msra.mxu0 0
      %1337 = vmatprep.subr.bf16.mxu0 0
      %1338 = vmatpush1.bf16.msra.mxu0 0
      %1339 = vmatprep.subr.bf16.mxu0 0
      %1340 = vmatpush1.bf16.msra.mxu0 0
      %1341 = vmatprep.subr.bf16.mxu0 0
      %1342 = vmatpush1.bf16.msra.mxu0 0
      %1343 = vmatprep.mubr.bf16.mxu0 0
      %1344 = vmatmul.mubr.bf16.gmra.mrb[0].mxu0 %v1300
      %v1345 = vpop.f32.mrb[0].mxu0
      %v1346 = vadd.f32 %v1285, %v1345
      %v1347 = vpop.f32.mrb[0].mxu0
      %v1348 = vpop.f32.mrb[0].mxu0
      %v1349 = vadd.f32 %v1285, %v1348
      %v1350 = vpop.f32.mrb[0].mxu0
      %1351 = vmatprep.mubr.bf16.mxu0 0
      %1352 = vmatmul.mubr.bf16.gmra.mrb[0].mxu0 %v1303
      %v1353 = vpop.f32.mrb[0].mxu0
      %v1354 = vadd.f32 %v1285, %v1353
      %v1355 = vpop.f32.mrb[0].mxu0
      %v1356 = vpop.f32.mrb[0].mxu0
      %v1357 = vadd.f32 %v1285, %v1356
      %v1358 = vpop.f32.mrb[0].mxu0
      %1359 = vmatprep.mubr.bf16.mxu0 0
      %1360 = vmatmul.mubr.bf16.gmra.mrb[0].mxu0 %v1306
      %v1361 = vpop.f32.mrb[0].mxu0
      %v1362 = vadd.f32 %v1285, %v1361
      %v1363 = vpop.f32.mrb[0].mxu0
      %v1364 = vpop.f32.mrb[0].mxu0
      %v1365 = vadd.f32 %v1285, %v1364
      %v1366 = vpop.f32.mrb[0].mxu0
      %1367 = vmatprep.mubr.bf16.mxu0 0
      %1368 = vmatmul.mubr.bf16.gmra.mrb[0].mxu0 %v1309
      %v1369 = vpop.f32.mrb[0].mxu0
      %v1370 = vadd.f32 %v1285, %v1369
      %v1371 = vpop.f32.mrb[0].mxu0
      %v1372 = vpop.f32.mrb[0].mxu0
      %v1373 = vadd.f32 %v1285, %v1372
      %v1374 = vpop.f32.mrb[0].mxu0
      %1375 = vdwg.mxu0
      %v1376 = vmul.f32 %v1346, 0.5
      %v1377 = vmul.f32 %v1349, 0.5
      %v1378 = vmul.f32 %v1354, 0.5
      %v1379 = vmul.f32 %v1357, 0.5
      %v1380 = vmul.f32 %v1362, 0.5
      %v1381 = vmul.f32 %v1365, 0.5
      %v1382 = vmul.f32 %v1370, 0.5
      %v1383 = vmul.f32 %v1373, 0.5
      %v1384 = vmul.f32 %v1346, 0.044715
      %v1385 = vmul.f32 %v1349, 0.044715
      %v1386 = vmul.f32 %v1354, 0.044715
      %v1387 = vmul.f32 %v1357, 0.044715
      %v1388 = vmul.f32 %v1362, 0.044715
      %v1389 = vmul.f32 %v1365, 0.044715
      %v1390 = vmul.f32 %v1370, 0.044715
      %v1391 = vmul.f32 %v1373, 0.044715
      %v1392 = vmul.f32 %v1384, %v1346
      %v1393 = vmul.f32 %v1385, %v1349
      %v1394 = vmul.f32 %v1386, %v1354
      %v1395 = vmul.f32 %v1387, %v1357
      %v1396 = vmul.f32 %v1388, %v1362
      %v1397 = vmul.f32 %v1389, %v1365
      %v1398 = vmul.f32 %v1390, %v1370
      %v1399 = vmul.f32 %v1391, %v1373
      %v1400 = vmul.f32 %v1392, %v1346
      %v1401 = vmul.f32 %v1393, %v1349
      %v1402 = vmul.f32 %v1394, %v1354
      %v1403 = vmul.f32 %v1395, %v1357
      %v1404 = vmul.f32 %v1396, %v1362
      %v1405 = vmul.f32 %v1397, %v1365
      %v1406 = vmul.f32 %v1398, %v1370
      %v1407 = vmul.f32 %v1399, %v1373
      %v1408 = vadd.f32 %v1346, %v1400
      %v1409 = vadd.f32 %v1349, %v1401
      %v1410 = vadd.f32 %v1354, %v1402
      %v1411 = vadd.f32 %v1357, %v1403
      %v1412 = vadd.f32 %v1362, %v1404
      %v1413 = vadd.f32 %v1365, %v1405
      %v1414 = vadd.f32 %v1370, %v1406
      %v1415 = vadd.f32 %v1373, %v1407
      %v1416 = vmul.f32 %v1408, 0.7978846
      %v1417 = vmul.f32 %v1409, 0.7978846
      %v1418 = vmul.f32 %v1410, 0.7978846
      %v1419 = vmul.f32 %v1411, 0.7978846
      %v1420 = vmul.f32 %v1412, 0.7978846
      %v1421 = vmul.f32 %v1413, 0.7978846
      %v1422 = vmul.f32 %v1414, 0.7978846
      %v1423 = vmul.f32 %v1415, 0.7978846
      %v1424 = vtanh.pop %v1416
      %v1425 = vtanh.pop %v1417
      %v1426 = vtanh.pop %v1418
      %v1427 = vtanh.pop %v1419
      %v1428 = vtanh.pop %v1420
      %v1429 = vtanh.pop %v1421
      %v1430 = vtanh.pop %v1422
      %v1431 = vtanh.pop %v1423
      %v1432 = vadd.f32 %v1424, 1.0
      %v1433 = vadd.f32 %v1425, 1.0
      %v1434 = vadd.f32 %v1426, 1.0
      %v1435 = vadd.f32 %v1427, 1.0
      %v1436 = vadd.f32 %v1428, 1.0
      %v1437 = vadd.f32 %v1429, 1.0
      %v1438 = vadd.f32 %v1430, 1.0
      %v1439 = vadd.f32 %v1431, 1.0
      %v1440 = vmul.f32 %v1376, %v1432
      %v1441 = vmul.f32 %v1377, %v1433
      %v1442 = vmul.f32 %v1378, %v1434
      %v1443 = vmul.f32 %v1379, %v1435
      %v1444 = vmul.f32 %v1380, %v1436
      %v1445 = vmul.f32 %v1381, %v1437
      %v1446 = vmul.f32 %v1382, %v1438
      %v1447 = vmul.f32 %v1383, %v1439
      %v1448 = vpack.c.bf16 %v1441, %v1440
      %v1449 = vpack.c.bf16 %v1443, %v1442
      %v1450 = vpack.c.bf16 %v1445, %v1444
      %v1451 = vpack.c.bf16 %v1447, %v1446
      %v1452 = vld [vmem:[%s354] sm:$0xf]
      %v1453 = vld [vmem:[%s354 + $0x4] sm:$0xf]
      %v1454 = vld [vmem:[%s354 + $0x8] sm:$0xf]
      %v1455 = vld [vmem:[%s354 + $0xc] sm:$0xf]
      %v1456 = vld [vmem:[%s354 + $0x10] sm:$0xf]
      %v1457 = vld [vmem:[%s354 + $0x14] sm:$0xf]
      %v1458 = vld [vmem:[%s354 + $0x18] sm:$0xf]
      %v1459 = vld [vmem:[%s354 + $0x1c] sm:$0xf]
      %v1468 = vunpack.c.l.b16 %v1452
      %v1469 = vunpack.c.l.b16 %v1453
      %v1470 = vunpack.c.l.b16 %v1454
      %v1471 = vunpack.c.l.b16 %v1455
      %v1472 = vunpack.c.l.b16 %v1456
      %v1473 = vunpack.c.l.b16 %v1457
      %v1474 = vunpack.c.l.b16 %v1458
      %v1475 = vunpack.c.l.b16 %v1459
      %v1476 = vpack.c.b16 %v1469, %v1468
      %v1477 = vpack.c.b16 %v1471, %v1470
      %v1478 = vpack.c.b16 %v1473, %v1472
      %v1479 = vpack.c.b16 %v1475, %v1474
      %vm1484 = vcmask 523264
      %v1486 = vsel %vm1484, %v1448, 0
      %v1489 = vsel %vm1484, %v1449, 0
      %v1492 = vsel %vm1484, %v1450, 0
      %v1495 = vsel %vm1484, %v1451, 0
      %1497 = vmatprep.subr.bf16.mxu0 0
      %1498 = vmatpush1.bf16.msra.mxu0 %v1476
      %1499 = vmatprep.subr.bf16.mxu0 0
      %1500 = vmatpush1.bf16.msra.mxu0 %v1477
      %1501 = vmatprep.subr.bf16.mxu0 0
      %1502 = vmatpush1.bf16.msra.mxu0 %v1478
      %1503 = vmatprep.subr.bf16.mxu0 0
      %1504 = vmatpush1.bf16.msra.mxu0 %v1479
      %1505 = vmatprep.subr.bf16.mxu0 0
      %1506 = vmatpush1.bf16.msra.mxu0 0
      %1507 = vmatprep.subr.bf16.mxu0 0
      %1508 = vmatpush1.bf16.msra.mxu0 0
      %1509 = vmatprep.subr.bf16.mxu0 0
      %1510 = vmatpush1.bf16.msra.mxu0 0
      %1511 = vmatprep.subr.bf16.mxu0 0
      %1512 = vmatpush1.bf16.msra.mxu0 0
      %1513 = vmatprep.subr.bf16.mxu0 0
      %1514 = vmatpush1.bf16.msra.mxu0 0
      %1515 = vmatprep.subr.bf16.mxu0 0
      %1516 = vmatpush1.bf16.msra.mxu0 0
      %1517 = vmatprep.subr.bf16.mxu0 0
      %1518 = vmatpush1.bf16.msra.mxu0 0
      %1519 = vmatprep.subr.bf16.mxu0 0
      %1520 = vmatpush1.bf16.msra.mxu0 0
      %1521 = vmatprep.subr.bf16.mxu0 0
      %1522 = vmatpush1.bf16.msra.mxu0 0
      %1523 = vmatprep.subr.bf16.mxu0 0
      %1524 = vmatpush1.bf16.msra.mxu0 0
      %1525 = vmatprep.subr.bf16.mxu0 0
      %1526 = vmatpush1.bf16.msra.mxu0 0
      %1527 = vmatprep.subr.bf16.mxu0 0
      %1528 = vmatpush1.bf16.msra.mxu0 0
      %1529 = vmatprep.mubr.bf16.mxu0 0
      %1530 = vmatmul.mubr.bf16.gmra.mrb[0].mxu0 %v1486
      %v1531 = vpop.f32.mrb[0].mxu0
      %v1532 = vadd.f32 0.0, %v1531
      %v1533 = vpop.f32.mrb[0].mxu0
      %v1534 = vpop.f32.mrb[0].mxu0
      %v1535 = vadd.f32 0.0, %v1534
      %v1536 = vpop.f32.mrb[0].mxu0
      %1537 = vmatprep.mubr.bf16.mxu0 0
      %1538 = vmatmul.mubr.bf16.gmra.mrb[0].mxu0 %v1489
      %v1539 = vpop.f32.mrb[0].mxu0
      %v1540 = vadd.f32 0.0, %v1539
      %v1541 = vpop.f32.mrb[0].mxu0
      %v1542 = vpop.f32.mrb[0].mxu0
      %v1543 = vadd.f32 0.0, %v1542
      %v1544 = vpop.f32.mrb[0].mxu0
      %1545 = vmatprep.mubr.bf16.mxu0 0
      %1546 = vmatmul.mubr.bf16.gmra.mrb[0].mxu0 %v1492
      %v1547 = vpop.f32.mrb[0].mxu0
      %v1548 = vadd.f32 0.0, %v1547
      %v1549 = vpop.f32.mrb[0].mxu0
      %v1550 = vpop.f32.mrb[0].mxu0
      %v1551 = vadd.f32 0.0, %v1550
      %v1552 = vpop.f32.mrb[0].mxu0
      %1553 = vmatprep.mubr.bf16.mxu0 0
      %1554 = vmatmul.mubr.bf16.gmra.mrb[0].mxu0 %v1495
      %v1555 = vpop.f32.mrb[0].mxu0
      %v1556 = vadd.f32 0.0, %v1555
      %v1557 = vpop.f32.mrb[0].mxu0
      %v1558 = vpop.f32.mrb[0].mxu0
      %v1559 = vadd.f32 0.0, %v1558
      %v1560 = vpop.f32.mrb[0].mxu0
      %1561 = vdwg.mxu0
      %1562 = vst.msk [vmem:[%s363] sm:$0xff] %vm1484, %v1532
      %1563 = vst.msk [vmem:[%s363 + $0x8] sm:$0xff] %vm1484, %v1535
      %1564 = vst.msk [vmem:[%s363 + $0x10] sm:$0xff] %vm1484, %v1540
      %1565 = vst.msk [vmem:[%s363 + $0x18] sm:$0xff] %vm1484, %v1543
      %1566 = vst.msk [vmem:[%s363 + $0x20] sm:$0xff] %vm1484, %v1548
      %1567 = vst.msk [vmem:[%s363 + $0x28] sm:$0xff] %vm1484, %v1551
      %1568 = vst.msk [vmem:[%s363 + $0x30] sm:$0xff] %vm1484, %v1556
      %1569 = vst.msk [vmem:[%s363 + $0x38] sm:$0xff] %vm1484, %v1559
      %s1570 = smul.u32 8, %s24
      %p1571 = scmp.lt.s32.totalorder %s23, 1
      %s1572 = scalar_select %p1571, %s23, 1
      %p1573 = scmp.lt.s32.totalorder %s1570, 7
      %s1574 = scalar_select %p1573, %s1570, 7
      %s1575 = smul.addr %s1572, 8
      %s1576 = sadd.s32 %s1574, %s1575
      %s1577 = smul.addr %s1576, 8
      %s1578 = scalar_lea.vmem %s8, %s1577
      // Predicated region
      $region53: #{mask_decoder_forward.4} parent=51 // pred_check
        %p1579 = pneg %p231
      $region54: #{mask_decoder_forward.4} parent=51 // pred_check_branch
        %1581 = sbr.rel (%p1579) target = $region56
      $region55: #{mask_decoder_forward.4} parent=51 // pred_region
        %s1582 = smul.u32 8, %s24
      $region56: #{mask_decoder_forward.4} parent=51 // pred_fallthru
        _
    $region52: #{mask_decoder_forward.4} parent=5 // pred_fallthru
      _
    %p1583 = scmp.le.s32.totalorder 2, %s14
    // Predicated region
    $region57: #{mask_decoder_forward.4} parent=5 // pred_check
      %p1584 = pneg %p1583
    $region58: #{mask_decoder_forward.4} parent=5 // pred_check_branch
      %1586 = sbr.rel (%p1584) target = $region60
    $region59: #{mask_decoder_forward.4} parent=5 // pred_region
      %s1587 = ssub.s32 %s14, 2
      // Predicated region
      $region61: #{mask_decoder_forward.4} parent=59 // pred_check
        %p1588 = pneg %p237
      $region62: #{mask_decoder_forward.4} parent=59 // pred_check_branch
        %1590 = sbr.rel (%p1588) target = $region64
      $region63: #{mask_decoder_forward.4} parent=59 // pred_region
        %s1591 = smul.u32 8, %s26
        %p1592 = scmp.lt.s32.totalorder %s25, 1
        %s1593 = scalar_select %p1592, %s25, 1
        %p1594 = scmp.lt.s32.totalorder %s1591, 7
        %s1595 = scalar_select %p1594, %s1591, 7
        %s1596 = smul.addr %s1593, 8
        %s1597 = sadd.s32 %s1595, %s1596
        %s1598 = smul.addr %s1597, 8
        %s1599 = scalar_lea.vmem %s8, %s1598
      $region64: #{mask_decoder_forward.4} parent=59 // pred_fallthru
        _
    $region60: #{mask_decoder_forward.4} parent=5 // pred_fallthru
      _
  $region6: #{mask_decoder_forward.4} parent=0 // loop_footer
    %s18 = sadd.s32 1, %s14
  $region7: #{mask_decoder_forward.4} parent=0 // loop_footer_branch
    %13 = sbr.rel target = $region3
  $region8: #{mask_decoder_forward.4} parent=0 // loop_exit
    _

</llo_original>
